<compile_context>
chip_gen: v7x
topology: tpu7x:2x2x1
jax: 0.10.0
libtpu: 0.0.40
codegen_flags: <defaults>
</compile_context>

<pallas_src>
import math

import jax
import jax.numpy as jnp
from jax import lax
from jax.experimental import pallas as pl
from jax.experimental.pallas import tpu as pltpu

N1 = math.ceil(0.2 * 288)       # 58 real clusters after pool 1 (fixed in torch __init__)
N1P = 64                        # sublane-aligned padded cluster count for stage 2
N2 = math.ceil(0.2 * N1)        # 12 clusters after pool 2
HID = 12                        # hidden width of every GNN branch
PAD = 128                       # lane-aligned offset of the emb half in fused layer-1 outputs
NEG = -1e30                     # logit mask for padded clusters (softmax -> exact 0)


# ---------------------------------------------------------------------------
# Single fused kernel body (one graph per grid step)
# ---------------------------------------------------------------------------
def _net_kernel(
    x_ref, adj_ref,
    c1w0_ref, c1bs0_ref, c1w1_ref, c1bs1_ref,
    c2w0_ref, c2bs0_ref, c2w1_ref, c2bs1_ref,
    g3w0_ref, g3bs0_ref, g3w1_ref, g3bs1_ref,
    fc1wt_ref, head_ref,
    out_ref,
):
    f32 = jnp.float32

    def normalize(adj):
        # DenseGCNConv: set diag to 1 (add_loop), clamp degree, D^-1/2 A D^-1/2.
        # adj is symmetric, so the column degrees equal the row degrees and we
        # can use a sublane reduce instead of transposing dinv.
        n = adj.shape[0]
        row = lax.broadcasted_iota(jnp.int32, (n, n), 0)
        col = lax.broadcasted_iota(jnp.int32, (n, n), 1)
        adj = jnp.where(row == col, 1.0, adj)
        d_row = jnp.maximum(jnp.sum(adj, axis=-1, keepdims=True), 1.0)   # (n, 1)
        d_col = jnp.maximum(jnp.sum(adj, axis=0, keepdims=True), 1.0)    # (1, n)
        return lax.rsqrt(d_row) * adj * lax.rsqrt(d_col)

    def gcn_pair(x, adj_n, w0, bs0, w1, bs1, c_pool, c_emb):
        # pool + emb branches fused: layer-0 weights concatenated, layer-1
        # weights block-diagonal with the emb block at lane offset PAD.
        # Propagate-then-transform: (A_n X) W == A_n (X W).
        h0 = jnp.dot(jnp.dot(adj_n, x, preferred_element_type=f32), w0,
                     preferred_element_type=f32) + bs0[0:1, :]
        h0 = jnp.where(h0 >= 0.0, h0, bs0[1:2, :] * h0)                  # per-column PReLU
        h1 = jnp.dot(jnp.dot(adj_n, h0, preferred_element_type=f32), w1,
                     preferred_element_type=f32) + bs1[0:1, :]
        h1 = jnp.where(h1 >= 0.0, h1, bs1[1:2, :] * h1)
        return h1[:, :c_pool], h1[:, PAD:PAD + c_emb]

    def gcn_single(x, adj_n, w0, bs0, w1, bs1):
        h = jnp.dot(jnp.dot(adj_n, x, preferred_element_type=f32), w0,
                    preferred_element_type=f32) + bs0[0:1, :]
        h = jnp.where(h >= 0.0, h, bs0[1:2, :] * h)
        h = jnp.dot(jnp.dot(adj_n, h, preferred_element_type=f32), w1,
                    preferred_element_type=f32) + bs1[0:1, :]
        return jnp.where(h >= 0.0, h, bs1[1:2, :] * h)

    def diff_pool(x, adj, s_logits):
        # softmax over clusters, then X' = S^T X, A' = S^T A S (no explicit
        # transpose of S: transposed-LHS contraction).
        s = s_logits - jnp.max(s_logits, axis=-1, keepdims=True)
        e = jnp.exp(s)
        s = e * pl.reciprocal(jnp.sum(e, axis=-1, keepdims=True), approx=True)
        tn = (((0,), (0,)), ((), ()))                                    # contract node dim of s
        xo = lax.dot_general(s, x, dimension_numbers=tn, preferred_element_type=f32)
        sa = lax.dot_general(s, adj, dimension_numbers=tn, preferred_element_type=f32)
        ao = jnp.dot(sa, s, preferred_element_type=f32)
        return xo, ao

    x = x_ref[0]                                                         # (N, F_in)
    adj1 = adj_ref[0]                                                    # (N, N)

    # ---- stage 1: input graph, pool + emb GNNs share x and adj_n ----
    adj1n = normalize(adj1)
    s1, e1 = gcn_pair(x, adj1n, c1w0_ref[...], c1bs0_ref[...],
                      c1w1_ref[...], c1bs1_ref[...], N1P, HID)
    # padded cluster logits carry a -1e30 bias -> softmax weight exactly 0,
    # so rows/cols >= N1 of x2/adj2 are exact zeros.
    x2, adj2 = diff_pool(e1, adj1, s1)                                   # (64, 12), (64, 64)

    # ---- stage 2: 58 real + 6 padded clusters (sublane aligned) ----
    adj2n = normalize(adj2)
    s2, e2 = gcn_pair(x2, adj2n, c2w0_ref[...], c2bs0_ref[...],
                      c2w1_ref[...], c2bs1_ref[...], N2, HID)
    # zero the bias-fed padded cluster embeddings before pooling (adj2's
    # padded rows/cols are already zero, so x3/adj3 match the unpadded math).
    e2 = jnp.where(lax.broadcasted_iota(jnp.int32, e2.shape, 0) < N1, e2, 0.0)
    x3, adj3 = diff_pool(e2, adj2, s2)                                   # (12, 12), (12, 12)

    # ---- stage 3: 12-cluster graph ----
    adj3n = normalize(adj3)
    h3 = gcn_single(x3, adj3n, g3w0_ref[...], g3bs0_ref[...],
                    g3w1_ref[...], g3bs1_ref[...])                       # (12, 4)

    # ---- head: fc1(48->4) + PReLU + fc2(4->1), vectorized, no reshape ----
    # fc1wt[k] is fc1_w[:, k] folded row-major to (12, 4), so
    # fc1(flatten(h3))[k] == sum(fc1wt[k] * h3).
    head = head_ref[...]                                                 # (4, 4)
    r = jnp.sum(jnp.sum(fc1wt_ref[...] * h3[None, :, :], axis=2), axis=1,
                keepdims=True)                                           # (4, 1)
    v = r + head[:, 0:1]                                                 # + fc1 bias
    v = jnp.where(v >= 0.0, v, head[:, 1:2] * v)                         # PReLU fc1
    y = jnp.sum(v * head[:, 2:3], axis=0, keepdims=True) + head[0:1, 3:4]
    out_ref[...] = jnp.broadcast_to(y, out_ref.shape)                    # lane-dense store


# ---------------------------------------------------------------------------
# Parameter construction (deterministic, synthetic) and packing
# ---------------------------------------------------------------------------
def _gnn_params(key, f_in, f_hid, f_out):
    k0, k1 = jax.random.split(key)
    return {
        "w0": (0.1 * jax.random.normal(k0, (f_in, f_hid))).astype(jnp.float32),
        "b0": jnp.zeros((1, f_hid), jnp.float32),
        "a0": jnp.float32(0.25),                         # PReLU default slope
        "w1": (0.1 * jax.random.normal(k1, (f_hid, f_out))).astype(jnp.float32),
        "b1": jnp.zeros((1, f_out), jnp.float32),
        "a1": jnp.float32(0.25),
    }


def init_params(key, num_inp_cha):
    keys = jax.random.split(key, 7)
    return {
        "conv1_pool": _gnn_params(keys[0], num_inp_cha, HID, N1),
        "conv1_emb": _gnn_params(keys[1], num_inp_cha, HID, HID),
        "conv2_pool": _gnn_params(keys[2], HID, HID, N2),
        "conv2_emb": _gnn_params(keys[3], HID, HID, HID),
        "gnn3_emb": _gnn_params(keys[4], HID, 4, 4),
        "fc1_w": (0.1 * jax.random.normal(keys[5], (48, 4))).astype(jnp.float32),
        "fc1_b": jnp.zeros((4,), jnp.float32),
        "prelufc1_a": jnp.float32(0.25),
        "fc2_w": (0.1 * jax.random.normal(keys[6], (4, 1))).astype(jnp.float32),
        "fc2_b": jnp.zeros((1,), jnp.float32),
    }


def pack_params(params):
    """One-time host-side packing into the fused-kernel operand layout."""
    assert 4 * N2 == 48, "gnn3 output must flatten to exactly 48 features for fc1"

    def bias_slope(b_row, slope):
        return jnp.concatenate([b_row, jnp.full_like(b_row, slope)], axis=0)

    def pair_pack(pp, pe, c_pool_real, c_pool_pad, c_emb):
        w0 = jnp.concatenate([pp["w0"], pe["w0"]], axis=1)               # (f_in, 2*HID)
        b0 = jnp.concatenate([pp["b0"], pe["b0"]], axis=1)
        s0 = jnp.concatenate([jnp.full((1, HID), pp["a0"], jnp.float32),
                              jnp.full((1, HID), pe["a0"], jnp.float32)], axis=1)
        bs0 = jnp.concatenate([b0, s0], axis=0)                          # (2, 2*HID)

        w1 = jnp.zeros((2 * HID, PAD + c_emb), jnp.float32)              # block-diag, emb @ PAD
        w1 = w1.at[:HID, :c_pool_real].set(pp["w1"])
        w1 = w1.at[HID:, PAD:PAD + c_emb].set(pe["w1"])
        b1 = jnp.zeros((1, PAD + c_emb), jnp.float32)
        b1 = b1.at[:, :c_pool_real].set(pp["b1"])
        b1 = b1.at[:, c_pool_real:c_pool_pad].set(NEG)                   # mask padded clusters
        b1 = b1.at[:, PAD:PAD + c_emb].set(pe["b1"])
        s1 = jnp.full((1, PAD + c_emb), pp["a1"], jnp.float32)
        s1 = s1.at[:, PAD:PAD + c_emb].set(pe["a1"])
        bs1 = jnp.concatenate([b1, s1], axis=0)                          # (2, PAD + c_emb)
        return w0, bs0, w1, bs1

    c1w0, c1bs0, c1w1, c1bs1 = pair_pack(params["conv1_pool"], params["conv1_emb"],
                                         N1, N1P, HID)
    c2w0, c2bs0, c2w1, c2bs1 = pair_pack(params["conv2_pool"], params["conv2_emb"],
                                         N2, N2, HID)

    g3 = params["gnn3_emb"]
    g3bs0 = bias_slope(g3["b0"], g3["a0"])                               # (2, 4)
    g3bs1 = bias_slope(g3["b1"], g3["a1"])                               # (2, 4)

    # fc1_wt[k, r, c] == fc1_w[4*r + c, k]  (column k folded to the (12,4) grid)
    fc1_wt = params["fc1_w"].T.reshape(4, N2, 4).astype(jnp.float32)

    head = jnp.zeros((4, 4), jnp.float32)                                # fc head VMEM row
    head = head.at[:, 0].set(params["fc1_b"].reshape(-1))                # fc1 bias
    head = head.at[:, 1].set(params["prelufc1_a"])                       # fc1 PReLU slope
    head = head.at[:, 2].set(params["fc2_w"].reshape(-1))                # fc2 weight
    head = head.at[0, 3].set(params["fc2_b"].reshape(-1)[0])             # fc2 bias

    return dict(c1w0=c1w0, c1bs0=c1bs0, c1w1=c1w1, c1bs1=c1bs1,
                c2w0=c2w0, c2bs0=c2bs0, c2w1=c2w1, c2bs1=c2bs1,
                g3w0=g3["w0"], g3bs0=g3bs0, g3w1=g3["w1"], g3bs1=g3bs1,
                fc1_wt=fc1_wt, head=head)


# ---------------------------------------------------------------------------
# Forward pass: one pallas_call, grid over the batch of graphs
# ---------------------------------------------------------------------------
_WEIGHT_NAMES = ("c1w0", "c1bs0", "c1w1", "c1bs1",
                 "c2w0", "c2bs0", "c2w1", "c2bs1",
                 "g3w0", "g3bs0", "g3w1", "g3bs1",
                 "fc1_wt", "head")


def net_forward(x, adj, packed):
    # x : (B, N, F_in), adj : (B, N, N); returns (B, 1) (per graph == torch's (1,))
    B, N, f_in = x.shape
    weights = [packed[k] for k in _WEIGHT_NAMES]

    def resident(arr):                                   # constant index map -> VMEM resident
        nd = arr.ndim
        return pl.BlockSpec(arr.shape, lambda b, _nd=nd: (0,) * _nd)

    out = pl.pallas_call(
        _net_kernel,
        out_shape=jax.ShapeDtypeStruct((B, 1, 128), jnp.float32),
        grid=(B,),
        in_specs=[pl.BlockSpec((1, N, f_in), lambda b: (b, 0, 0)),
                  pl.BlockSpec((1, N, N), lambda b: (b, 0, 0))]
                 + [resident(w) for w in weights],
        out_specs=pl.BlockSpec((1, 1, 128), lambda b: (b, 0, 0)),
        compiler_params=pltpu.CompilerParams(dimension_semantics=("parallel",)),
    )(x, adj, *weights)
    return out[:, 0, :1]


if __name__ == "__main__":
    key = jax.random.PRNGKey(0)
    k_x, k_adj, k_p = jax.random.split(key, 3)

    B, N, F_IN = 4, 32, 4            # batch of graphs, 32 nodes, 4 node features
    x = jax.random.normal(k_x, (B, N, F_IN), dtype=jnp.float32)
    a_raw = jax.random.uniform(k_adj, (B, N, N), dtype=jnp.float32)
    adj = ((a_raw + jnp.swapaxes(a_raw, 1, 2)) > 1.2).astype(jnp.float32)
    adj = adj * (1.0 - jnp.eye(N, dtype=jnp.float32))    # no self loops in input

    params = init_params(k_p, F_IN)
    packed = pack_params(params)                         # one-time packing

    out = net_forward(x, adj, packed)
    out = jax.block_until_ready(out)
    assert out.shape == (B, 1) and out.dtype == jnp.float32
    assert bool(jnp.all(jnp.isfinite(out)))
    print("KERNEL_OK")
</pallas_src>

<mosaic_0001>
module attributes {stable_mosaic.version = 11 : i64} {
  func.func @_net_kernel(%arg0: i32, %arg1: memref<1x32x4xf32, #tpu.memory_space<vmem>>, %arg2: memref<1x32x32xf32, #tpu.memory_space<vmem>>, %arg3: memref<4x24xf32, #tpu.memory_space<vmem>>, %arg4: memref<2x24xf32, #tpu.memory_space<vmem>>, %arg5: memref<24x140xf32, #tpu.memory_space<vmem>>, %arg6: memref<2x140xf32, #tpu.memory_space<vmem>>, %arg7: memref<12x24xf32, #tpu.memory_space<vmem>>, %arg8: memref<2x24xf32, #tpu.memory_space<vmem>>, %arg9: memref<24x140xf32, #tpu.memory_space<vmem>>, %arg10: memref<2x140xf32, #tpu.memory_space<vmem>>, %arg11: memref<12x4xf32, #tpu.memory_space<vmem>>, %arg12: memref<2x4xf32, #tpu.memory_space<vmem>>, %arg13: memref<4x4xf32, #tpu.memory_space<vmem>>, %arg14: memref<2x4xf32, #tpu.memory_space<vmem>>, %arg15: memref<4x12x4xf32, #tpu.memory_space<vmem>>, %arg16: memref<4x4xf32, #tpu.memory_space<vmem>>, %arg17: memref<1x1x128xf32, #tpu.memory_space<vmem>>) attributes {dimension_semantics = [#tpu.dimension_semantics<parallel>], iteration_bounds = array<i64: 4>, scalar_prefetch = 0 : i64, scratch_operands = 0 : i64, tpu.core_type = #tpu.core_type<tc>, window_params = [{transform_indices = @transform_0, window_bounds = array<i64: 1, 32, 4>}, {transform_indices = @transform_1, window_bounds = array<i64: 1, 32, 32>}, {pipeline_mode = #tpu.pipeline_mode<synchronous>, transform_indices = @transform_2, window_bounds = array<i64: 4, 24>}, {pipeline_mode = #tpu.pipeline_mode<synchronous>, transform_indices = @transform_3, window_bounds = array<i64: 2, 24>}, {pipeline_mode = #tpu.pipeline_mode<synchronous>, transform_indices = @transform_4, window_bounds = array<i64: 24, 140>}, {pipeline_mode = #tpu.pipeline_mode<synchronous>, transform_indices = @transform_5, window_bounds = array<i64: 2, 140>}, {pipeline_mode = #tpu.pipeline_mode<synchronous>, transform_indices = @transform_6, window_bounds = array<i64: 12, 24>}, {pipeline_mode = #tpu.pipeline_mode<synchronous>, transform_indices = @transform_7, window_bounds = array<i64: 2, 24>}, {pipeline_mode = #tpu.pipeline_mode<synchronous>, transform_indices = @transform_8, window_bounds = array<i64: 24, 140>}, {pipeline_mode = #tpu.pipeline_mode<synchronous>, transform_indices = @transform_9, window_bounds = array<i64: 2, 140>}, {pipeline_mode = #tpu.pipeline_mode<synchronous>, transform_indices = @transform_10, window_bounds = array<i64: 12, 4>}, {pipeline_mode = #tpu.pipeline_mode<synchronous>, transform_indices = @transform_11, window_bounds = array<i64: 2, 4>}, {pipeline_mode = #tpu.pipeline_mode<synchronous>, transform_indices = @transform_12, window_bounds = array<i64: 4, 4>}, {pipeline_mode = #tpu.pipeline_mode<synchronous>, transform_indices = @transform_13, window_bounds = array<i64: 2, 4>}, {pipeline_mode = #tpu.pipeline_mode<synchronous>, transform_indices = @transform_14, window_bounds = array<i64: 4, 12, 4>}, {pipeline_mode = #tpu.pipeline_mode<synchronous>, transform_indices = @transform_15, window_bounds = array<i64: 4, 4>}, {transform_indices = @transform_16, window_bounds = array<i64: 1, 1, 128>}]} {
    %c0 = arith.constant 0 : index
    %c0_0 = arith.constant 0 : index
    %c0_1 = arith.constant 0 : index
    %0 = vector.load %arg1[%c0, %c0_0, %c0_1] : memref<1x32x4xf32, #tpu.memory_space<vmem>>, vector<1x32x4xf32>
    %1 = vector.shape_cast %0 : vector<1x32x4xf32> to vector<32x4xf32>
    %c0_2 = arith.constant 0 : index
    %c0_3 = arith.constant 0 : index
    %c0_4 = arith.constant 0 : index
    %2 = vector.load %arg2[%c0_2, %c0_3, %c0_4] : memref<1x32x32xf32, #tpu.memory_space<vmem>>, vector<1x32x32xf32>
    %3 = vector.shape_cast %2 : vector<1x32x32xf32> to vector<32x32xf32>
    %4 = tpu.iota {dimensions = array<i32: 0>} : vector<32x32xi32>
    %5 = tpu.iota {dimensions = array<i32: 1>} : vector<32x32xi32>
    %6 = arith.cmpi eq, %4, %5 : vector<32x32xi32>
    %cst = arith.constant 1.000000e+00 : f32
    %7 = vector.broadcast %cst : f32 to vector<32x32xf32>
    %8 = arith.select %6, %7, %3 : vector<32x32xi1>, vector<32x32xf32>
    %cst_5 = arith.constant dense<0.000000e+00> : vector<32xf32>
    %9 = vector.multi_reduction <add>, %8, %cst_5 [1] : vector<32x32xf32> to vector<32xf32>
    %10 = vector.shape_cast %9 : vector<32xf32> to vector<32x1xf32>
    %cst_6 = arith.constant 1.000000e+00 : f32
    %11 = vector.broadcast %cst_6 : f32 to vector<32x1xf32>
    %12 = arith.maximumf %10, %11 : vector<32x1xf32>
    %cst_7 = arith.constant dense<0.000000e+00> : vector<32xf32>
    %13 = vector.multi_reduction <add>, %8, %cst_7 [0] : vector<32x32xf32> to vector<32xf32>
    %14 = vector.shape_cast %13 : vector<32xf32> to vector<1x32xf32>
    %cst_8 = arith.constant 1.000000e+00 : f32
    %15 = vector.broadcast %cst_8 : f32 to vector<1x32xf32>
    %16 = arith.maximumf %14, %15 : vector<1x32xf32>
    %17 = math.rsqrt %12 : vector<32x1xf32>
    %18 = vector.broadcast %17 : vector<32x1xf32> to vector<32x32xf32>
    %19 = arith.mulf %18, %8 : vector<32x32xf32>
    %20 = math.rsqrt %16 : vector<1x32xf32>
    %21 = vector.broadcast %20 : vector<1x32xf32> to vector<32x32xf32>
    %22 = arith.mulf %19, %21 : vector<32x32xf32>
    %c0_9 = arith.constant 0 : index
    %c0_10 = arith.constant 0 : index
    %23 = vector.load %arg3[%c0_9, %c0_10] : memref<4x24xf32, #tpu.memory_space<vmem>>, vector<4x24xf32>
    %c0_11 = arith.constant 0 : index
    %c0_12 = arith.constant 0 : index
    %24 = vector.load %arg4[%c0_11, %c0_12] : memref<2x24xf32, #tpu.memory_space<vmem>>, vector<2x24xf32>
    %c0_13 = arith.constant 0 : index
    %c0_14 = arith.constant 0 : index
    %25 = vector.load %arg5[%c0_13, %c0_14] : memref<24x140xf32, #tpu.memory_space<vmem>>, vector<24x140xf32>
    %c0_15 = arith.constant 0 : index
    %c0_16 = arith.constant 0 : index
    %26 = vector.load %arg6[%c0_15, %c0_16] : memref<2x140xf32, #tpu.memory_space<vmem>>, vector<2x140xf32>
    %cst_17 = arith.constant dense<0.000000e+00> : vector<32x4xf32>
    %27 = tpu.matmul %22, %1, %cst_17 {dimension_numbers = #tpu.dot_dimension_numbers<[1], [0], [0], [1], [0, 0, 1, 1], [], []>} : vector<32x32xf32>, vector<32x4xf32>, vector<32x4xf32> -> vector<32x4xf32>
    %cst_18 = arith.constant dense<0.000000e+00> : vector<32x24xf32>
    %28 = tpu.matmul %27, %23, %cst_18 {dimension_numbers = #tpu.dot_dimension_numbers<[1], [0], [0], [1], [0, 0, 1, 1], [], []>} : vector<32x4xf32>, vector<4x24xf32>, vector<32x24xf32> -> vector<32x24xf32>
    %29 = vector.extract_strided_slice %24 {offsets = [0, 0], sizes = [1, 24], strides = [1, 1]} : vector<2x24xf32> to vector<1x24xf32>
    %30 = vector.broadcast %29 : vector<1x24xf32> to vector<32x24xf32>
    %31 = arith.addf %28, %30 : vector<32x24xf32>
    %cst_19 = arith.constant 0.000000e+00 : f32
    %32 = vector.broadcast %cst_19 : f32 to vector<32x24xf32>
    %33 = arith.cmpf oge, %31, %32 : vector<32x24xf32>
    %34 = vector.extract_strided_slice %24 {offsets = [1, 0], sizes = [1, 24], strides = [1, 1]} : vector<2x24xf32> to vector<1x24xf32>
    %35 = vector.broadcast %34 : vector<1x24xf32> to vector<32x24xf32>
    %36 = arith.mulf %35, %31 : vector<32x24xf32>
    %37 = arith.select %33, %31, %36 : vector<32x24xi1>, vector<32x24xf32>
    %cst_20 = arith.constant dense<0.000000e+00> : vector<32x24xf32>
    %38 = tpu.matmul %22, %37, %cst_20 {dimension_numbers = #tpu.dot_dimension_numbers<[1], [0], [0], [1], [0, 0, 1, 1], [], []>} : vector<32x32xf32>, vector<32x24xf32>, vector<32x24xf32> -> vector<32x24xf32>
    %cst_21 = arith.constant dense<0.000000e+00> : vector<32x140xf32>
    %39 = tpu.matmul %38, %25, %cst_21 {dimension_numbers = #tpu.dot_dimension_numbers<[1], [0], [0], [1], [0, 0, 1, 1], [], []>} : vector<32x24xf32>, vector<24x140xf32>, vector<32x140xf32> -> vector<32x140xf32>
    %40 = vector.extract_strided_slice %26 {offsets = [0, 0], sizes = [1, 140], strides = [1, 1]} : vector<2x140xf32> to vector<1x140xf32>
    %41 = vector.broadcast %40 : vector<1x140xf32> to vector<32x140xf32>
    %42 = arith.addf %39, %41 : vector<32x140xf32>
    %cst_22 = arith.constant 0.000000e+00 : f32
    %43 = vector.broadcast %cst_22 : f32 to vector<32x140xf32>
    %44 = arith.cmpf oge, %42, %43 : vector<32x140xf32>
    %45 = vector.extract_strided_slice %26 {offsets = [1, 0], sizes = [1, 140], strides = [1, 1]} : vector<2x140xf32> to vector<1x140xf32>
    %46 = vector.broadcast %45 : vector<1x140xf32> to vector<32x140xf32>
    %47 = arith.mulf %46, %42 : vector<32x140xf32>
    %48 = arith.select %44, %42, %47 : vector<32x140xi1>, vector<32x140xf32>
    %49 = vector.extract_strided_slice %48 {offsets = [0, 0], sizes = [32, 64], strides = [1, 1]} : vector<32x140xf32> to vector<32x64xf32>
    %50 = vector.extract_strided_slice %48 {offsets = [0, 128], sizes = [32, 12], strides = [1, 1]} : vector<32x140xf32> to vector<32x12xf32>
    %cst_23 = arith.constant dense<0xFF800000> : vector<32xf32>
    %51 = vector.multi_reduction <maximumf>, %49, %cst_23 [1] : vector<32x64xf32> to vector<32xf32>
    %52 = vector.shape_cast %51 : vector<32xf32> to vector<32x1xf32>
    %53 = vector.broadcast %52 : vector<32x1xf32> to vector<32x64xf32>
    %54 = arith.subf %49, %53 : vector<32x64xf32>
    %55 = math.exp %54 : vector<32x64xf32>
    %cst_24 = arith.constant dense<0.000000e+00> : vector<32xf32>
    %56 = vector.multi_reduction <add>, %55, %cst_24 [1] : vector<32x64xf32> to vector<32xf32>
    %57 = vector.shape_cast %56 : vector<32xf32> to vector<32x1xf32>
    %58 = tpu.reciprocal %57 {approx = true} : vector<32x1xf32> -> vector<32x1xf32>
    %59 = vector.broadcast %58 : vector<32x1xf32> to vector<32x64xf32>
    %60 = arith.mulf %55, %59 : vector<32x64xf32>
    %cst_25 = arith.constant dense<0.000000e+00> : vector<64x12xf32>
    %61 = tpu.matmul %60, %50, %cst_25 {dimension_numbers = #tpu.dot_dimension_numbers<[0], [0], [1], [1], [0, 1, 1, 1], [], []>} : vector<32x64xf32>, vector<32x12xf32>, vector<64x12xf32> -> vector<64x12xf32>
    %cst_26 = arith.constant dense<0.000000e+00> : vector<64x32xf32>
    %62 = tpu.matmul %60, %3, %cst_26 {dimension_numbers = #tpu.dot_dimension_numbers<[0], [0], [1], [1], [0, 1, 1, 1], [], []>} : vector<32x64xf32>, vector<32x32xf32>, vector<64x32xf32> -> vector<64x32xf32>
    %cst_27 = arith.constant dense<0.000000e+00> : vector<64x64xf32>
    %63 = tpu.matmul %62, %60, %cst_27 {dimension_numbers = #tpu.dot_dimension_numbers<[1], [0], [0], [1], [0, 0, 1, 1], [], []>} : vector<64x32xf32>, vector<32x64xf32>, vector<64x64xf32> -> vector<64x64xf32>
    %64 = tpu.iota {dimensions = array<i32: 0>} : vector<64x64xi32>
    %65 = tpu.iota {dimensions = array<i32: 1>} : vector<64x64xi32>
    %66 = arith.cmpi eq, %64, %65 : vector<64x64xi32>
    %cst_28 = arith.constant 1.000000e+00 : f32
    %67 = vector.broadcast %cst_28 : f32 to vector<64x64xf32>
    %68 = arith.select %66, %67, %63 : vector<64x64xi1>, vector<64x64xf32>
    %cst_29 = arith.constant dense<0.000000e+00> : vector<64xf32>
    %69 = vector.multi_reduction <add>, %68, %cst_29 [1] : vector<64x64xf32> to vector<64xf32>
    %70 = vector.shape_cast %69 : vector<64xf32> to vector<64x1xf32>
    %cst_30 = arith.constant 1.000000e+00 : f32
    %71 = vector.broadcast %cst_30 : f32 to vector<64x1xf32>
    %72 = arith.maximumf %70, %71 : vector<64x1xf32>
    %cst_31 = arith.constant dense<0.000000e+00> : vector<64xf32>
    %73 = vector.multi_reduction <add>, %68, %cst_31 [0] : vector<64x64xf32> to vector<64xf32>
    %74 = vector.shape_cast %73 : vector<64xf32> to vector<1x64xf32>
    %cst_32 = arith.constant 1.000000e+00 : f32
    %75 = vector.broadcast %cst_32 : f32 to vector<1x64xf32>
    %76 = arith.maximumf %74, %75 : vector<1x64xf32>
    %77 = math.rsqrt %72 : vector<64x1xf32>
    %78 = vector.broadcast %77 : vector<64x1xf32> to vector<64x64xf32>
    %79 = arith.mulf %78, %68 : vector<64x64xf32>
    %80 = math.rsqrt %76 : vector<1x64xf32>
    %81 = vector.broadcast %80 : vector<1x64xf32> to vector<64x64xf32>
    %82 = arith.mulf %79, %81 : vector<64x64xf32>
    %c0_33 = arith.constant 0 : index
    %c0_34 = arith.constant 0 : index
    %83 = vector.load %arg7[%c0_33, %c0_34] : memref<12x24xf32, #tpu.memory_space<vmem>>, vector<12x24xf32>
    %c0_35 = arith.constant 0 : index
    %c0_36 = arith.constant 0 : index
    %84 = vector.load %arg8[%c0_35, %c0_36] : memref<2x24xf32, #tpu.memory_space<vmem>>, vector<2x24xf32>
    %c0_37 = arith.constant 0 : index
    %c0_38 = arith.constant 0 : index
    %85 = vector.load %arg9[%c0_37, %c0_38] : memref<24x140xf32, #tpu.memory_space<vmem>>, vector<24x140xf32>
    %c0_39 = arith.constant 0 : index
    %c0_40 = arith.constant 0 : index
    %86 = vector.load %arg10[%c0_39, %c0_40] : memref<2x140xf32, #tpu.memory_space<vmem>>, vector<2x140xf32>
    %cst_41 = arith.constant dense<0.000000e+00> : vector<64x12xf32>
    %87 = tpu.matmul %82, %61, %cst_41 {dimension_numbers = #tpu.dot_dimension_numbers<[1], [0], [0], [1], [0, 0, 1, 1], [], []>} : vector<64x64xf32>, vector<64x12xf32>, vector<64x12xf32> -> vector<64x12xf32>
    %cst_42 = arith.constant dense<0.000000e+00> : vector<64x24xf32>
    %88 = tpu.matmul %87, %83, %cst_42 {dimension_numbers = #tpu.dot_dimension_numbers<[1], [0], [0], [1], [0, 0, 1, 1], [], []>} : vector<64x12xf32>, vector<12x24xf32>, vector<64x24xf32> -> vector<64x24xf32>
    %89 = vector.extract_strided_slice %84 {offsets = [0, 0], sizes = [1, 24], strides = [1, 1]} : vector<2x24xf32> to vector<1x24xf32>
    %90 = vector.broadcast %89 : vector<1x24xf32> to vector<64x24xf32>
    %91 = arith.addf %88, %90 : vector<64x24xf32>
    %cst_43 = arith.constant 0.000000e+00 : f32
    %92 = vector.broadcast %cst_43 : f32 to vector<64x24xf32>
    %93 = arith.cmpf oge, %91, %92 : vector<64x24xf32>
    %94 = vector.extract_strided_slice %84 {offsets = [1, 0], sizes = [1, 24], strides = [1, 1]} : vector<2x24xf32> to vector<1x24xf32>
    %95 = vector.broadcast %94 : vector<1x24xf32> to vector<64x24xf32>
    %96 = arith.mulf %95, %91 : vector<64x24xf32>
    %97 = arith.select %93, %91, %96 : vector<64x24xi1>, vector<64x24xf32>
    %cst_44 = arith.constant dense<0.000000e+00> : vector<64x24xf32>
    %98 = tpu.matmul %82, %97, %cst_44 {dimension_numbers = #tpu.dot_dimension_numbers<[1], [0], [0], [1], [0, 0, 1, 1], [], []>} : vector<64x64xf32>, vector<64x24xf32>, vector<64x24xf32> -> vector<64x24xf32>
    %cst_45 = arith.constant dense<0.000000e+00> : vector<64x140xf32>
    %99 = tpu.matmul %98, %85, %cst_45 {dimension_numbers = #tpu.dot_dimension_numbers<[1], [0], [0], [1], [0, 0, 1, 1], [], []>} : vector<64x24xf32>, vector<24x140xf32>, vector<64x140xf32> -> vector<64x140xf32>
    %100 = vector.extract_strided_slice %86 {offsets = [0, 0], sizes = [1, 140], strides = [1, 1]} : vector<2x140xf32> to vector<1x140xf32>
    %101 = vector.broadcast %100 : vector<1x140xf32> to vector<64x140xf32>
    %102 = arith.addf %99, %101 : vector<64x140xf32>
    %cst_46 = arith.constant 0.000000e+00 : f32
    %103 = vector.broadcast %cst_46 : f32 to vector<64x140xf32>
    %104 = arith.cmpf oge, %102, %103 : vector<64x140xf32>
    %105 = vector.extract_strided_slice %86 {offsets = [1, 0], sizes = [1, 140], strides = [1, 1]} : vector<2x140xf32> to vector<1x140xf32>
    %106 = vector.broadcast %105 : vector<1x140xf32> to vector<64x140xf32>
    %107 = arith.mulf %106, %102 : vector<64x140xf32>
    %108 = arith.select %104, %102, %107 : vector<64x140xi1>, vector<64x140xf32>
    %109 = vector.extract_strided_slice %108 {offsets = [0, 0], sizes = [64, 12], strides = [1, 1]} : vector<64x140xf32> to vector<64x12xf32>
    %110 = vector.extract_strided_slice %108 {offsets = [0, 128], sizes = [64, 12], strides = [1, 1]} : vector<64x140xf32> to vector<64x12xf32>
    %111 = tpu.iota {dimensions = array<i32: 0>} : vector<64x12xi32>
    %c58_i32 = arith.constant 58 : i32
    %112 = vector.broadcast %c58_i32 : i32 to vector<64x12xi32>
    %113 = arith.cmpi slt, %111, %112 : vector<64x12xi32>
    %cst_47 = arith.constant 0.000000e+00 : f32
    %114 = vector.broadcast %cst_47 : f32 to vector<64x12xf32>
    %115 = arith.select %113, %110, %114 : vector<64x12xi1>, vector<64x12xf32>
    %cst_48 = arith.constant dense<0xFF800000> : vector<64xf32>
    %116 = vector.multi_reduction <maximumf>, %109, %cst_48 [1] : vector<64x12xf32> to vector<64xf32>
    %117 = vector.shape_cast %116 : vector<64xf32> to vector<64x1xf32>
    %118 = vector.broadcast %117 : vector<64x1xf32> to vector<64x12xf32>
    %119 = arith.subf %109, %118 : vector<64x12xf32>
    %120 = math.exp %119 : vector<64x12xf32>
    %cst_49 = arith.constant dense<0.000000e+00> : vector<64xf32>
    %121 = vector.multi_reduction <add>, %120, %cst_49 [1] : vector<64x12xf32> to vector<64xf32>
    %122 = vector.shape_cast %121 : vector<64xf32> to vector<64x1xf32>
    %123 = tpu.reciprocal %122 {approx = true} : vector<64x1xf32> -> vector<64x1xf32>
    %124 = vector.broadcast %123 : vector<64x1xf32> to vector<64x12xf32>
    %125 = arith.mulf %120, %124 : vector<64x12xf32>
    %cst_50 = arith.constant dense<0.000000e+00> : vector<12x12xf32>
    %126 = tpu.matmul %125, %115, %cst_50 {dimension_numbers = #tpu.dot_dimension_numbers<[0], [0], [1], [1], [0, 1, 1, 1], [], []>} : vector<64x12xf32>, vector<64x12xf32>, vector<12x12xf32> -> vector<12x12xf32>
    %cst_51 = arith.constant dense<0.000000e+00> : vector<12x64xf32>
    %127 = tpu.matmul %125, %63, %cst_51 {dimension_numbers = #tpu.dot_dimension_numbers<[0], [0], [1], [1], [0, 1, 1, 1], [], []>} : vector<64x12xf32>, vector<64x64xf32>, vector<12x64xf32> -> vector<12x64xf32>
    %cst_52 = arith.constant dense<0.000000e+00> : vector<12x12xf32>
    %128 = tpu.matmul %127, %125, %cst_52 {dimension_numbers = #tpu.dot_dimension_numbers<[1], [0], [0], [1], [0, 0, 1, 1], [], []>} : vector<12x64xf32>, vector<64x12xf32>, vector<12x12xf32> -> vector<12x12xf32>
    %129 = tpu.iota {dimensions = array<i32: 0>} : vector<12x12xi32>
    %130 = tpu.iota {dimensions = array<i32: 1>} : vector<12x12xi32>
    %131 = arith.cmpi eq, %129, %130 : vector<12x12xi32>
    %cst_53 = arith.constant 1.000000e+00 : f32
    %132 = vector.broadcast %cst_53 : f32 to vector<12x12xf32>
    %133 = arith.select %131, %132, %128 : vector<12x12xi1>, vector<12x12xf32>
    %cst_54 = arith.constant dense<0.000000e+00> : vector<12xf32>
    %134 = vector.multi_reduction <add>, %133, %cst_54 [1] : vector<12x12xf32> to vector<12xf32>
    %135 = vector.shape_cast %134 : vector<12xf32> to vector<12x1xf32>
    %cst_55 = arith.constant 1.000000e+00 : f32
    %136 = vector.broadcast %cst_55 : f32 to vector<12x1xf32>
    %137 = arith.maximumf %135, %136 : vector<12x1xf32>
    %cst_56 = arith.constant dense<0.000000e+00> : vector<12xf32>
    %138 = vector.multi_reduction <add>, %133, %cst_56 [0] : vector<12x12xf32> to vector<12xf32>
    %139 = vector.shape_cast %138 : vector<12xf32> to vector<1x12xf32>
    %cst_57 = arith.constant 1.000000e+00 : f32
    %140 = vector.broadcast %cst_57 : f32 to vector<1x12xf32>
    %141 = arith.maximumf %139, %140 : vector<1x12xf32>
    %142 = math.rsqrt %137 : vector<12x1xf32>
    %143 = vector.broadcast %142 : vector<12x1xf32> to vector<12x12xf32>
    %144 = arith.mulf %143, %133 : vector<12x12xf32>
    %145 = math.rsqrt %141 : vector<1x12xf32>
    %146 = vector.broadcast %145 : vector<1x12xf32> to vector<12x12xf32>
    %147 = arith.mulf %144, %146 : vector<12x12xf32>
    %c0_58 = arith.constant 0 : index
    %c0_59 = arith.constant 0 : index
    %148 = vector.load %arg11[%c0_58, %c0_59] : memref<12x4xf32, #tpu.memory_space<vmem>>, vector<12x4xf32>
    %c0_60 = arith.constant 0 : index
    %c0_61 = arith.constant 0 : index
    %149 = vector.load %arg12[%c0_60, %c0_61] : memref<2x4xf32, #tpu.memory_space<vmem>>, vector<2x4xf32>
    %c0_62 = arith.constant 0 : index
    %c0_63 = arith.constant 0 : index
    %150 = vector.load %arg13[%c0_62, %c0_63] : memref<4x4xf32, #tpu.memory_space<vmem>>, vector<4x4xf32>
    %c0_64 = arith.constant 0 : index
    %c0_65 = arith.constant 0 : index
    %151 = vector.load %arg14[%c0_64, %c0_65] : memref<2x4xf32, #tpu.memory_space<vmem>>, vector<2x4xf32>
    %cst_66 = arith.constant dense<0.000000e+00> : vector<12x12xf32>
    %152 = tpu.matmul %147, %126, %cst_66 {dimension_numbers = #tpu.dot_dimension_numbers<[1], [0], [0], [1], [0, 0, 1, 1], [], []>} : vector<12x12xf32>, vector<12x12xf32>, vector<12x12xf32> -> vector<12x12xf32>
    %cst_67 = arith.constant dense<0.000000e+00> : vector<12x4xf32>
    %153 = tpu.matmul %152, %148, %cst_67 {dimension_numbers = #tpu.dot_dimension_numbers<[1], [0], [0], [1], [0, 0, 1, 1], [], []>} : vector<12x12xf32>, vector<12x4xf32>, vector<12x4xf32> -> vector<12x4xf32>
    %154 = vector.extract_strided_slice %149 {offsets = [0, 0], sizes = [1, 4], strides = [1, 1]} : vector<2x4xf32> to vector<1x4xf32>
    %155 = vector.broadcast %154 : vector<1x4xf32> to vector<12x4xf32>
    %156 = arith.addf %153, %155 : vector<12x4xf32>
    %cst_68 = arith.constant 0.000000e+00 : f32
    %157 = vector.broadcast %cst_68 : f32 to vector<12x4xf32>
    %158 = arith.cmpf oge, %156, %157 : vector<12x4xf32>
    %159 = vector.extract_strided_slice %149 {offsets = [1, 0], sizes = [1, 4], strides = [1, 1]} : vector<2x4xf32> to vector<1x4xf32>
    %160 = vector.broadcast %159 : vector<1x4xf32> to vector<12x4xf32>
    %161 = arith.mulf %160, %156 : vector<12x4xf32>
    %162 = arith.select %158, %156, %161 : vector<12x4xi1>, vector<12x4xf32>
    %cst_69 = arith.constant dense<0.000000e+00> : vector<12x4xf32>
    %163 = tpu.matmul %147, %162, %cst_69 {dimension_numbers = #tpu.dot_dimension_numbers<[1], [0], [0], [1], [0, 0, 1, 1], [], []>} : vector<12x12xf32>, vector<12x4xf32>, vector<12x4xf32> -> vector<12x4xf32>
    %cst_70 = arith.constant dense<0.000000e+00> : vector<12x4xf32>
    %164 = tpu.matmul %163, %150, %cst_70 {dimension_numbers = #tpu.dot_dimension_numbers<[1], [0], [0], [1], [0, 0, 1, 1], [], []>} : vector<12x4xf32>, vector<4x4xf32>, vector<12x4xf32> -> vector<12x4xf32>
    %165 = vector.extract_strided_slice %151 {offsets = [0, 0], sizes = [1, 4], strides = [1, 1]} : vector<2x4xf32> to vector<1x4xf32>
    %166 = vector.broadcast %165 : vector<1x4xf32> to vector<12x4xf32>
    %167 = arith.addf %164, %166 : vector<12x4xf32>
    %cst_71 = arith.constant 0.000000e+00 : f32
    %168 = vector.broadcast %cst_71 : f32 to vector<12x4xf32>
    %169 = arith.cmpf oge, %167, %168 : vector<12x4xf32>
    %170 = vector.extract_strided_slice %151 {offsets = [1, 0], sizes = [1, 4], strides = [1, 1]} : vector<2x4xf32> to vector<1x4xf32>
    %171 = vector.broadcast %170 : vector<1x4xf32> to vector<12x4xf32>
    %172 = arith.mulf %171, %167 : vector<12x4xf32>
    %173 = arith.select %169, %167, %172 : vector<12x4xi1>, vector<12x4xf32>
    %c0_72 = arith.constant 0 : index
    %c0_73 = arith.constant 0 : index
    %174 = vector.load %arg16[%c0_72, %c0_73] : memref<4x4xf32, #tpu.memory_space<vmem>>, vector<4x4xf32>
    %c0_74 = arith.constant 0 : index
    %c0_75 = arith.constant 0 : index
    %c0_76 = arith.constant 0 : index
    %175 = vector.load %arg15[%c0_74, %c0_75, %c0_76] : memref<4x12x4xf32, #tpu.memory_space<vmem>>, vector<4x12x4xf32>
    %176 = vector.shape_cast %173 : vector<12x4xf32> to vector<1x12x4xf32>
    %177 = vector.broadcast %176 : vector<1x12x4xf32> to vector<4x12x4xf32>
    %178 = arith.mulf %175, %177 : vector<4x12x4xf32>
    %cst_77 = arith.constant dense<0.000000e+00> : vector<4x12xf32>
    %179 = vector.multi_reduction <add>, %178, %cst_77 [2] : vector<4x12x4xf32> to vector<4x12xf32>
    %cst_78 = arith.constant dense<0.000000e+00> : vector<4xf32>
    %180 = vector.multi_reduction <add>, %179, %cst_78 [1] : vector<4x12xf32> to vector<4xf32>
    %181 = vector.shape_cast %180 : vector<4xf32> to vector<4x1xf32>
    %182 = vector.extract_strided_slice %174 {offsets = [0, 0], sizes = [4, 1], strides = [1, 1]} : vector<4x4xf32> to vector<4x1xf32>
    %183 = arith.addf %181, %182 : vector<4x1xf32>
    %cst_79 = arith.constant 0.000000e+00 : f32
    %184 = vector.broadcast %cst_79 : f32 to vector<4x1xf32>
    %185 = arith.cmpf oge, %183, %184 : vector<4x1xf32>
    %186 = vector.extract_strided_slice %174 {offsets = [0, 1], sizes = [4, 1], strides = [1, 1]} : vector<4x4xf32> to vector<4x1xf32>
    %187 = arith.mulf %186, %183 : vector<4x1xf32>
    %188 = arith.select %185, %183, %187 : vector<4x1xi1>, vector<4x1xf32>
    %189 = vector.extract_strided_slice %174 {offsets = [0, 2], sizes = [4, 1], strides = [1, 1]} : vector<4x4xf32> to vector<4x1xf32>
    %190 = arith.mulf %188, %189 : vector<4x1xf32>
    %cst_80 = arith.constant dense<0.000000e+00> : vector<1xf32>
    %191 = vector.multi_reduction <add>, %190, %cst_80 [0] : vector<4x1xf32> to vector<1xf32>
    %192 = vector.shape_cast %191 : vector<1xf32> to vector<1x1xf32>
    %193 = vector.extract_strided_slice %174 {offsets = [0, 3], sizes = [1, 1], strides = [1, 1]} : vector<4x4xf32> to vector<1x1xf32>
    %194 = arith.addf %192, %193 : vector<1x1xf32>
    %195 = vector.shape_cast %194 : vector<1x1xf32> to vector<1x1x1xf32>
    %196 = vector.broadcast %195 : vector<1x1x1xf32> to vector<1x1x128xf32>
    %c0_81 = arith.constant 0 : index
    %c0_82 = arith.constant 0 : index
    %c0_83 = arith.constant 0 : index
    %197 = vector.load %arg17[%c0_81, %c0_82, %c0_83] : memref<1x1x128xf32, #tpu.memory_space<vmem>>, vector<1x1x128xf32>
    tpu.vector_store %arg17[%c0_81, %c0_82, %c0_83], %196 {strides = array<i32>} : memref<1x1x128xf32, #tpu.memory_space<vmem>>, vector<1x1x128xf32>,
    return
  }
  func.func @transform_0(%arg0: i32) -> (i32, i32, i32) {
    %c0_i32 = arith.constant 0 : i32
    %c0_i32_0 = arith.constant 0 : i32
    %c0_i32_1 = arith.constant 0 : i32
    return %arg0, %c0_i32, %c0_i32_0 : i32, i32, i32
  }
  func.func @transform_1(%arg0: i32) -> (i32, i32, i32) {
    %c0_i32 = arith.constant 0 : i32
    %c0_i32_0 = arith.constant 0 : i32
    %c0_i32_1 = arith.constant 0 : i32
    return %arg0, %c0_i32, %c0_i32_0 : i32, i32, i32
  }
  func.func @transform_2(%arg0: i32) -> (i32, i32) {
    %c0_i32 = arith.constant 0 : i32
    %c0_i32_0 = arith.constant 0 : i32
    %c0_i32_1 = arith.constant 0 : i32
    return %c0_i32, %c0_i32_0 : i32, i32
  }
  func.func @transform_3(%arg0: i32) -> (i32, i32) {
    %c0_i32 = arith.constant 0 : i32
    %c0_i32_0 = arith.constant 0 : i32
    %c0_i32_1 = arith.constant 0 : i32
    return %c0_i32, %c0_i32_0 : i32, i32
  }
  func.func @transform_4(%arg0: i32) -> (i32, i32) {
    %c0_i32 = arith.constant 0 : i32
    %c0_i32_0 = arith.constant 0 : i32
    %c0_i32_1 = arith.constant 0 : i32
    return %c0_i32, %c0_i32_0 : i32, i32
  }
  func.func @transform_5(%arg0: i32) -> (i32, i32) {
    %c0_i32 = arith.constant 0 : i32
    %c0_i32_0 = arith.constant 0 : i32
    %c0_i32_1 = arith.constant 0 : i32
    return %c0_i32, %c0_i32_0 : i32, i32
  }
  func.func @transform_6(%arg0: i32) -> (i32, i32) {
    %c0_i32 = arith.constant 0 : i32
    %c0_i32_0 = arith.constant 0 : i32
    %c0_i32_1 = arith.constant 0 : i32
    return %c0_i32, %c0_i32_0 : i32, i32
  }
  func.func @transform_7(%arg0: i32) -> (i32, i32) {
    %c0_i32 = arith.constant 0 : i32
    %c0_i32_0 = arith.constant 0 : i32
    %c0_i32_1 = arith.constant 0 : i32
    return %c0_i32, %c0_i32_0 : i32, i32
  }
  func.func @transform_8(%arg0: i32) -> (i32, i32) {
    %c0_i32 = arith.constant 0 : i32
    %c0_i32_0 = arith.constant 0 : i32
    %c0_i32_1 = arith.constant 0 : i32
    return %c0_i32, %c0_i32_0 : i32, i32
  }
  func.func @transform_9(%arg0: i32) -> (i32, i32) {
    %c0_i32 = arith.constant 0 : i32
    %c0_i32_0 = arith.constant 0 : i32
    %c0_i32_1 = arith.constant 0 : i32
    return %c0_i32, %c0_i32_0 : i32, i32
  }
  func.func @transform_10(%arg0: i32) -> (i32, i32) {
    %c0_i32 = arith.constant 0 : i32
    %c0_i32_0 = arith.constant 0 : i32
    %c0_i32_1 = arith.constant 0 : i32
    return %c0_i32, %c0_i32_0 : i32, i32
  }
  func.func @transform_11(%arg0: i32) -> (i32, i32) {
    %c0_i32 = arith.constant 0 : i32
    %c0_i32_0 = arith.constant 0 : i32
    %c0_i32_1 = arith.constant 0 : i32
    return %c0_i32, %c0_i32_0 : i32, i32
  }
  func.func @transform_12(%arg0: i32) -> (i32, i32) {
    %c0_i32 = arith.constant 0 : i32
    %c0_i32_0 = arith.constant 0 : i32
    %c0_i32_1 = arith.constant 0 : i32
    return %c0_i32, %c0_i32_0 : i32, i32
  }
  func.func @transform_13(%arg0: i32) -> (i32, i32) {
    %c0_i32 = arith.constant 0 : i32
    %c0_i32_0 = arith.constant 0 : i32
    %c0_i32_1 = arith.constant 0 : i32
    return %c0_i32, %c0_i32_0 : i32, i32
  }
  func.func @transform_14(%arg0: i32) -> (i32, i32, i32) {
    %c0_i32 = arith.constant 0 : i32
    %c0_i32_0 = arith.constant 0 : i32
    %c0_i32_1 = arith.constant 0 : i32
    %c0_i32_2 = arith.constant 0 : i32
    return %c0_i32, %c0_i32_0, %c0_i32_1 : i32, i32, i32
  }
  func.func @transform_15(%arg0: i32) -> (i32, i32) {
    %c0_i32 = arith.constant 0 : i32
    %c0_i32_0 = arith.constant 0 : i32
    %c0_i32_1 = arith.constant 0 : i32
    return %c0_i32, %c0_i32_0 : i32, i32
  }
  func.func @transform_16(%arg0: i32) -> (i32, i32, i32) {
    %c0_i32 = arith.constant 0 : i32
    %c0_i32_0 = arith.constant 0 : i32
    %c0_i32_1 = arith.constant 0 : i32
    return %arg0, %c0_i32, %c0_i32_0 : i32, i32, i32
  }
}

</mosaic_0001>

<llo_original>
// kernel: tpu_custom_call.1
$region0: #{tpu_custom_call.1}
  #allocation0 [shape = 'u32[]', space=smem, size = 0x4, offset = 0x4, fixed_abs, tag = 'smem constant byte address 0x4 - core index']
  #allocation1 [shape = 'u32[144,128]{1,0:T(1,128)}', space=vmem, size = 0x12000, scoped, tag = 'internal scratch']
  %s0 = inlined_call_operand.vmem [shape: f32[4,32,4], index: 0, kind: input, shape index: {}]
  %s1 = inlined_call_operand.vmem [shape: f32[4,32,32], index: 1, kind: input, shape index: {}]
  %s2 = inlined_call_operand.hbm [shape: f32[4,24], index: 2, kind: input, shape index: {}]
  %s3 = inlined_call_operand.vmem [shape: f32[2,24], index: 3, kind: input, shape index: {}]
  %s4 = inlined_call_operand.vmem [shape: f32[24,140], index: 4, kind: input, shape index: {}]
  %s5 = inlined_call_operand.vmem [shape: f32[2,140], index: 5, kind: input, shape index: {}]
  %s6 = inlined_call_operand.vmem [shape: f32[12,24], index: 6, kind: input, shape index: {}]
  %s7 = inlined_call_operand.hbm [shape: f32[2,24], index: 7, kind: input, shape index: {}]
  %s8 = inlined_call_operand.vmem [shape: f32[24,140], index: 8, kind: input, shape index: {}]
  %s9 = inlined_call_operand.vmem [shape: f32[2,140], index: 9, kind: input, shape index: {}]
  %s10 = inlined_call_operand.vmem [shape: f32[12,4], index: 10, kind: input, shape index: {}]
  %s11 = inlined_call_operand.vmem [shape: f32[2,4], index: 11, kind: input, shape index: {}]
  %s12 = inlined_call_operand.vmem [shape: f32[4,4], index: 12, kind: input, shape index: {}]
  %s13 = inlined_call_operand.vmem [shape: f32[2,4], index: 13, kind: input, shape index: {}]
  %s14 = inlined_call_operand.vmem [shape: f32[4,12,4], index: 14, kind: input, shape index: {}]
  %s15 = inlined_call_operand.vmem [shape: f32[4,4], index: 15, kind: input, shape index: {}]
  %s16 = inlined_call_operand.hbm [shape: f32[4,1,128], index: 16, kind: output, shape index: {}]
  %s17 = sld [smem:[#allocation0]]
  $region105: #{tpu_custom_call.1} parent=0
    _
  %s19 = ssub.s32 1, %s17
  %s20 = scalar_select 0, %s19, %s17
  $region1: #{tpu_custom_call.1} parent=0
    #allocation2 [shape = 'u8[2048]{0}', space=vmem, size = 0x800, scoped, tag = 'input window, operand 2, single buffered']
    #allocation3 [shape = 's32[2]{0}', space=sflag, size = 0x8, scoped, tag = 'scoped memory for tpu_custom_call.1']
    #allocation4 [shape = 's32[2]{0}', space=sflag, size = 0x8, scoped, tag = 'scoped memory for tpu_custom_call.1']
    #allocation5 [shape = 'u8[1024]{0}', space=vmem, size = 0x400, scoped, tag = 'input window, operand 7, single buffered']
    #allocation6 [shape = 's32[1]{0}', space=sflag, size = 0x4, scoped, tag = 'scoped memory for tpu_custom_call.1']
    #allocation7 [shape = 'u8[1024]{0}', space=vmem, size = 0x400, scoped, tag = 'output window, operand 0']
    %21 = vsyncpa [#allocation3], 0
    %22 = vsyncpa [#allocation6], 0
    %23 = vsyncpa [#allocation4], 0
    %s24 = scalar_lea.sflag [#allocation4], 1
    %25 = vsyncpa %s24, 0
    loop: start=0, step=1, limit=6
    $region2: #{tpu_custom_call.1} parent=1 // loop_pre_header
      _
    $region3: #{tpu_custom_call.1} parent=1 // loop_header
      %s27 = sphi 0, %s31
      %p28 = scmp.ge.s32.totalorder %s27, 6
      %s37 = sphi 0, %s39
      %s40 = sphi 0, %s37
      %s41 = sphi 0, %s40
      %s57 = sphi 0, %s41
      %s63 = sphi 0, %s65
      %s66 = sphi 0, %s63
      %s67 = sphi 0, %s66
      %s83 = sphi 0, %s67
      %s87 = sphi 0, %s87
      %s89 = sphi 0, %s87
      %s90 = sphi 0, %s89
      %s104 = sphi 0, %s90
      %s108 = sphi 0, %s108
      %s110 = sphi 0, %s108
      %s111 = sphi 0, %s110
      %s125 = sphi 0, %s111
      %s129 = sphi 0, %s129
      %s131 = sphi 0, %s129
      %s132 = sphi 0, %s131
      %s146 = sphi 0, %s132
      %s150 = sphi 0, %s150
      %s152 = sphi 0, %s150
      %s153 = sphi 0, %s152
      %s167 = sphi 0, %s153
      %s171 = sphi 0, %s171
      %s173 = sphi 0, %s171
      %s174 = sphi 0, %s173
      %s188 = sphi 0, %s174
      %s192 = sphi 0, %s192
      %s194 = sphi 0, %s192
      %s195 = sphi 0, %s194
      %s209 = sphi 0, %s195
      %s213 = sphi 0, %s213
      %s215 = sphi 0, %s213
      %s216 = sphi 0, %s215
      %s230 = sphi 0, %s216
      %s234 = sphi 0, %s234
      %s236 = sphi 0, %s234
      %s237 = sphi 0, %s236
      %s251 = sphi 0, %s237
      %s255 = sphi 0, %s255
      %s257 = sphi 0, %s255
      %s258 = sphi 0, %s257
      %s272 = sphi 0, %s258
      %s276 = sphi 0, %s276
      %s278 = sphi 0, %s276
      %s279 = sphi 0, %s278
      %s293 = sphi 0, %s279
      %s297 = sphi 0, %s297
      %s299 = sphi 0, %s297
      %s300 = sphi 0, %s299
      %s314 = sphi 0, %s300
      %s318 = sphi 0, %s318
      %s320 = sphi 0, %s318
      %s321 = sphi 0, %s320
      %s335 = sphi 0, %s321
      %s339 = sphi 0, %s339
      %s341 = sphi 0, %s339
      %s342 = sphi 0, %s341
      %s356 = sphi 0, %s342
      %s360 = sphi 0, %s360
      %s362 = sphi 0, %s360
      %s363 = sphi 0, %s362
      %s377 = sphi 0, %s363
      %s383 = sphi 0, %s385
      %s386 = sphi 0, %s383
      %s387 = sphi 0, %s386
      %s403 = sphi 0, %s387
    $region4: #{tpu_custom_call.1} parent=1 // loop_header_branch
      %30 = sbr.rel (%p28) target = $region8
    $region5: #{tpu_custom_call.1} parent=1 // loop_body
      %s32 = ssub.s32 %s27, 1
      %s33 = ssub.s32 %s27, 2
      %s34 = sadd.s32 %s27, 1
      %s35 = ssub.s32 %s27, %s34
      %p36 = scmp.eq.s32.totalorder %s35, 0
      %s38 = sadd.s32 %s37, 1
      %s39 = scalar_select %p36, %s37, %s38
      %p42 = pneg %p36
      %p43 = scmp.eq.s32.totalorder %s27, 3
      %p44 = por %p42, %p43
      %p45 = scmp.ne.s32.totalorder %s37, %s40
      %p46 = scmp.eq.s32.totalorder %s27, 0
      %p47 = por %p45, %p46
      %p48 = scmp.ne.s32.totalorder %s37, %s40
      %p49 = scmp.eq.s32.totalorder %s32, 3
      %p50 = por %p48, %p49
      %p51 = scmp.ne.s32.totalorder %s40, %s41
      %p52 = scmp.eq.s32.totalorder %s32, 0
      %p53 = por %p51, %p52
      %p54 = scmp.ne.s32.totalorder %s40, %s41
      %p55 = scmp.eq.s32.totalorder %s33, 3
      %p56 = por %p54, %p55
      %p58 = scmp.ne.s32.totalorder %s41, %s57
      %p59 = scmp.eq.s32.totalorder %s33, 0
      %p60 = por %p58, %p59
      %s61 = ssub.s32 %s27, %s34
      %p62 = scmp.eq.s32.totalorder %s61, 0
      %s64 = sadd.s32 %s63, 1
      %s65 = scalar_select %p62, %s63, %s64
      %p68 = pneg %p62
      %p69 = scmp.eq.s32.totalorder %s27, 3
      %p70 = por %p68, %p69
      %p71 = scmp.ne.s32.totalorder %s63, %s66
      %p72 = scmp.eq.s32.totalorder %s27, 0
      %p73 = por %p71, %p72
      %p74 = scmp.ne.s32.totalorder %s63, %s66
      %p75 = scmp.eq.s32.totalorder %s32, 3
      %p76 = por %p74, %p75
      %p77 = scmp.ne.s32.totalorder %s66, %s67
      %p78 = scmp.eq.s32.totalorder %s32, 0
      %p79 = por %p77, %p78
      %p80 = scmp.ne.s32.totalorder %s66, %s67
      %p81 = scmp.eq.s32.totalorder %s33, 3
      %p82 = por %p80, %p81
      %p84 = scmp.ne.s32.totalorder %s67, %s83
      %p85 = scmp.eq.s32.totalorder %s33, 0
      %p86 = por %p84, %p85
      %s88 = sadd.s32 %s87, 1
      %p91 = scmp.eq.s32.totalorder %s27, 3
      %p92 = scmp.ne.s32.totalorder %s87, %s89
      %p93 = scmp.eq.s32.totalorder %s27, 0
      %p94 = por %p92, %p93
      %p95 = scmp.ne.s32.totalorder %s87, %s89
      %p96 = scmp.eq.s32.totalorder %s32, 3
      %p97 = por %p95, %p96
      %p98 = scmp.ne.s32.totalorder %s89, %s90
      %p99 = scmp.eq.s32.totalorder %s32, 0
      %p100 = por %p98, %p99
      %p101 = scmp.ne.s32.totalorder %s89, %s90
      %p102 = scmp.eq.s32.totalorder %s33, 3
      %p103 = por %p101, %p102
      %p105 = scmp.ne.s32.totalorder %s90, %s104
      %p106 = scmp.eq.s32.totalorder %s33, 0
      %p107 = por %p105, %p106
      %s109 = sadd.s32 %s108, 1
      %p112 = scmp.eq.s32.totalorder %s27, 3
      %p113 = scmp.ne.s32.totalorder %s108, %s110
      %p114 = scmp.eq.s32.totalorder %s27, 0
      %p115 = por %p113, %p114
      %p116 = scmp.ne.s32.totalorder %s108, %s110
      %p117 = scmp.eq.s32.totalorder %s32, 3
      %p118 = por %p116, %p117
      %p119 = scmp.ne.s32.totalorder %s110, %s111
      %p120 = scmp.eq.s32.totalorder %s32, 0
      %p121 = por %p119, %p120
      %p122 = scmp.ne.s32.totalorder %s110, %s111
      %p123 = scmp.eq.s32.totalorder %s33, 3
      %p124 = por %p122, %p123
      %p126 = scmp.ne.s32.totalorder %s111, %s125
      %p127 = scmp.eq.s32.totalorder %s33, 0
      %p128 = por %p126, %p127
      %s130 = sadd.s32 %s129, 1
      %p133 = scmp.eq.s32.totalorder %s27, 3
      %p134 = scmp.ne.s32.totalorder %s129, %s131
      %p135 = scmp.eq.s32.totalorder %s27, 0
      %p136 = por %p134, %p135
      %p137 = scmp.ne.s32.totalorder %s129, %s131
      %p138 = scmp.eq.s32.totalorder %s32, 3
      %p139 = por %p137, %p138
      %p140 = scmp.ne.s32.totalorder %s131, %s132
      %p141 = scmp.eq.s32.totalorder %s32, 0
      %p142 = por %p140, %p141
      %p143 = scmp.ne.s32.totalorder %s131, %s132
      %p144 = scmp.eq.s32.totalorder %s33, 3
      %p145 = por %p143, %p144
      %p147 = scmp.ne.s32.totalorder %s132, %s146
      %p148 = scmp.eq.s32.totalorder %s33, 0
      %p149 = por %p147, %p148
      %s151 = sadd.s32 %s150, 1
      %p154 = scmp.eq.s32.totalorder %s27, 3
      %p155 = scmp.ne.s32.totalorder %s150, %s152
      %p156 = scmp.eq.s32.totalorder %s27, 0
      %p157 = por %p155, %p156
      %p158 = scmp.ne.s32.totalorder %s150, %s152
      %p159 = scmp.eq.s32.totalorder %s32, 3
      %p160 = por %p158, %p159
      %p161 = scmp.ne.s32.totalorder %s152, %s153
      %p162 = scmp.eq.s32.totalorder %s32, 0
      %p163 = por %p161, %p162
      %p164 = scmp.ne.s32.totalorder %s152, %s153
      %p165 = scmp.eq.s32.totalorder %s33, 3
      %p166 = por %p164, %p165
      %p168 = scmp.ne.s32.totalorder %s153, %s167
      %p169 = scmp.eq.s32.totalorder %s33, 0
      %p170 = por %p168, %p169
      %s172 = sadd.s32 %s171, 1
      %p175 = scmp.eq.s32.totalorder %s27, 3
      %p176 = scmp.ne.s32.totalorder %s171, %s173
      %p177 = scmp.eq.s32.totalorder %s27, 0
      %p178 = por %p176, %p177
      %p179 = scmp.ne.s32.totalorder %s171, %s173
      %p180 = scmp.eq.s32.totalorder %s32, 3
      %p181 = por %p179, %p180
      %p182 = scmp.ne.s32.totalorder %s173, %s174
      %p183 = scmp.eq.s32.totalorder %s32, 0
      %p184 = por %p182, %p183
      %p185 = scmp.ne.s32.totalorder %s173, %s174
      %p186 = scmp.eq.s32.totalorder %s33, 3
      %p187 = por %p185, %p186
      %p189 = scmp.ne.s32.totalorder %s174, %s188
      %p190 = scmp.eq.s32.totalorder %s33, 0
      %p191 = por %p189, %p190
      %s193 = sadd.s32 %s192, 1
      %p196 = scmp.eq.s32.totalorder %s27, 3
      %p197 = scmp.ne.s32.totalorder %s192, %s194
      %p198 = scmp.eq.s32.totalorder %s27, 0
      %p199 = por %p197, %p198
      %p200 = scmp.ne.s32.totalorder %s192, %s194
      %p201 = scmp.eq.s32.totalorder %s32, 3
      %p202 = por %p200, %p201
      %p203 = scmp.ne.s32.totalorder %s194, %s195
      %p204 = scmp.eq.s32.totalorder %s32, 0
      %p205 = por %p203, %p204
      %p206 = scmp.ne.s32.totalorder %s194, %s195
      %p207 = scmp.eq.s32.totalorder %s33, 3
      %p208 = por %p206, %p207
      %p210 = scmp.ne.s32.totalorder %s195, %s209
      %p211 = scmp.eq.s32.totalorder %s33, 0
      %p212 = por %p210, %p211
      %s214 = sadd.s32 %s213, 1
      %p217 = scmp.eq.s32.totalorder %s27, 3
      %p218 = scmp.ne.s32.totalorder %s213, %s215
      %p219 = scmp.eq.s32.totalorder %s27, 0
      %p220 = por %p218, %p219
      %p221 = scmp.ne.s32.totalorder %s213, %s215
      %p222 = scmp.eq.s32.totalorder %s32, 3
      %p223 = por %p221, %p222
      %p224 = scmp.ne.s32.totalorder %s215, %s216
      %p225 = scmp.eq.s32.totalorder %s32, 0
      %p226 = por %p224, %p225
      %p227 = scmp.ne.s32.totalorder %s215, %s216
      %p228 = scmp.eq.s32.totalorder %s33, 3
      %p229 = por %p227, %p228
      %p231 = scmp.ne.s32.totalorder %s216, %s230
      %p232 = scmp.eq.s32.totalorder %s33, 0
      %p233 = por %p231, %p232
      %s235 = sadd.s32 %s234, 1
      %p238 = scmp.eq.s32.totalorder %s27, 3
      %p239 = scmp.ne.s32.totalorder %s234, %s236
      %p240 = scmp.eq.s32.totalorder %s27, 0
      %p241 = por %p239, %p240
      %p242 = scmp.ne.s32.totalorder %s234, %s236
      %p243 = scmp.eq.s32.totalorder %s32, 3
      %p244 = por %p242, %p243
      %p245 = scmp.ne.s32.totalorder %s236, %s237
      %p246 = scmp.eq.s32.totalorder %s32, 0
      %p247 = por %p245, %p246
      %p248 = scmp.ne.s32.totalorder %s236, %s237
      %p249 = scmp.eq.s32.totalorder %s33, 3
      %p250 = por %p248, %p249
      %p252 = scmp.ne.s32.totalorder %s237, %s251
      %p253 = scmp.eq.s32.totalorder %s33, 0
      %p254 = por %p252, %p253
      %s256 = sadd.s32 %s255, 1
      %p259 = scmp.eq.s32.totalorder %s27, 3
      %p260 = scmp.ne.s32.totalorder %s255, %s257
      %p261 = scmp.eq.s32.totalorder %s27, 0
      %p262 = por %p260, %p261
      %p263 = scmp.ne.s32.totalorder %s255, %s257
      %p264 = scmp.eq.s32.totalorder %s32, 3
      %p265 = por %p263, %p264
      %p266 = scmp.ne.s32.totalorder %s257, %s258
      %p267 = scmp.eq.s32.totalorder %s32, 0
      %p268 = por %p266, %p267
      %p269 = scmp.ne.s32.totalorder %s257, %s258
      %p270 = scmp.eq.s32.totalorder %s33, 3
      %p271 = por %p269, %p270
      %p273 = scmp.ne.s32.totalorder %s258, %s272
      %p274 = scmp.eq.s32.totalorder %s33, 0
      %p275 = por %p273, %p274
      %s277 = sadd.s32 %s276, 1
      %p280 = scmp.eq.s32.totalorder %s27, 3
      %p281 = scmp.ne.s32.totalorder %s276, %s278
      %p282 = scmp.eq.s32.totalorder %s27, 0
      %p283 = por %p281, %p282
      %p284 = scmp.ne.s32.totalorder %s276, %s278
      %p285 = scmp.eq.s32.totalorder %s32, 3
      %p286 = por %p284, %p285
      %p287 = scmp.ne.s32.totalorder %s278, %s279
      %p288 = scmp.eq.s32.totalorder %s32, 0
      %p289 = por %p287, %p288
      %p290 = scmp.ne.s32.totalorder %s278, %s279
      %p291 = scmp.eq.s32.totalorder %s33, 3
      %p292 = por %p290, %p291
      %p294 = scmp.ne.s32.totalorder %s279, %s293
      %p295 = scmp.eq.s32.totalorder %s33, 0
      %p296 = por %p294, %p295
      %s298 = sadd.s32 %s297, 1
      %p301 = scmp.eq.s32.totalorder %s27, 3
      %p302 = scmp.ne.s32.totalorder %s297, %s299
      %p303 = scmp.eq.s32.totalorder %s27, 0
      %p304 = por %p302, %p303
      %p305 = scmp.ne.s32.totalorder %s297, %s299
      %p306 = scmp.eq.s32.totalorder %s32, 3
      %p307 = por %p305, %p306
      %p308 = scmp.ne.s32.totalorder %s299, %s300
      %p309 = scmp.eq.s32.totalorder %s32, 0
      %p310 = por %p308, %p309
      %p311 = scmp.ne.s32.totalorder %s299, %s300
      %p312 = scmp.eq.s32.totalorder %s33, 3
      %p313 = por %p311, %p312
      %p315 = scmp.ne.s32.totalorder %s300, %s314
      %p316 = scmp.eq.s32.totalorder %s33, 0
      %p317 = por %p315, %p316
      %s319 = sadd.s32 %s318, 1
      %p322 = scmp.eq.s32.totalorder %s27, 3
      %p323 = scmp.ne.s32.totalorder %s318, %s320
      %p324 = scmp.eq.s32.totalorder %s27, 0
      %p325 = por %p323, %p324
      %p326 = scmp.ne.s32.totalorder %s318, %s320
      %p327 = scmp.eq.s32.totalorder %s32, 3
      %p328 = por %p326, %p327
      %p329 = scmp.ne.s32.totalorder %s320, %s321
      %p330 = scmp.eq.s32.totalorder %s32, 0
      %p331 = por %p329, %p330
      %p332 = scmp.ne.s32.totalorder %s320, %s321
      %p333 = scmp.eq.s32.totalorder %s33, 3
      %p334 = por %p332, %p333
      %p336 = scmp.ne.s32.totalorder %s321, %s335
      %p337 = scmp.eq.s32.totalorder %s33, 0
      %p338 = por %p336, %p337
      %s340 = sadd.s32 %s339, 1
      %p343 = scmp.eq.s32.totalorder %s27, 3
      %p344 = scmp.ne.s32.totalorder %s339, %s341
      %p345 = scmp.eq.s32.totalorder %s27, 0
      %p346 = por %p344, %p345
      %p347 = scmp.ne.s32.totalorder %s339, %s341
      %p348 = scmp.eq.s32.totalorder %s32, 3
      %p349 = por %p347, %p348
      %p350 = scmp.ne.s32.totalorder %s341, %s342
      %p351 = scmp.eq.s32.totalorder %s32, 0
      %p352 = por %p350, %p351
      %p353 = scmp.ne.s32.totalorder %s341, %s342
      %p354 = scmp.eq.s32.totalorder %s33, 3
      %p355 = por %p353, %p354
      %p357 = scmp.ne.s32.totalorder %s342, %s356
      %p358 = scmp.eq.s32.totalorder %s33, 0
      %p359 = por %p357, %p358
      %s361 = sadd.s32 %s360, 1
      %p364 = scmp.eq.s32.totalorder %s27, 3
      %p365 = scmp.ne.s32.totalorder %s360, %s362
      %p366 = scmp.eq.s32.totalorder %s27, 0
      %p367 = por %p365, %p366
      %p368 = scmp.ne.s32.totalorder %s360, %s362
      %p369 = scmp.eq.s32.totalorder %s32, 3
      %p370 = por %p368, %p369
      %p371 = scmp.ne.s32.totalorder %s362, %s363
      %p372 = scmp.eq.s32.totalorder %s32, 0
      %p373 = por %p371, %p372
      %p374 = scmp.ne.s32.totalorder %s362, %s363
      %p375 = scmp.eq.s32.totalorder %s33, 3
      %p376 = por %p374, %p375
      %p378 = scmp.ne.s32.totalorder %s363, %s377
      %p379 = scmp.eq.s32.totalorder %s33, 0
      %p380 = por %p378, %p379
      %s381 = ssub.s32 %s27, %s34
      %p382 = scmp.eq.s32.totalorder %s381, 0
      %s384 = sadd.s32 %s383, 1
      %s385 = scalar_select %p382, %s383, %s384
      %p388 = pneg %p382
      %p389 = scmp.eq.s32.totalorder %s27, 3
      %p390 = por %p388, %p389
      %p391 = scmp.ne.s32.totalorder %s383, %s386
      %p392 = scmp.eq.s32.totalorder %s27, 0
      %p393 = por %p391, %p392
      %p394 = scmp.ne.s32.totalorder %s383, %s386
      %p395 = scmp.eq.s32.totalorder %s32, 3
      %p396 = por %p394, %p395
      %p397 = scmp.ne.s32.totalorder %s386, %s387
      %p398 = scmp.eq.s32.totalorder %s32, 0
      %p399 = por %p397, %p398
      %p400 = scmp.ne.s32.totalorder %s386, %s387
      %p401 = scmp.eq.s32.totalorder %s33, 3
      %p402 = por %p400, %p401
      %p404 = scmp.ne.s32.totalorder %s387, %s403
      %p405 = scmp.eq.s32.totalorder %s33, 0
      %p406 = por %p404, %p405
      %p407 = scmp.le.s32.totalorder 1, %s27
      %p408 = scmp.lt.s32.totalorder %s27, 5
      %p409 = pnand %p407, %p408
      %p410 = pneg %p409
      // Predicated region
      $region9: #{tpu_custom_call.1} parent=5 // pred_check
        _
      $region10: #{tpu_custom_call.1} parent=5 // pred_check_branch
        %412 = sbr.rel (%p409) target = $region12
      $region11: #{tpu_custom_call.1} parent=5 // pred_region
        %s413 = ssub.s32 %s27, 1
        // Predicated region
        $region13: #{tpu_custom_call.1} parent=11 // pred_check
          %p414 = pneg %p100
        $region14: #{tpu_custom_call.1} parent=11 // pred_check_branch
          %416 = sbr.rel (%p414) target = $region16
        $region15: #{tpu_custom_call.1} parent=11 // pred_region
          %s418 = ssub.s32 64, 64
          %419 = vsyncadd [#allocation3], %s418
          %s421 = sshll.u32 [#allocation2], 4
          %s422 = int_to_ptr.vmem [resolvable:$true] %s421
          %424 = dma.hbm_to_vmem [thread:$0]  %s2, 64, %s422, [#allocation3]
        $region16: #{tpu_custom_call.1} parent=11 // pred_fallthru
          _
        // Predicated region
        $region17: #{tpu_custom_call.1} parent=11 // pred_check
          %p425 = pneg %p121
        $region18: #{tpu_custom_call.1} parent=11 // pred_check_branch
          %427 = sbr.rel (%p425) target = $region20
        $region19: #{tpu_custom_call.1} parent=11 // pred_region
          _
        $region20: #{tpu_custom_call.1} parent=11 // pred_fallthru
          _
        // Predicated region
        $region21: #{tpu_custom_call.1} parent=11 // pred_check
          %p428 = pneg %p142
        $region22: #{tpu_custom_call.1} parent=11 // pred_check_branch
          %430 = sbr.rel (%p428) target = $region24
        $region23: #{tpu_custom_call.1} parent=11 // pred_region
          _
        $region24: #{tpu_custom_call.1} parent=11 // pred_fallthru
          _
        // Predicated region
        $region25: #{tpu_custom_call.1} parent=11 // pred_check
          %p431 = pneg %p163
        $region26: #{tpu_custom_call.1} parent=11 // pred_check_branch
          %433 = sbr.rel (%p431) target = $region28
        $region27: #{tpu_custom_call.1} parent=11 // pred_region
          _
        $region28: #{tpu_custom_call.1} parent=11 // pred_fallthru
          _
        // Predicated region
        $region29: #{tpu_custom_call.1} parent=11 // pred_check
          %p434 = pneg %p184
        $region30: #{tpu_custom_call.1} parent=11 // pred_check_branch
          %436 = sbr.rel (%p434) target = $region32
        $region31: #{tpu_custom_call.1} parent=11 // pred_region
          _
        $region32: #{tpu_custom_call.1} parent=11 // pred_fallthru
          _
        // Predicated region
        $region33: #{tpu_custom_call.1} parent=11 // pred_check
          %p437 = pneg %p205
        $region34: #{tpu_custom_call.1} parent=11 // pred_check_branch
          %439 = sbr.rel (%p437) target = $region36
        $region35: #{tpu_custom_call.1} parent=11 // pred_region
          %s441 = ssub.s32 32, 32
          %442 = vsyncadd [#allocation6], %s441
          %s444 = sshll.u32 [#allocation5], 4
          %s445 = int_to_ptr.vmem [resolvable:$true] %s444
          %447 = dma.hbm_to_vmem [thread:$0]  %s7, 32, %s445, [#allocation6]
        $region36: #{tpu_custom_call.1} parent=11 // pred_fallthru
          _
        // Predicated region
        $region37: #{tpu_custom_call.1} parent=11 // pred_check
          %p448 = pneg %p226
        $region38: #{tpu_custom_call.1} parent=11 // pred_check_branch
          %450 = sbr.rel (%p448) target = $region40
        $region39: #{tpu_custom_call.1} parent=11 // pred_region
          _
        $region40: #{tpu_custom_call.1} parent=11 // pred_fallthru
          _
        // Predicated region
        $region41: #{tpu_custom_call.1} parent=11 // pred_check
          %p451 = pneg %p247
        $region42: #{tpu_custom_call.1} parent=11 // pred_check_branch
          %453 = sbr.rel (%p451) target = $region44
        $region43: #{tpu_custom_call.1} parent=11 // pred_region
          _
        $region44: #{tpu_custom_call.1} parent=11 // pred_fallthru
          _
        // Predicated region
        $region45: #{tpu_custom_call.1} parent=11 // pred_check
          %p454 = pneg %p268
        $region46: #{tpu_custom_call.1} parent=11 // pred_check_branch
          %456 = sbr.rel (%p454) target = $region48
        $region47: #{tpu_custom_call.1} parent=11 // pred_region
          _
        $region48: #{tpu_custom_call.1} parent=11 // pred_fallthru
          _
        // Predicated region
        $region49: #{tpu_custom_call.1} parent=11 // pred_check
          %p457 = pneg %p289
        $region50: #{tpu_custom_call.1} parent=11 // pred_check_branch
          %459 = sbr.rel (%p457) target = $region52
        $region51: #{tpu_custom_call.1} parent=11 // pred_region
          _
        $region52: #{tpu_custom_call.1} parent=11 // pred_fallthru
          _
        // Predicated region
        $region53: #{tpu_custom_call.1} parent=11 // pred_check
          %p460 = pneg %p310
        $region54: #{tpu_custom_call.1} parent=11 // pred_check_branch
          %462 = sbr.rel (%p460) target = $region56
        $region55: #{tpu_custom_call.1} parent=11 // pred_region
          _
        $region56: #{tpu_custom_call.1} parent=11 // pred_fallthru
          _
        // Predicated region
        $region57: #{tpu_custom_call.1} parent=11 // pred_check
          %p463 = pneg %p331
        $region58: #{tpu_custom_call.1} parent=11 // pred_check_branch
          %465 = sbr.rel (%p463) target = $region60
        $region59: #{tpu_custom_call.1} parent=11 // pred_region
          _
        $region60: #{tpu_custom_call.1} parent=11 // pred_fallthru
          _
        // Predicated region
        $region61: #{tpu_custom_call.1} parent=11 // pred_check
          %p466 = pneg %p352
        $region62: #{tpu_custom_call.1} parent=11 // pred_check_branch
          %468 = sbr.rel (%p466) target = $region64
        $region63: #{tpu_custom_call.1} parent=11 // pred_region
          _
        $region64: #{tpu_custom_call.1} parent=11 // pred_fallthru
          _
        // Predicated region
        $region65: #{tpu_custom_call.1} parent=11 // pred_check
          %p469 = pneg %p373
        $region66: #{tpu_custom_call.1} parent=11 // pred_check_branch
          %471 = sbr.rel (%p469) target = $region68
        $region67: #{tpu_custom_call.1} parent=11 // pred_region
          _
        $region68: #{tpu_custom_call.1} parent=11 // pred_fallthru
          _
      $region12: #{tpu_custom_call.1} parent=5 // pred_fallthru
        _
      %p472 = scmp.lt.s32.totalorder %s27, 4
      // Predicated region
      $region69: #{tpu_custom_call.1} parent=5 // pred_check
        %p473 = pneg %p472
      $region70: #{tpu_custom_call.1} parent=5 // pred_check_branch
        %475 = sbr.rel (%p473) target = $region72
      $region71: #{tpu_custom_call.1} parent=5 // pred_region
        // Predicated region
        $region73: #{tpu_custom_call.1} parent=71 // pred_check
          %p476 = pneg %p47
        $region74: #{tpu_custom_call.1} parent=71 // pred_check_branch
          %478 = sbr.rel (%p476) target = $region76
        $region75: #{tpu_custom_call.1} parent=71 // pred_region
          %p479 = scmp.lt.s32.totalorder %s27, 3
          %s480 = scalar_select %p479, %s27, 3
          %s481 = smul.addr %s480, 4
          %s482 = smul.addr %s481, 8
          %s483 = scalar_lea.vmem %s0, %s482
        $region76: #{tpu_custom_call.1} parent=71 // pred_fallthru
          _
        // Predicated region
        $region77: #{tpu_custom_call.1} parent=71 // pred_check
          %p484 = pneg %p73
        $region78: #{tpu_custom_call.1} parent=71 // pred_check_branch
          %486 = sbr.rel (%p484) target = $region80
        $region79: #{tpu_custom_call.1} parent=71 // pred_region
          %p487 = scmp.lt.s32.totalorder %s27, 3
          %s488 = scalar_select %p487, %s27, 3
          %s489 = smul.addr %s488, 4
          %s490 = smul.addr %s489, 8
          %s491 = scalar_lea.vmem %s1, %s490
        $region80: #{tpu_custom_call.1} parent=71 // pred_fallthru
          _
      $region72: #{tpu_custom_call.1} parent=5 // pred_fallthru
        _
      %p492 = scmp.le.s32.totalorder 1, %s27
      %p493 = scmp.lt.s32.totalorder %s27, 5
      %p494 = pnand %p492, %p493
      %p495 = pneg %p494
      // Predicated region
      $region81: #{tpu_custom_call.1} parent=5 // pred_check
        _
      $region82: #{tpu_custom_call.1} parent=5 // pred_check_branch
        %497 = sbr.rel (%p494) target = $region84
      $region83: #{tpu_custom_call.1} parent=5 // pred_region
        %s498 = ssub.s32 %s27, 1
        // Predicated region
        $region85: #{tpu_custom_call.1} parent=83 // pred_check
          %p499 = pneg %p100
        $region86: #{tpu_custom_call.1} parent=83 // pred_check_branch
          %501 = sbr.rel (%p499) target = $region88
        $region87: #{tpu_custom_call.1} parent=83 // pred_region
          %502 = dma.done [#allocation3], 64
        $region88: #{tpu_custom_call.1} parent=83 // pred_fallthru
          _
        // Predicated region
        $region89: #{tpu_custom_call.1} parent=83 // pred_check
          %p503 = pneg %p205
        $region90: #{tpu_custom_call.1} parent=83 // pred_check_branch
          %505 = sbr.rel (%p503) target = $region92
        $region91: #{tpu_custom_call.1} parent=83 // pred_region
          %506 = dma.done [#allocation6], 32
        $region92: #{tpu_custom_call.1} parent=83 // pred_fallthru
          _
        %p507 = scmp.lt.s32.totalorder %s32, 3
        %s508 = scalar_select %p507, %s32, 3
        %s509 = smul.addr %s508, 4
        %s510 = smul.addr %s509, 8
        %s511 = scalar_lea.vmem %s0, %s510
        %p512 = pneg %p53
        %p513 = pneg %p50
        %p514 = scmp.lt.s32.totalorder %s32, 3
        %s515 = scalar_select %p514, %s32, 3
        %s516 = smul.addr %s515, 4
        %s517 = smul.addr %s516, 8
        %s518 = scalar_lea.vmem %s1, %s517
        %p519 = pneg %p79
        %p520 = pneg %p76
        %p521 = pneg %p100
        %p522 = pneg %p97
        %p523 = pneg %p121
        %p524 = pneg %p118
        %p525 = pneg %p142
        %p526 = pneg %p139
        %p527 = pneg %p163
        %p528 = pneg %p160
        %p529 = pneg %p184
        %p530 = pneg %p181
        %p531 = pneg %p205
        %p532 = pneg %p202
        %p533 = pneg %p226
        %p534 = pneg %p223
        %p535 = pneg %p247
        %p536 = pneg %p244
        %p537 = pneg %p268
        %p538 = pneg %p265
        %p539 = pneg %p289
        %p540 = pneg %p286
        %p541 = pneg %p310
        %p542 = pneg %p307
        %p543 = pneg %p331
        %p544 = pneg %p328
        %p545 = pneg %p352
        %p546 = pneg %p349
        %p547 = pneg %p373
        %p548 = pneg %p370
        %p549 = pneg %p399
        %p550 = pneg %p396
        %s551 = sand.u32 %s386, 1
        %s552 = scalar_lea.sflag [#allocation4], %s551
        %s553 = sand.u32 %s386, 1
        %s554 = scalar_lea.vmem [#allocation7], %s553
        %p555 = scmp.lt.s32.totalorder %s32, 3
        %s556 = scalar_select %p555, %s32, 3
        %s557 = smul.addr %s556, 4
        %s558 = smul.addr %s557, 8
        %s559 = scalar_lea.vmem %s0, %s558
        %p560 = scmp.lt.s32.totalorder %s32, 3
        %s561 = scalar_select %p560, %s32, 3
        %s562 = smul.addr %s561, 4
        %s563 = smul.addr %s562, 8
        %s564 = scalar_lea.vmem %s1, %s563
        %v565 = vld [vmem:[%s559] sm:$0xff]
        %v566 = vld [vmem:[%s559 + $0x8] sm:$0xff]
        %v567 = vld [vmem:[%s559 + $0x10] sm:$0xff]
        %v568 = vld [vmem:[%s559 + $0x18] sm:$0xff]
        %v569 = vld [vmem:[%s564] sm:$0xff]
        %v570 = vld [vmem:[%s564 + $0x8] sm:$0xff]
        %v571 = vld [vmem:[%s564 + $0x10] sm:$0xff]
        %v572 = vld [vmem:[%s564 + $0x18] sm:$0xff]
        %v573 = vlaneseq
        %v574 = vshrl.u32 %v573, 7
        %v575 = vadd.s32 %v574, 8
        %v576 = vadd.s32 %v574, 16
        %v577 = vadd.s32 %v574, 24
        %v578 = vlaneseq
        %v579 = vand.u32 %v578, 127
        %vm580 = vcmp.eq.s32.totalorder %v574, %v579
        %vm581 = vcmp.eq.s32.totalorder %v575, %v579
        %vm582 = vcmp.eq.s32.totalorder %v576, %v579
        %vm583 = vcmp.eq.s32.totalorder %v577, %v579
        %v584 = vsel %vm580, 1.0, %v569
        %v585 = vsel %vm581, 1.0, %v570
        %v586 = vsel %vm582, 1.0, %v571
        %v587 = vsel %vm583, 1.0, %v572
        %vm588 = vcmask 261120
        %v589 = vsel %vm588, %v584, 0.0
        %590 = vadd.xlane.f32.xlu0 %v589
        %v591 = vpop.xlane.xlu0 %590
        %v592 = vsel %vm588, %v585, 0.0
        %593 = vadd.xlane.f32.xlu0 %v592
        %v594 = vpop.xlane.xlu0 %593
        %v595 = vsel %vm588, %v586, 0.0
        %596 = vadd.xlane.f32.xlu0 %v595
        %v597 = vpop.xlane.xlu0 %596
        %v598 = vsel %vm588, %v587, 0.0
        %599 = vadd.xlane.f32.xlu0 %v598
        %v600 = vpop.xlane.xlu0 %599
        %v601 = vmax.f32 %v591, 1.0
        %v602 = vmax.f32 %v594, 1.0
        %v603 = vmax.f32 %v597, 1.0
        %v604 = vmax.f32 %v600, 1.0
        %v605 = vadd.f32 %v589, %v592
        %v606 = vadd.f32 %v605, %v595
        %v607 = vadd.f32 %v606, %v598
        %v608 = vrot.slane %v607, 4
        %v609 = vadd.f32 %v607, %v608
        %v610 = vrot.slane %v609, 2
        %v611 = vadd.f32 %v609, %v610
        %v612 = vrot.slane %v611, 1
        %v613 = vadd.f32 %v611, %v612
        %v614 = vmax.f32 %v613, 1.0
        %v615 = vrsqrt.pop %v601
        %v616 = vrsqrt.pop %v602
        %v617 = vrsqrt.pop %v603
        %v618 = vrsqrt.pop %v604
        %v619 = vmul.f32 %v615, %v584
        %v620 = vmul.f32 %v616, %v585
        %v621 = vmul.f32 %v617, %v586
        %v622 = vmul.f32 %v618, %v587
        %v623 = vrsqrt.pop %v614
        %v624 = vmul.f32 %v619, %v623
        %v625 = vmul.f32 %v620, %v623
        %v626 = vmul.f32 %v621, %v623
        %v627 = vmul.f32 %v622, %v623
        %v628 = vld [vmem:[#allocation2] sm:$0xf]
        %v629 = vld [vmem:[%s3] sm:$0x3]
        %v630 = vld [vmem:[%s4] sm:$0xff]
        %v631 = vld [vmem:[%s4 + $0x8] sm:$0xff]
        %v632 = vld [vmem:[%s4 + $0x10] sm:$0xff]
        %v633 = vld [vmem:[%s4 + $0x18] sm:$0xff]
        %v634 = vld [vmem:[%s4 + $0x20] sm:$0xff]
        %v635 = vld [vmem:[%s4 + $0x28] sm:$0xff]
        %v636 = vld [vmem:[%s5] sm:$0xf]
        %v638 = vsel %vm588, %v624, 0
        %v641 = vsel %vm588, %v625, 0
        %v644 = vsel %vm588, %v626, 0
        %v647 = vsel %vm588, %v627, 0
        %649 = vmatprep.subr.mxu0 0.0
        %650 = vmatpush1.msra.mxu0 %v565
        %651 = vmatprep.subr.mxu0 0.0
        %652 = vmatpush1.msra.mxu0 %v566
        %653 = vmatprep.subr.mxu0 0.0
        %654 = vmatpush1.msra.mxu0 %v567
        %655 = vmatprep.subr.mxu0 0.0
        %656 = vmatpush1.msra.mxu0 %v568
        %657 = vmatprep.subr.mxu0 0.0
        %658 = vmatpush1.msra.mxu0 0.0
        %659 = vmatprep.subr.mxu0 0.0
        %660 = vmatpush1.msra.mxu0 0.0
        %661 = vmatprep.subr.mxu0 0.0
        %662 = vmatpush1.msra.mxu0 0.0
        %663 = vmatprep.subr.mxu0 0.0
        %664 = vmatpush1.msra.mxu0 0.0
        %665 = vmatprep.subr.mxu0 0.0
        %666 = vmatpush1.msra.mxu0 0.0
        %667 = vmatprep.subr.mxu0 0.0
        %668 = vmatpush1.msra.mxu0 0.0
        %669 = vmatprep.subr.mxu0 0.0
        %670 = vmatpush1.msra.mxu0 0.0
        %671 = vmatprep.subr.mxu0 0.0
        %672 = vmatpush1.msra.mxu0 0.0
        %673 = vmatprep.subr.mxu0 0.0
        %674 = vmatpush1.msra.mxu0 0.0
        %675 = vmatprep.subr.mxu0 0.0
        %676 = vmatpush1.msra.mxu0 0.0
        %677 = vmatprep.subr.mxu0 0.0
        %678 = vmatpush1.msra.mxu0 0.0
        %679 = vmatprep.subr.mxu0 0.0
        %680 = vmatpush1.msra.mxu0 0.0
        %681 = vmatprep.subr.mxu0 0.0
        %682 = vmatpush1.msra.mxu0 0.0
        %683 = vmatprep.subr.mxu0 0.0
        %684 = vmatpush1.msra.mxu0 0.0
        %685 = vmatprep.subr.mxu0 0.0
        %686 = vmatpush1.msra.mxu0 0.0
        %687 = vmatprep.subr.mxu0 0.0
        %688 = vmatpush1.msra.mxu0 0.0
        %689 = vmatprep.subr.mxu0 0.0
        %690 = vmatpush1.msra.mxu0 0.0
        %691 = vmatprep.subr.mxu0 0.0
        %692 = vmatpush1.msra.mxu0 0.0
        %693 = vmatprep.subr.mxu0 0.0
        %694 = vmatpush1.msra.mxu0 0.0
        %695 = vmatprep.subr.mxu0 0.0
        %696 = vmatpush1.msra.mxu0 0.0
        %697 = vmatprep.subr.mxu0 0.0
        %698 = vmatpush1.msra.mxu0 0.0
        %699 = vmatprep.subr.mxu0 0.0
        %700 = vmatpush1.msra.mxu0 0.0
        %701 = vmatprep.subr.mxu0 0.0
        %702 = vmatpush1.msra.mxu0 0.0
        %703 = vmatprep.subr.mxu0 0.0
        %704 = vmatpush1.msra.mxu0 0.0
        %705 = vmatprep.subr.mxu0 0.0
        %706 = vmatpush1.msra.mxu0 0.0
        %707 = vmatprep.subr.mxu0 0.0
        %708 = vmatpush1.msra.mxu0 0.0
        %709 = vmatprep.subr.mxu0 0.0
        %710 = vmatpush1.msra.mxu0 0.0
        %711 = vmatprep.subr.mxu0 0.0
        %712 = vmatpush1.msra.mxu0 0.0
        %713 = vmatprep.mubr.f32.mxu0 0.0
        %714 = vmatmul.mubr.f32.gmra.mrb[0].mxu0 %v638
        %v715 = vpop.f32.mrb[0].mxu0
        %v716 = vadd.f32 0.0, %v715
        %v717 = vpop.f32.mrb[0].mxu0
        %718 = vmatprep.mubr.f32.mxu0 0.0
        %719 = vmatmul.mubr.f32.gmra.mrb[0].mxu0 %v641
        %v720 = vpop.f32.mrb[0].mxu0
        %v721 = vadd.f32 0.0, %v720
        %v722 = vpop.f32.mrb[0].mxu0
        %723 = vmatprep.mubr.f32.mxu0 0.0
        %724 = vmatmul.mubr.f32.gmra.mrb[0].mxu0 %v644
        %v725 = vpop.f32.mrb[0].mxu0
        %v726 = vadd.f32 0.0, %v725
        %v727 = vpop.f32.mrb[0].mxu0
        %728 = vmatprep.mubr.f32.mxu0 0.0
        %729 = vmatmul.mubr.f32.gmra.mrb[0].mxu0 %v647
        %v730 = vpop.f32.mrb[0].mxu0
        %v731 = vadd.f32 0.0, %v730
        %v732 = vpop.f32.mrb[0].mxu0
        %733 = vdwg.mxu0
        %v734 = vlaneseq
        %v735 = vshrl.u32 %v734, 7
        %v736 = vsub.s32 0, %v735
        %v737 = vrot.slane %v629, %v736
        %vm738 = vcmask 31744
        %v740 = vsel %vm738, %v716, 0
        %v743 = vsel %vm738, %v721, 0
        %v746 = vsel %vm738, %v726, 0
        %v749 = vsel %vm738, %v731, 0
        %vm751 = vcmask 1043456
        %v753 = vsel %vm751, %v628, 0
        %755 = vmatprep.subr.mxu0 0.0
        %756 = vmatpush1.msra.mxu0 %v753
        %757 = vmatprep.subr.mxu0 0.0
        %758 = vmatpush1.msra.mxu0 0.0
        %759 = vmatprep.subr.mxu0 0.0
        %760 = vmatpush1.msra.mxu0 0.0
        %761 = vmatprep.subr.mxu0 0.0
        %762 = vmatpush1.msra.mxu0 0.0
        %763 = vmatprep.subr.mxu0 0.0
        %764 = vmatpush1.msra.mxu0 0.0
        %765 = vmatprep.subr.mxu0 0.0
        %766 = vmatpush1.msra.mxu0 0.0
        %767 = vmatprep.subr.mxu0 0.0
        %768 = vmatpush1.msra.mxu0 0.0
        %769 = vmatprep.subr.mxu0 0.0
        %770 = vmatpush1.msra.mxu0 0.0
        %771 = vmatprep.subr.mxu0 0.0
        %772 = vmatpush1.msra.mxu0 0.0
        %773 = vmatprep.subr.mxu0 0.0
        %774 = vmatpush1.msra.mxu0 0.0
        %775 = vmatprep.subr.mxu0 0.0
        %776 = vmatpush1.msra.mxu0 0.0
        %777 = vmatprep.subr.mxu0 0.0
        %778 = vmatpush1.msra.mxu0 0.0
        %779 = vmatprep.subr.mxu0 0.0
        %780 = vmatpush1.msra.mxu0 0.0
        %781 = vmatprep.subr.mxu0 0.0
        %782 = vmatpush1.msra.mxu0 0.0
        %783 = vmatprep.subr.mxu0 0.0
        %784 = vmatpush1.msra.mxu0 0.0
        %785 = vmatprep.subr.mxu0 0.0
        %786 = vmatpush1.msra.mxu0 0.0
        %787 = vmatprep.subr.mxu0 0.0
        %788 = vmatpush1.msra.mxu0 0.0
        %789 = vmatprep.subr.mxu0 0.0
        %790 = vmatpush1.msra.mxu0 0.0
        %791 = vmatprep.subr.mxu0 0.0
        %792 = vmatpush1.msra.mxu0 0.0
        %793 = vmatprep.subr.mxu0 0.0
        %794 = vmatpush1.msra.mxu0 0.0
        %795 = vmatprep.subr.mxu0 0.0
        %796 = vmatpush1.msra.mxu0 0.0
        %797 = vmatprep.subr.mxu0 0.0
        %798 = vmatpush1.msra.mxu0 0.0
        %799 = vmatprep.subr.mxu0 0.0
        %800 = vmatpush1.msra.mxu0 0.0
        %801 = vmatprep.subr.mxu0 0.0
        %802 = vmatpush1.msra.mxu0 0.0
        %803 = vmatprep.subr.mxu0 0.0
        %804 = vmatpush1.msra.mxu0 0.0
        %805 = vmatprep.subr.mxu0 0.0
        %806 = vmatpush1.msra.mxu0 0.0
        %807 = vmatprep.subr.mxu0 0.0
        %808 = vmatpush1.msra.mxu0 0.0
        %809 = vmatprep.subr.mxu0 0.0
        %810 = vmatpush1.msra.mxu0 0.0
        %811 = vmatprep.subr.mxu0 0.0
        %812 = vmatpush1.msra.mxu0 0.0
        %813 = vmatprep.subr.mxu0 0.0
        %814 = vmatpush1.msra.mxu0 0.0
        %815 = vmatprep.subr.mxu0 0.0
        %816 = vmatpush1.msra.mxu0 0.0
        %817 = vmatprep.subr.mxu0 0.0
        %818 = vmatpush1.msra.mxu0 0.0
        %819 = vmatprep.mubr.f32.mxu0 0.0
        %820 = vmatmul.mubr.f32.gmra.mrb[0].mxu0 %v740
        %v821 = vpop.f32.mrb[0].mxu0
        %v822 = vadd.f32 %v737, %v821
        %v823 = vpop.f32.mrb[0].mxu0
        %824 = vmatprep.mubr.f32.mxu0 0.0
        %825 = vmatmul.mubr.f32.gmra.mrb[0].mxu0 %v743
        %v826 = vpop.f32.mrb[0].mxu0
        %v827 = vadd.f32 %v737, %v826
        %v828 = vpop.f32.mrb[0].mxu0
        %829 = vmatprep.mubr.f32.mxu0 0.0
        %830 = vmatmul.mubr.f32.gmra.mrb[0].mxu0 %v746
        %v831 = vpop.f32.mrb[0].mxu0
        %v832 = vadd.f32 %v737, %v831
        %v833 = vpop.f32.mrb[0].mxu0
        %834 = vmatprep.mubr.f32.mxu0 0.0
        %835 = vmatmul.mubr.f32.gmra.mrb[0].mxu0 %v749
        %v836 = vpop.f32.mrb[0].mxu0
        %v837 = vadd.f32 %v737, %v836
        %v838 = vpop.f32.mrb[0].mxu0
        %839 = vdwg.mxu0
        %vm840 = vcmp.ge.f32.partialorder %v822, 0.0
        %vm841 = vcmp.ge.f32.partialorder %v827, 0.0
        %vm842 = vcmp.ge.f32.partialorder %v832, 0.0
        %vm843 = vcmp.ge.f32.partialorder %v837, 0.0
        %v844 = vlaneseq
        %v845 = vshrl.u32 %v844, 7
        %v846 = vsub.s32 1, %v845
        %v847 = vrot.slane %v629, %v846
        %v848 = vmul.f32 %v847, %v822
        %v849 = vmul.f32 %v847, %v827
        %v850 = vmul.f32 %v847, %v832
        %v851 = vmul.f32 %v847, %v837
        %v852 = vsel %vm840, %v822, %v848
        %v853 = vsel %vm841, %v827, %v849
        %v854 = vsel %vm842, %v832, %v850
        %v855 = vsel %vm843, %v837, %v851
        %856 = vmatprep.subr.mxu0 0.0
        %857 = vmatpush1.msra.mxu0 %v852
        %858 = vmatprep.subr.mxu0 0.0
        %859 = vmatpush1.msra.mxu0 %v853
        %860 = vmatprep.subr.mxu0 0.0
        %861 = vmatpush1.msra.mxu0 %v854
        %862 = vmatprep.subr.mxu0 0.0
        %863 = vmatpush1.msra.mxu0 %v855
        %864 = vmatprep.subr.mxu0 0.0
        %865 = vmatpush1.msra.mxu0 0.0
        %866 = vmatprep.subr.mxu0 0.0
        %867 = vmatpush1.msra.mxu0 0.0
        %868 = vmatprep.subr.mxu0 0.0
        %869 = vmatpush1.msra.mxu0 0.0
        %870 = vmatprep.subr.mxu0 0.0
        %871 = vmatpush1.msra.mxu0 0.0
        %872 = vmatprep.subr.mxu0 0.0
        %873 = vmatpush1.msra.mxu0 0.0
        %874 = vmatprep.subr.mxu0 0.0
        %875 = vmatpush1.msra.mxu0 0.0
        %876 = vmatprep.subr.mxu0 0.0
        %877 = vmatpush1.msra.mxu0 0.0
        %878 = vmatprep.subr.mxu0 0.0
        %879 = vmatpush1.msra.mxu0 0.0
        %880 = vmatprep.subr.mxu0 0.0
        %881 = vmatpush1.msra.mxu0 0.0
        %882 = vmatprep.subr.mxu0 0.0
        %883 = vmatpush1.msra.mxu0 0.0
        %884 = vmatprep.subr.mxu0 0.0
        %885 = vmatpush1.msra.mxu0 0.0
        %886 = vmatprep.subr.mxu0 0.0
        %887 = vmatpush1.msra.mxu0 0.0
        %888 = vmatprep.subr.mxu0 0.0
        %889 = vmatpush1.msra.mxu0 0.0
        %890 = vmatprep.subr.mxu0 0.0
        %891 = vmatpush1.msra.mxu0 0.0
        %892 = vmatprep.subr.mxu0 0.0
        %893 = vmatpush1.msra.mxu0 0.0
        %894 = vmatprep.subr.mxu0 0.0
        %895 = vmatpush1.msra.mxu0 0.0
        %896 = vmatprep.subr.mxu0 0.0
        %897 = vmatpush1.msra.mxu0 0.0
        %898 = vmatprep.subr.mxu0 0.0
        %899 = vmatpush1.msra.mxu0 0.0
        %900 = vmatprep.subr.mxu0 0.0
        %901 = vmatpush1.msra.mxu0 0.0
        %902 = vmatprep.subr.mxu0 0.0
        %903 = vmatpush1.msra.mxu0 0.0
        %904 = vmatprep.subr.mxu0 0.0
        %905 = vmatpush1.msra.mxu0 0.0
        %906 = vmatprep.subr.mxu0 0.0
        %907 = vmatpush1.msra.mxu0 0.0
        %908 = vmatprep.subr.mxu0 0.0
        %909 = vmatpush1.msra.mxu0 0.0
        %910 = vmatprep.subr.mxu0 0.0
        %911 = vmatpush1.msra.mxu0 0.0
        %912 = vmatprep.subr.mxu0 0.0
        %913 = vmatpush1.msra.mxu0 0.0
        %914 = vmatprep.subr.mxu0 0.0
        %915 = vmatpush1.msra.mxu0 0.0
        %916 = vmatprep.subr.mxu0 0.0
        %917 = vmatpush1.msra.mxu0 0.0
        %918 = vmatprep.subr.mxu0 0.0
        %919 = vmatpush1.msra.mxu0 0.0
        %920 = vmatprep.mubr.f32.mxu0 0.0
        %921 = vmatmul.mubr.f32.gmra.mrb[0].mxu0 %v638
        %v922 = vpop.f32.mrb[0].mxu0
        %v923 = vadd.f32 0.0, %v922
        %v924 = vpop.f32.mrb[0].mxu0
        %925 = vmatprep.mubr.f32.mxu0 0.0
        %926 = vmatmul.mubr.f32.gmra.mrb[0].mxu0 %v641
        %v927 = vpop.f32.mrb[0].mxu0
        %v928 = vadd.f32 0.0, %v927
        %v929 = vpop.f32.mrb[0].mxu0
        %930 = vmatprep.mubr.f32.mxu0 0.0
        %931 = vmatmul.mubr.f32.gmra.mrb[0].mxu0 %v644
        %v932 = vpop.f32.mrb[0].mxu0
        %v933 = vadd.f32 0.0, %v932
        %v934 = vpop.f32.mrb[0].mxu0
        %935 = vmatprep.mubr.f32.mxu0 0.0
        %936 = vmatmul.mubr.f32.gmra.mrb[0].mxu0 %v647
        %v937 = vpop.f32.mrb[0].mxu0
        %v938 = vadd.f32 0.0, %v937
        %v939 = vpop.f32.mrb[0].mxu0
        %940 = vdwg.mxu0
        %v942 = vlaneseq
        %v943 = vshrl.u32 %v942, 7
        %v944 = vsub.s32 0, %v943
        %v945 = vrot.slane %v636, %v944
        %v946 = vlaneseq
        %v947 = vshrl.u32 %v946, 7
        %v948 = vsub.s32 2, %v947
        %v949 = vrot.slane %v636, %v948
        %v952 = vlaneseq
        %v953 = vshrl.u32 %v952, 7
        %v954 = vsub.s32 0, %v953
        %v955 = vrot.slane %v945, %v954
        %v956 = vlaneseq
        %v957 = vshrl.u32 %v956, 7
        %v958 = vsub.s32 0, %v957
        %v959 = vrot.slane %v949, %v958
        %vm960 = vcmask 195584
        %v962 = vsel %vm960, %v923, 0
        %v965 = vsel %vm960, %v928, 0
        %v968 = vsel %vm960, %v933, 0
        %v971 = vsel %vm960, %v938, 0
        %973 = vmatprep.subr.mxu0 %v631
        %974 = vmatpush1.msra.mxu0 %v630
        %975 = vmatprep.subr.mxu0 %v633
        %976 = vmatpush1.msra.mxu0 %v632
        %977 = vmatprep.subr.mxu0 %v635
        %978 = vmatpush1.msra.mxu0 %v634
        %979 = vmatprep.subr.mxu0 0.0
        %980 = vmatpush1.msra.mxu0 0.0
        %981 = vmatprep.subr.mxu0 0.0
        %982 = vmatpush1.msra.mxu0 0.0
        %983 = vmatprep.subr.mxu0 0.0
        %984 = vmatpush1.msra.mxu0 0.0
        %985 = vmatprep.subr.mxu0 0.0
        %986 = vmatpush1.msra.mxu0 0.0
        %987 = vmatprep.subr.mxu0 0.0
        %988 = vmatpush1.msra.mxu0 0.0
        %989 = vmatprep.subr.mxu0 0.0
        %990 = vmatpush1.msra.mxu0 0.0
        %991 = vmatprep.subr.mxu0 0.0
        %992 = vmatpush1.msra.mxu0 0.0
        %993 = vmatprep.subr.mxu0 0.0
        %994 = vmatpush1.msra.mxu0 0.0
        %995 = vmatprep.subr.mxu0 0.0
        %996 = vmatpush1.msra.mxu0 0.0
        %997 = vmatprep.subr.mxu0 0.0
        %998 = vmatpush1.msra.mxu0 0.0
        %999 = vmatprep.subr.mxu0 0.0
        %1000 = vmatpush1.msra.mxu0 0.0
        %1001 = vmatprep.subr.mxu0 0.0
        %1002 = vmatpush1.msra.mxu0 0.0
        %1003 = vmatprep.subr.mxu0 0.0
        %1004 = vmatpush1.msra.mxu0 0.0
        %1005 = vmatprep.subr.mxu0 0.0
        %1006 = vmatpush1.msra.mxu0 0.0
        %1007 = vmatprep.subr.mxu0 0.0
        %1008 = vmatpush1.msra.mxu0 0.0
        %1009 = vmatprep.subr.mxu0 0.0
        %1010 = vmatpush1.msra.mxu0 0.0
        %1011 = vmatprep.subr.mxu0 0.0
        %1012 = vmatpush1.msra.mxu0 0.0
        %1013 = vmatprep.subr.mxu0 0.0
        %1014 = vmatpush1.msra.mxu0 0.0
        %1015 = vmatprep.subr.mxu0 0.0
        %1016 = vmatpush1.msra.mxu0 0.0
        %1017 = vmatprep.subr.mxu0 0.0
        %1018 = vmatpush1.msra.mxu0 0.0
        %1019 = vmatprep.subr.mxu0 0.0
        %1020 = vmatpush1.msra.mxu0 0.0
        %1021 = vmatprep.subr.mxu0 0.0
        %1022 = vmatpush1.msra.mxu0 0.0
        %1023 = vmatprep.subr.mxu0 0.0
        %1024 = vmatpush1.msra.mxu0 0.0
        %1025 = vmatprep.subr.mxu0 0.0
        %1026 = vmatpush1.msra.mxu0 0.0
        %1027 = vmatprep.subr.mxu0 0.0
        %1028 = vmatpush1.msra.mxu0 0.0
        %1029 = vmatprep.subr.mxu0 0.0
        %1030 = vmatpush1.msra.mxu0 0.0
        %1031 = vmatprep.subr.mxu0 0.0
        %1032 = vmatpush1.msra.mxu0 0.0
        %1033 = vmatprep.subr.mxu0 0.0
        %1034 = vmatpush1.msra.mxu0 0.0
        %1035 = vmatprep.subr.mxu0 0.0
        %1036 = vmatpush1.msra.mxu0 0.0
        %1037 = vmatprep.mubr.f32.mxu0 0.0
        %1038 = vmatmul.mubr.f32.gmra.mrb[0].mxu0 %v962
        %v1039 = vpop.f32.mrb[0].mxu0
        %v1040 = vadd.f32 %v955, %v1039
        %v1041 = vpop.f32.mrb[0].mxu0
        %v1042 = vadd.f32 %v959, %v1041
        %1043 = vmatprep.mubr.f32.mxu0 0.0
        %1044 = vmatmul.mubr.f32.gmra.mrb[0].mxu0 %v965
        %v1045 = vpop.f32.mrb[0].mxu0
        %v1046 = vadd.f32 %v955, %v1045
        %v1047 = vpop.f32.mrb[0].mxu0
        %v1048 = vadd.f32 %v959, %v1047
        %1049 = vmatprep.mubr.f32.mxu0 0.0
        %1050 = vmatmul.mubr.f32.gmra.mrb[0].mxu0 %v968
        %v1051 = vpop.f32.mrb[0].mxu0
        %v1052 = vadd.f32 %v955, %v1051
        %v1053 = vpop.f32.mrb[0].mxu0
        %v1054 = vadd.f32 %v959, %v1053
        %1055 = vmatprep.mubr.f32.mxu0 0.0
        %1056 = vmatmul.mubr.f32.gmra.mrb[0].mxu0 %v971
        %v1057 = vpop.f32.mrb[0].mxu0
        %v1058 = vadd.f32 %v955, %v1057
        %v1059 = vpop.f32.mrb[0].mxu0
        %v1060 = vadd.f32 %v959, %v1059
        %1061 = vdwg.mxu0
        %vm1062 = vcmp.ge.f32.partialorder %v1040, 0.0
        %vm1063 = vcmp.ge.f32.partialorder %v1042, 0.0
        %vm1064 = vcmp.ge.f32.partialorder %v1046, 0.0
        %vm1065 = vcmp.ge.f32.partialorder %v1048, 0.0
        %vm1066 = vcmp.ge.f32.partialorder %v1052, 0.0
        %vm1067 = vcmp.ge.f32.partialorder %v1054, 0.0
        %vm1068 = vcmp.ge.f32.partialorder %v1058, 0.0
        %vm1069 = vcmp.ge.f32.partialorder %v1060, 0.0
        %v1070 = vlaneseq
        %v1071 = vshrl.u32 %v1070, 7
        %v1072 = vsub.s32 1, %v1071
        %v1073 = vrot.slane %v636, %v1072
        %v1074 = vlaneseq
        %v1075 = vshrl.u32 %v1074, 7
        %v1076 = vsub.s32 3, %v1075
        %v1077 = vrot.slane %v636, %v1076
        %v1080 = vlaneseq
        %v1081 = vshrl.u32 %v1080, 7
        %v1082 = vsub.s32 1, %v1081
        %v1083 = vrot.slane %v1073, %v1082
        %v1084 = vlaneseq
        %v1085 = vshrl.u32 %v1084, 7
        %v1086 = vsub.s32 1, %v1085
        %v1087 = vrot.slane %v1077, %v1086
        %v1088 = vmul.f32 %v1083, %v1040
        %v1089 = vmul.f32 %v1087, %v1042
        %v1090 = vmul.f32 %v1083, %v1046
        %v1091 = vmul.f32 %v1087, %v1048
        %v1092 = vmul.f32 %v1083, %v1052
        %v1093 = vmul.f32 %v1087, %v1054
        %v1094 = vmul.f32 %v1083, %v1058
        %v1095 = vmul.f32 %v1087, %v1060
        %v1096 = vsel %vm1062, %v1040, %v1088
        %v1097 = vsel %vm1063, %v1042, %v1089
        %v1098 = vsel %vm1064, %v1046, %v1090
        %v1099 = vsel %vm1065, %v1048, %v1091
        %v1100 = vsel %vm1066, %v1052, %v1092
        %v1101 = vsel %vm1067, %v1054, %v1093
        %v1102 = vsel %vm1068, %v1058, %v1094
        %v1103 = vsel %vm1069, %v1060, %v1095
        %vm1104 = vcmask 523264
        %v1105 = vsel %vm1104, %v1096, -inf
        %1106 = vmax.xlane.f32.xlu0 %v1105
        %v1107 = vpop.xlane.xlu0 %1106
        %v1108 = vsel %vm1104, %v1098, -inf
        %1109 = vmax.xlane.f32.xlu0 %v1108
        %v1110 = vpop.xlane.xlu0 %1109
        %v1111 = vsel %vm1104, %v1100, -inf
        %1112 = vmax.xlane.f32.xlu0 %v1111
        %v1113 = vpop.xlane.xlu0 %1112
        %v1114 = vsel %vm1104, %v1102, -inf
        %1115 = vmax.xlane.f32.xlu0 %v1114
        %v1116 = vpop.xlane.xlu0 %1115
        %v1117 = vsub.f32 %v1096, %v1107
        %v1118 = vsub.f32 %v1098, %v1110
        %v1119 = vsub.f32 %v1100, %v1113
        %v1120 = vsub.f32 %v1102, %v1116
        %v1121 = vmul.f32 %v1117, 1.442695
        %v1122 = vpow.pop %v1121
        %v1123 = vmul.f32 %v1118, 1.442695
        %v1124 = vpow.pop %v1123
        %v1125 = vmul.f32 %v1119, 1.442695
        %v1126 = vpow.pop %v1125
        %v1127 = vmul.f32 %v1120, 1.442695
        %v1128 = vpow.pop %v1127
        %v1129 = vsel %vm1104, %v1122, 0.0
        %1130 = vadd.xlane.f32.xlu0 %v1129
        %v1131 = vpop.xlane.xlu0 %1130
        %v1132 = vsel %vm1104, %v1124, 0.0
        %1133 = vadd.xlane.f32.xlu0 %v1132
        %v1134 = vpop.xlane.xlu0 %1133
        %v1135 = vsel %vm1104, %v1126, 0.0
        %1136 = vadd.xlane.f32.xlu0 %v1135
        %v1137 = vpop.xlane.xlu0 %1136
        %v1138 = vsel %vm1104, %v1128, 0.0
        %1139 = vadd.xlane.f32.xlu0 %v1138
        %v1140 = vpop.xlane.xlu0 %1139
        %v1141 = vrcp.pop %v1131
        %v1142 = vrcp.pop %v1134
        %v1143 = vrcp.pop %v1137
        %v1144 = vrcp.pop %v1140
        %v1145 = vmul.f32 %v1122, %v1141
        %v1146 = vmul.f32 %v1124, %v1142
        %v1147 = vmul.f32 %v1126, %v1143
        %v1148 = vmul.f32 %v1128, %v1144
        %1149 = vxpose.xlu0.b32.start [1/16] %v1145, 128
        %1150 = vxpose.xlu0.b32.cont [2/16] %v1146, 128
        %1151 = vxpose.xlu0.b32.cont [3/16] %v1147, 128
        %1152 = vxpose.xlu0.b32.cont [4/16] %v1148, 128
        %1153 = vxpose.xlu0.b32.cont [5/16] 0.0, 128
        %1154 = vxpose.xlu0.b32.cont [6/16] 0.0, 128
        %1155 = vxpose.xlu0.b32.cont [7/16] 0.0, 128
        %1156 = vxpose.xlu0.b32.cont [8/16] 0.0, 128
        %1157 = vxpose.xlu0.b32.cont [9/16] 0.0, 128
        %1158 = vxpose.xlu0.b32.cont [10/16] 0.0, 128
        %1159 = vxpose.xlu0.b32.cont [11/16] 0.0, 128
        %1160 = vxpose.xlu0.b32.cont [12/16] 0.0, 128
        %1161 = vxpose.xlu0.b32.cont [13/16] 0.0, 128
        %1162 = vxpose.xlu0.b32.cont [14/16] 0.0, 128
        %1163 = vxpose.xlu0.b32.cont [15/16] 0.0, 128
        %1164 = vxpose.xlu0.b32.end [16/16] 0.0, 128
        %v1165 = vpop.trf.xlu0
        %v1166 = vpop.trf.xlu0
        %v1167 = vpop.trf.xlu0
        %v1168 = vpop.trf.xlu0
        %v1169 = vpop.trf.xlu0
        %v1170 = vpop.trf.xlu0
        %v1171 = vpop.trf.xlu0
        %v1172 = vpop.trf.xlu0
        %v1173 = vpop.trf.xlu0
        %v1174 = vpop.trf.xlu0
        %v1175 = vpop.trf.xlu0
        %v1176 = vpop.trf.xlu0
        %v1177 = vpop.trf.xlu0
        %v1178 = vpop.trf.xlu0
        %v1179 = vpop.trf.xlu0
        %v1180 = vpop.trf.xlu0
        %v1182 = vsel %vm588, %v1165, 0
        %v1185 = vsel %vm588, %v1166, 0
        %v1188 = vsel %vm588, %v1167, 0
        %v1191 = vsel %vm588, %v1168, 0
        %v1194 = vsel %vm588, %v1169, 0
        %v1197 = vsel %vm588, %v1170, 0
        %v1200 = vsel %vm588, %v1171, 0
        %v1203 = vsel %vm588, %v1172, 0
        %1205 = vmatprep.subr.mxu0 0.0
        %1206 = vmatpush1.msra.mxu0 %v1097
        %1207 = vmatprep.subr.mxu0 0.0
        %1208 = vmatpush1.msra.mxu0 %v1099
        %1209 = vmatprep.subr.mxu0 0.0
        %1210 = vmatpush1.msra.mxu0 %v1101
        %1211 = vmatprep.subr.mxu0 0.0
        %1212 = vmatpush1.msra.mxu0 %v1103
        %1213 = vmatprep.subr.mxu0 0.0
        %1214 = vmatpush1.msra.mxu0 0.0
        %1215 = vmatprep.subr.mxu0 0.0
        %1216 = vmatpush1.msra.mxu0 0.0
        %1217 = vmatprep.subr.mxu0 0.0
        %1218 = vmatpush1.msra.mxu0 0.0
        %1219 = vmatprep.subr.mxu0 0.0
        %1220 = vmatpush1.msra.mxu0 0.0
        %1221 = vmatprep.subr.mxu0 0.0
        %1222 = vmatpush1.msra.mxu0 0.0
        %1223 = vmatprep.subr.mxu0 0.0
        %1224 = vmatpush1.msra.mxu0 0.0
        %1225 = vmatprep.subr.mxu0 0.0
        %1226 = vmatpush1.msra.mxu0 0.0
        %1227 = vmatprep.subr.mxu0 0.0
        %1228 = vmatpush1.msra.mxu0 0.0
        %1229 = vmatprep.subr.mxu0 0.0
        %1230 = vmatpush1.msra.mxu0 0.0
        %1231 = vmatprep.subr.mxu0 0.0
        %1232 = vmatpush1.msra.mxu0 0.0
        %1233 = vmatprep.subr.mxu0 0.0
        %1234 = vmatpush1.msra.mxu0 0.0
        %1235 = vmatprep.subr.mxu0 0.0
        %1236 = vmatpush1.msra.mxu0 0.0
        %1237 = vmatprep.subr.mxu0 0.0
        %1238 = vmatpush1.msra.mxu0 0.0
        %1239 = vmatprep.subr.mxu0 0.0
        %1240 = vmatpush1.msra.mxu0 0.0
        %1241 = vmatprep.subr.mxu0 0.0
        %1242 = vmatpush1.msra.mxu0 0.0
        %1243 = vmatprep.subr.mxu0 0.0
        %1244 = vmatpush1.msra.mxu0 0.0
        %1245 = vmatprep.subr.mxu0 0.0
        %1246 = vmatpush1.msra.mxu0 0.0
        %1247 = vmatprep.subr.mxu0 0.0
        %1248 = vmatpush1.msra.mxu0 0.0
        %1249 = vmatprep.subr.mxu0 0.0
        %1250 = vmatpush1.msra.mxu0 0.0
        %1251 = vmatprep.subr.mxu0 0.0
        %1252 = vmatpush1.msra.mxu0 0.0
        %1253 = vmatprep.subr.mxu0 0.0
        %1254 = vmatpush1.msra.mxu0 0.0
        %1255 = vmatprep.subr.mxu0 0.0
        %1256 = vmatpush1.msra.mxu0 0.0
        %1257 = vmatprep.subr.mxu0 0.0
        %1258 = vmatpush1.msra.mxu0 0.0
        %1259 = vmatprep.subr.mxu0 0.0
        %1260 = vmatpush1.msra.mxu0 0.0
        %1261 = vmatprep.subr.mxu0 0.0
        %1262 = vmatpush1.msra.mxu0 0.0
        %1263 = vmatprep.subr.mxu0 0.0
        %1264 = vmatpush1.msra.mxu0 0.0
        %1265 = vmatprep.subr.mxu0 0.0
        %1266 = vmatpush1.msra.mxu0 0.0
        %1267 = vmatprep.subr.mxu0 0.0
        %1268 = vmatpush1.msra.mxu0 0.0
        %1269 = vmatprep.mubr.f32.mxu0 0.0
        %1270 = vmatmul.mubr.f32.gmra.mrb[0].mxu0 %v1182
        %v1271 = vpop.f32.mrb[0].mxu0
        %v1272 = vadd.f32 0.0, %v1271
        %v1273 = vpop.f32.mrb[0].mxu0
        %1274 = vmatprep.mubr.f32.mxu0 0.0
        %1275 = vmatmul.mubr.f32.gmra.mrb[0].mxu0 %v1185
        %v1276 = vpop.f32.mrb[0].mxu0
        %v1277 = vadd.f32 0.0, %v1276
        %v1278 = vpop.f32.mrb[0].mxu0
        %1279 = vmatprep.mubr.f32.mxu0 0.0
        %1280 = vmatmul.mubr.f32.gmra.mrb[0].mxu0 %v1188
        %v1281 = vpop.f32.mrb[0].mxu0
        %v1282 = vadd.f32 0.0, %v1281
        %v1283 = vpop.f32.mrb[0].mxu0
        %1284 = vmatprep.mubr.f32.mxu0 0.0
        %1285 = vmatmul.mubr.f32.gmra.mrb[0].mxu0 %v1191
        %v1286 = vpop.f32.mrb[0].mxu0
        %v1287 = vadd.f32 0.0, %v1286
        %v1288 = vpop.f32.mrb[0].mxu0
        %1289 = vmatprep.mubr.f32.mxu0 0.0
        %1290 = vmatmul.mubr.f32.gmra.mrb[0].mxu0 %v1194
        %v1291 = vpop.f32.mrb[0].mxu0
        %v1292 = vadd.f32 0.0, %v1291
        %v1293 = vpop.f32.mrb[0].mxu0
        %1294 = vmatprep.mubr.f32.mxu0 0.0
        %1295 = vmatmul.mubr.f32.gmra.mrb[0].mxu0 %v1197
        %v1296 = vpop.f32.mrb[0].mxu0
        %v1297 = vadd.f32 0.0, %v1296
        %v1298 = vpop.f32.mrb[0].mxu0
        %1299 = vmatprep.mubr.f32.mxu0 0.0
        %1300 = vmatmul.mubr.f32.gmra.mrb[0].mxu0 %v1200
        %v1301 = vpop.f32.mrb[0].mxu0
        %v1302 = vadd.f32 0.0, %v1301
        %v1303 = vpop.f32.mrb[0].mxu0
        %1304 = vmatprep.mubr.f32.mxu0 0.0
        %1305 = vmatmul.mubr.f32.gmra.mrb[0].mxu0 %v1203
        %v1306 = vpop.f32.mrb[0].mxu0
        %v1307 = vadd.f32 0.0, %v1306
        %v1308 = vpop.f32.mrb[0].mxu0
        %1309 = vdwg.mxu0
        %1310 = vmatprep.subr.mxu0 0.0
        %1311 = vmatpush1.msra.mxu0 %v569
        %1312 = vmatprep.subr.mxu0 0.0
        %1313 = vmatpush1.msra.mxu0 %v570
        %1314 = vmatprep.subr.mxu0 0.0
        %1315 = vmatpush1.msra.mxu0 %v571
        %1316 = vmatprep.subr.mxu0 0.0
        %1317 = vmatpush1.msra.mxu0 %v572
        %1318 = vmatprep.subr.mxu0 0.0
        %1319 = vmatpush1.msra.mxu0 0.0
        %1320 = vmatprep.subr.mxu0 0.0
        %1321 = vmatpush1.msra.mxu0 0.0
        %1322 = vmatprep.subr.mxu0 0.0
        %1323 = vmatpush1.msra.mxu0 0.0
        %1324 = vmatprep.subr.mxu0 0.0
        %1325 = vmatpush1.msra.mxu0 0.0
        %1326 = vmatprep.subr.mxu0 0.0
        %1327 = vmatpush1.msra.mxu0 0.0
        %1328 = vmatprep.subr.mxu0 0.0
        %1329 = vmatpush1.msra.mxu0 0.0
        %1330 = vmatprep.subr.mxu0 0.0
        %1331 = vmatpush1.msra.mxu0 0.0
        %1332 = vmatprep.subr.mxu0 0.0
        %1333 = vmatpush1.msra.mxu0 0.0
        %1334 = vmatprep.subr.mxu0 0.0
        %1335 = vmatpush1.msra.mxu0 0.0
        %1336 = vmatprep.subr.mxu0 0.0
        %1337 = vmatpush1.msra.mxu0 0.0
        %1338 = vmatprep.subr.mxu0 0.0
        %1339 = vmatpush1.msra.mxu0 0.0
        %1340 = vmatprep.subr.mxu0 0.0
        %1341 = vmatpush1.msra.mxu0 0.0
        %1342 = vmatprep.subr.mxu0 0.0
        %1343 = vmatpush1.msra.mxu0 0.0
        %1344 = vmatprep.subr.mxu0 0.0
        %1345 = vmatpush1.msra.mxu0 0.0
        %1346 = vmatprep.subr.mxu0 0.0
        %1347 = vmatpush1.msra.mxu0 0.0
        %1348 = vmatprep.subr.mxu0 0.0
        %1349 = vmatpush1.msra.mxu0 0.0
        %1350 = vmatprep.subr.mxu0 0.0
        %1351 = vmatpush1.msra.mxu0 0.0
        %1352 = vmatprep.subr.mxu0 0.0
        %1353 = vmatpush1.msra.mxu0 0.0
        %1354 = vmatprep.subr.mxu0 0.0
        %1355 = vmatpush1.msra.mxu0 0.0
        %1356 = vmatprep.subr.mxu0 0.0
        %1357 = vmatpush1.msra.mxu0 0.0
        %1358 = vmatprep.subr.mxu0 0.0
        %1359 = vmatpush1.msra.mxu0 0.0
        %1360 = vmatprep.subr.mxu0 0.0
        %1361 = vmatpush1.msra.mxu0 0.0
        %1362 = vmatprep.subr.mxu0 0.0
        %1363 = vmatpush1.msra.mxu0 0.0
        %1364 = vmatprep.subr.mxu0 0.0
        %1365 = vmatpush1.msra.mxu0 0.0
        %1366 = vmatprep.subr.mxu0 0.0
        %1367 = vmatpush1.msra.mxu0 0.0
        %1368 = vmatprep.subr.mxu0 0.0
        %1369 = vmatpush1.msra.mxu0 0.0
        %1370 = vmatprep.subr.mxu0 0.0
        %1371 = vmatpush1.msra.mxu0 0.0
        %1372 = vmatprep.subr.mxu0 0.0
        %1373 = vmatpush1.msra.mxu0 0.0
        %1374 = vmatprep.mubr.f32.mxu0 0.0
        %1375 = vmatmul.mubr.f32.gmra.mrb[0].mxu0 %v1182
        %v1376 = vpop.f32.mrb[0].mxu0
        %v1377 = vadd.f32 0.0, %v1376
        %v1378 = vpop.f32.mrb[0].mxu0
        %1379 = vmatprep.mubr.f32.mxu0 0.0
        %1380 = vmatmul.mubr.f32.gmra.mrb[0].mxu0 %v1185
        %v1381 = vpop.f32.mrb[0].mxu0
        %v1382 = vadd.f32 0.0, %v1381
        %v1383 = vpop.f32.mrb[0].mxu0
        %1384 = vmatprep.mubr.f32.mxu0 0.0
        %1385 = vmatmul.mubr.f32.gmra.mrb[0].mxu0 %v1188
        %v1386 = vpop.f32.mrb[0].mxu0
        %v1387 = vadd.f32 0.0, %v1386
        %v1388 = vpop.f32.mrb[0].mxu0
        %1389 = vmatprep.mubr.f32.mxu0 0.0
        %1390 = vmatmul.mubr.f32.gmra.mrb[0].mxu0 %v1191
        %v1391 = vpop.f32.mrb[0].mxu0
        %v1392 = vadd.f32 0.0, %v1391
        %v1393 = vpop.f32.mrb[0].mxu0
        %1394 = vmatprep.mubr.f32.mxu0 0.0
        %1395 = vmatmul.mubr.f32.gmra.mrb[0].mxu0 %v1194
        %v1396 = vpop.f32.mrb[0].mxu0
        %v1397 = vadd.f32 0.0, %v1396
        %v1398 = vpop.f32.mrb[0].mxu0
        %1399 = vmatprep.mubr.f32.mxu0 0.0
        %1400 = vmatmul.mubr.f32.gmra.mrb[0].mxu0 %v1197
        %v1401 = vpop.f32.mrb[0].mxu0
        %v1402 = vadd.f32 0.0, %v1401
        %v1403 = vpop.f32.mrb[0].mxu0
        %1404 = vmatprep.mubr.f32.mxu0 0.0
        %1405 = vmatmul.mubr.f32.gmra.mrb[0].mxu0 %v1200
        %v1406 = vpop.f32.mrb[0].mxu0
        %v1407 = vadd.f32 0.0, %v1406
        %v1408 = vpop.f32.mrb[0].mxu0
        %1409 = vmatprep.mubr.f32.mxu0 0.0
        %1410 = vmatmul.mubr.f32.gmra.mrb[0].mxu0 %v1203
        %v1411 = vpop.f32.mrb[0].mxu0
        %v1412 = vadd.f32 0.0, %v1411
        %v1413 = vpop.f32.mrb[0].mxu0
        %1414 = vdwg.mxu0
        %v1416 = vsel %vm588, %v1377, 0
        %v1419 = vsel %vm588, %v1382, 0
        %v1422 = vsel %vm588, %v1387, 0
        %v1425 = vsel %vm588, %v1392, 0
        %v1428 = vsel %vm588, %v1397, 0
        %v1431 = vsel %vm588, %v1402, 0
        %v1434 = vsel %vm588, %v1407, 0
        %v1437 = vsel %vm588, %v1412, 0
        %1439 = vmatprep.subr.mxu0 0.0
        %1440 = vmatpush1.msra.mxu0 %v1145
        %1441 = vmatprep.subr.mxu0 0.0
        %1442 = vmatpush1.msra.mxu0 %v1146
        %1443 = vmatprep.subr.mxu0 0.0
        %1444 = vmatpush1.msra.mxu0 %v1147
        %1445 = vmatprep.subr.mxu0 0.0
        %1446 = vmatpush1.msra.mxu0 %v1148
        %1447 = vmatprep.subr.mxu0 0.0
        %1448 = vmatpush1.msra.mxu0 0.0
        %1449 = vmatprep.subr.mxu0 0.0
        %1450 = vmatpush1.msra.mxu0 0.0
        %1451 = vmatprep.subr.mxu0 0.0
        %1452 = vmatpush1.msra.mxu0 0.0
        %1453 = vmatprep.subr.mxu0 0.0
        %1454 = vmatpush1.msra.mxu0 0.0
        %1455 = vmatprep.subr.mxu0 0.0
        %1456 = vmatpush1.msra.mxu0 0.0
        %1457 = vmatprep.subr.mxu0 0.0
        %1458 = vmatpush1.msra.mxu0 0.0
        %1459 = vmatprep.subr.mxu0 0.0
        %1460 = vmatpush1.msra.mxu0 0.0
        %1461 = vmatprep.subr.mxu0 0.0
        %1462 = vmatpush1.msra.mxu0 0.0
        %1463 = vmatprep.subr.mxu0 0.0
        %1464 = vmatpush1.msra.mxu0 0.0
        %1465 = vmatprep.subr.mxu0 0.0
        %1466 = vmatpush1.msra.mxu0 0.0
        %1467 = vmatprep.subr.mxu0 0.0
        %1468 = vmatpush1.msra.mxu0 0.0
        %1469 = vmatprep.subr.mxu0 0.0
        %1470 = vmatpush1.msra.mxu0 0.0
        %1471 = vmatprep.subr.mxu0 0.0
        %1472 = vmatpush1.msra.mxu0 0.0
        %1473 = vmatprep.subr.mxu0 0.0
        %1474 = vmatpush1.msra.mxu0 0.0
        %1475 = vmatprep.subr.mxu0 0.0
        %1476 = vmatpush1.msra.mxu0 0.0
        %1477 = vmatprep.subr.mxu0 0.0
        %1478 = vmatpush1.msra.mxu0 0.0
        %1479 = vmatprep.subr.mxu0 0.0
        %1480 = vmatpush1.msra.mxu0 0.0
        %1481 = vmatprep.subr.mxu0 0.0
        %1482 = vmatpush1.msra.mxu0 0.0
        %1483 = vmatprep.subr.mxu0 0.0
        %1484 = vmatpush1.msra.mxu0 0.0
        %1485 = vmatprep.subr.mxu0 0.0
        %1486 = vmatpush1.msra.mxu0 0.0
        %1487 = vmatprep.subr.mxu0 0.0
        %1488 = vmatpush1.msra.mxu0 0.0
        %1489 = vmatprep.subr.mxu0 0.0
        %1490 = vmatpush1.msra.mxu0 0.0
        %1491 = vmatprep.subr.mxu0 0.0
        %1492 = vmatpush1.msra.mxu0 0.0
        %1493 = vmatprep.subr.mxu0 0.0
        %1494 = vmatpush1.msra.mxu0 0.0
        %1495 = vmatprep.subr.mxu0 0.0
        %1496 = vmatpush1.msra.mxu0 0.0
        %1497 = vmatprep.subr.mxu0 0.0
        %1498 = vmatpush1.msra.mxu0 0.0
        %1499 = vmatprep.subr.mxu0 0.0
        %1500 = vmatpush1.msra.mxu0 0.0
        %1501 = vmatprep.subr.mxu0 0.0
        %1502 = vmatpush1.msra.mxu0 0.0
        %1503 = vmatprep.mubr.f32.mxu0 0.0
        %1504 = vmatmul.mubr.f32.gmra.mrb[0].mxu0 %v1416
        %v1505 = vpop.f32.mrb[0].mxu0
        %v1506 = vadd.f32 0.0, %v1505
        %v1507 = vpop.f32.mrb[0].mxu0
        %1508 = vmatprep.mubr.f32.mxu0 0.0
        %1509 = vmatmul.mubr.f32.gmra.mrb[0].mxu0 %v1419
        %v1510 = vpop.f32.mrb[0].mxu0
        %v1511 = vadd.f32 0.0, %v1510
        %v1512 = vpop.f32.mrb[0].mxu0
        %1513 = vmatprep.mubr.f32.mxu0 0.0
        %1514 = vmatmul.mubr.f32.gmra.mrb[0].mxu0 %v1422
        %v1515 = vpop.f32.mrb[0].mxu0
        %v1516 = vadd.f32 0.0, %v1515
        %v1517 = vpop.f32.mrb[0].mxu0
        %1518 = vmatprep.mubr.f32.mxu0 0.0
        %1519 = vmatmul.mubr.f32.gmra.mrb[0].mxu0 %v1425
        %v1520 = vpop.f32.mrb[0].mxu0
        %v1521 = vadd.f32 0.0, %v1520
        %v1522 = vpop.f32.mrb[0].mxu0
        %1523 = vmatprep.mubr.f32.mxu0 0.0
        %1524 = vmatmul.mubr.f32.gmra.mrb[0].mxu0 %v1428
        %v1525 = vpop.f32.mrb[0].mxu0
        %v1526 = vadd.f32 0.0, %v1525
        %v1527 = vpop.f32.mrb[0].mxu0
        %1528 = vmatprep.mubr.f32.mxu0 0.0
        %1529 = vmatmul.mubr.f32.gmra.mrb[0].mxu0 %v1431
        %v1530 = vpop.f32.mrb[0].mxu0
        %v1531 = vadd.f32 0.0, %v1530
        %v1532 = vpop.f32.mrb[0].mxu0
        %1533 = vmatprep.mubr.f32.mxu0 0.0
        %1534 = vmatmul.mubr.f32.gmra.mrb[0].mxu0 %v1434
        %v1535 = vpop.f32.mrb[0].mxu0
        %v1536 = vadd.f32 0.0, %v1535
        %v1537 = vpop.f32.mrb[0].mxu0
        %1538 = vmatprep.mubr.f32.mxu0 0.0
        %1539 = vmatmul.mubr.f32.gmra.mrb[0].mxu0 %v1437
        %v1540 = vpop.f32.mrb[0].mxu0
        %v1541 = vadd.f32 0.0, %v1540
        %v1542 = vpop.f32.mrb[0].mxu0
        %1543 = vdwg.mxu0
        %v1544 = vadd.s32 %v574, 32
        %v1545 = vadd.s32 %v574, 40
        %v1546 = vadd.s32 %v574, 48
        %v1547 = vadd.s32 %v574, 56
        %vm1548 = vcmp.eq.s32.totalorder %v1544, %v579
        %vm1549 = vcmp.eq.s32.totalorder %v1545, %v579
        %vm1550 = vcmp.eq.s32.totalorder %v1546, %v579
        %vm1551 = vcmp.eq.s32.totalorder %v1547, %v579
        %v1552 = vsel %vm580, 1.0, %v1506
        %v1553 = vsel %vm581, 1.0, %v1511
        %v1554 = vsel %vm582, 1.0, %v1516
        %v1555 = vsel %vm583, 1.0, %v1521
        %v1556 = vsel %vm1548, 1.0, %v1526
        %v1557 = vsel %vm1549, 1.0, %v1531
        %v1558 = vsel %vm1550, 1.0, %v1536
        %v1559 = vsel %vm1551, 1.0, %v1541
        %v1560 = vsel %vm1104, %v1552, 0.0
        %1561 = vadd.xlane.f32.xlu0 %v1560
        %v1562 = vpop.xlane.xlu0 %1561
        %v1563 = vsel %vm1104, %v1553, 0.0
        %1564 = vadd.xlane.f32.xlu0 %v1563
        %v1565 = vpop.xlane.xlu0 %1564
        %v1566 = vsel %vm1104, %v1554, 0.0
        %1567 = vadd.xlane.f32.xlu0 %v1566
        %v1568 = vpop.xlane.xlu0 %1567
        %v1569 = vsel %vm1104, %v1555, 0.0
        %1570 = vadd.xlane.f32.xlu0 %v1569
        %v1571 = vpop.xlane.xlu0 %1570
        %v1572 = vsel %vm1104, %v1556, 0.0
        %1573 = vadd.xlane.f32.xlu0 %v1572
        %v1574 = vpop.xlane.xlu0 %1573
        %v1575 = vsel %vm1104, %v1557, 0.0
        %1576 = vadd.xlane.f32.xlu0 %v1575
        %v1577 = vpop.xlane.xlu0 %1576
        %v1578 = vsel %vm1104, %v1558, 0.0
        %1579 = vadd.xlane.f32.xlu0 %v1578
        %v1580 = vpop.xlane.xlu0 %1579
        %v1581 = vsel %vm1104, %v1559, 0.0
        %1582 = vadd.xlane.f32.xlu0 %v1581
        %v1583 = vpop.xlane.xlu0 %1582
        %v1584 = vmax.f32 %v1562, 1.0
        %v1585 = vmax.f32 %v1565, 1.0
        %v1586 = vmax.f32 %v1568, 1.0
        %v1587 = vmax.f32 %v1571, 1.0
        %v1588 = vmax.f32 %v1574, 1.0
        %v1589 = vmax.f32 %v1577, 1.0
        %v1590 = vmax.f32 %v1580, 1.0
        %v1591 = vmax.f32 %v1583, 1.0
        %v1592 = vadd.f32 %v1560, %v1563
        %v1593 = vadd.f32 %v1592, %v1566
        %v1594 = vadd.f32 %v1593, %v1569
        %v1595 = vadd.f32 %v1594, %v1572
        %v1596 = vadd.f32 %v1595, %v1575
        %v1597 = vadd.f32 %v1596, %v1578
        %v1598 = vadd.f32 %v1597, %v1581
        %v1599 = vrot.slane %v1598, 4
        %v1600 = vadd.f32 %v1598, %v1599
        %v1601 = vrot.slane %v1600, 2
        %v1602 = vadd.f32 %v1600, %v1601
        %v1603 = vrot.slane %v1602, 1
        %v1604 = vadd.f32 %v1602, %v1603
        %v1605 = vmax.f32 %v1604, 1.0
        %v1606 = vrsqrt.pop %v1584
        %v1607 = vrsqrt.pop %v1585
        %v1608 = vrsqrt.pop %v1586
        %v1609 = vrsqrt.pop %v1587
        %v1610 = vrsqrt.pop %v1588
        %v1611 = vrsqrt.pop %v1589
        %v1612 = vrsqrt.pop %v1590
        %v1613 = vrsqrt.pop %v1591
        %v1614 = vmul.f32 %v1606, %v1552
        %v1615 = vmul.f32 %v1607, %v1553
        %v1616 = vmul.f32 %v1608, %v1554
        %v1617 = vmul.f32 %v1609, %v1555
        %v1618 = vmul.f32 %v1610, %v1556
        %v1619 = vmul.f32 %v1611, %v1557
        %v1620 = vmul.f32 %v1612, %v1558
        %v1621 = vmul.f32 %v1613, %v1559
        %v1622 = vrsqrt.pop %v1605
        %v1623 = vmul.f32 %v1614, %v1622
        %v1624 = vmul.f32 %v1615, %v1622
        %v1625 = vmul.f32 %v1616, %v1622
        %v1626 = vmul.f32 %v1617, %v1622
        %v1627 = vmul.f32 %v1618, %v1622
        %v1628 = vmul.f32 %v1619, %v1622
        %v1629 = vmul.f32 %v1620, %v1622
        %v1630 = vmul.f32 %v1621, %v1622
        %v1631 = vld [vmem:[%s6] sm:$0xff]
        %v1632 = vld [vmem:[%s6 + $0x8] sm:$0xf]
        %v1633 = vld [vmem:[#allocation5] sm:$0x3]
        %v1634 = vld [vmem:[%s8] sm:$0xff]
        %v1635 = vld [vmem:[%s8 + $0x8] sm:$0xff]
        %v1636 = vld [vmem:[%s8 + $0x10] sm:$0xff]
        %v1637 = vld [vmem:[%s8 + $0x18] sm:$0xff]
        %v1638 = vld [vmem:[%s8 + $0x20] sm:$0xff]
        %v1639 = vld [vmem:[%s8 + $0x28] sm:$0xff]
        %v1640 = vld [vmem:[%s9] sm:$0xf]
        %v1642 = vsel %vm1104, %v1623, 0
        %v1645 = vsel %vm1104, %v1624, 0
        %v1648 = vsel %vm1104, %v1625, 0
        %v1651 = vsel %vm1104, %v1626, 0
        %v1654 = vsel %vm1104, %v1627, 0
        %v1657 = vsel %vm1104, %v1628, 0
        %v1660 = vsel %vm1104, %v1629, 0
        %v1663 = vsel %vm1104, %v1630, 0
        %1665 = vmatprep.subr.mxu0 0.0
        %1666 = vmatpush1.msra.mxu0 %v1272
        %1667 = vmatprep.subr.mxu0 0.0
        %1668 = vmatpush1.msra.mxu0 %v1277
        %1669 = vmatprep.subr.mxu0 0.0
        %1670 = vmatpush1.msra.mxu0 %v1282
        %1671 = vmatprep.subr.mxu0 0.0
        %1672 = vmatpush1.msra.mxu0 %v1287
        %1673 = vmatprep.subr.mxu0 0.0
        %1674 = vmatpush1.msra.mxu0 %v1292
        %1675 = vmatprep.subr.mxu0 0.0
        %1676 = vmatpush1.msra.mxu0 %v1297
        %1677 = vmatprep.subr.mxu0 0.0
        %1678 = vmatpush1.msra.mxu0 %v1302
        %1679 = vmatprep.subr.mxu0 0.0
        %1680 = vmatpush1.msra.mxu0 %v1307
        %1681 = vmatprep.subr.mxu0 0.0
        %1682 = vmatpush1.msra.mxu0 0.0
        %1683 = vmatprep.subr.mxu0 0.0
        %1684 = vmatpush1.msra.mxu0 0.0
        %1685 = vmatprep.subr.mxu0 0.0
        %1686 = vmatpush1.msra.mxu0 0.0
        %1687 = vmatprep.subr.mxu0 0.0
        %1688 = vmatpush1.msra.mxu0 0.0
        %1689 = vmatprep.subr.mxu0 0.0
        %1690 = vmatpush1.msra.mxu0 0.0
        %1691 = vmatprep.subr.mxu0 0.0
        %1692 = vmatpush1.msra.mxu0 0.0
        %1693 = vmatprep.subr.mxu0 0.0
        %1694 = vmatpush1.msra.mxu0 0.0
        %1695 = vmatprep.subr.mxu0 0.0
        %1696 = vmatpush1.msra.mxu0 0.0
        %1697 = vmatprep.subr.mxu0 0.0
        %1698 = vmatpush1.msra.mxu0 0.0
        %1699 = vmatprep.subr.mxu0 0.0
        %1700 = vmatpush1.msra.mxu0 0.0
        %1701 = vmatprep.subr.mxu0 0.0
        %1702 = vmatpush1.msra.mxu0 0.0
        %1703 = vmatprep.subr.mxu0 0.0
        %1704 = vmatpush1.msra.mxu0 0.0
        %1705 = vmatprep.subr.mxu0 0.0
        %1706 = vmatpush1.msra.mxu0 0.0
        %1707 = vmatprep.subr.mxu0 0.0
        %1708 = vmatpush1.msra.mxu0 0.0
        %1709 = vmatprep.subr.mxu0 0.0
        %1710 = vmatpush1.msra.mxu0 0.0
        %1711 = vmatprep.subr.mxu0 0.0
        %1712 = vmatpush1.msra.mxu0 0.0
        %1713 = vmatprep.subr.mxu0 0.0
        %1714 = vmatpush1.msra.mxu0 0.0
        %1715 = vmatprep.subr.mxu0 0.0
        %1716 = vmatpush1.msra.mxu0 0.0
        %1717 = vmatprep.subr.mxu0 0.0
        %1718 = vmatpush1.msra.mxu0 0.0
        %1719 = vmatprep.subr.mxu0 0.0
        %1720 = vmatpush1.msra.mxu0 0.0
        %1721 = vmatprep.subr.mxu0 0.0
        %1722 = vmatpush1.msra.mxu0 0.0
        %1723 = vmatprep.subr.mxu0 0.0
        %1724 = vmatpush1.msra.mxu0 0.0
        %1725 = vmatprep.subr.mxu0 0.0
        %1726 = vmatpush1.msra.mxu0 0.0
        %1727 = vmatprep.subr.mxu0 0.0
        %1728 = vmatpush1.msra.mxu0 0.0
        %1729 = vmatprep.mubr.f32.mxu0 0.0
        %1730 = vmatmul.mubr.f32.gmra.mrb[0].mxu0 %v1642
        %v1731 = vpop.f32.mrb[0].mxu0
        %v1732 = vadd.f32 0.0, %v1731
        %v1733 = vpop.f32.mrb[0].mxu0
        %1734 = vmatprep.mubr.f32.mxu0 0.0
        %1735 = vmatmul.mubr.f32.gmra.mrb[0].mxu0 %v1645
        %v1736 = vpop.f32.mrb[0].mxu0
        %v1737 = vadd.f32 0.0, %v1736
        %v1738 = vpop.f32.mrb[0].mxu0
        %1739 = vmatprep.mubr.f32.mxu0 0.0
        %1740 = vmatmul.mubr.f32.gmra.mrb[0].mxu0 %v1648
        %v1741 = vpop.f32.mrb[0].mxu0
        %v1742 = vadd.f32 0.0, %v1741
        %v1743 = vpop.f32.mrb[0].mxu0
        %1744 = vmatprep.mubr.f32.mxu0 0.0
        %1745 = vmatmul.mubr.f32.gmra.mrb[0].mxu0 %v1651
        %v1746 = vpop.f32.mrb[0].mxu0
        %v1747 = vadd.f32 0.0, %v1746
        %v1748 = vpop.f32.mrb[0].mxu0
        %1749 = vmatprep.mubr.f32.mxu0 0.0
        %1750 = vmatmul.mubr.f32.gmra.mrb[0].mxu0 %v1654
        %v1751 = vpop.f32.mrb[0].mxu0
        %v1752 = vadd.f32 0.0, %v1751
        %v1753 = vpop.f32.mrb[0].mxu0
        %1754 = vmatprep.mubr.f32.mxu0 0.0
        %1755 = vmatmul.mubr.f32.gmra.mrb[0].mxu0 %v1657
        %v1756 = vpop.f32.mrb[0].mxu0
        %v1757 = vadd.f32 0.0, %v1756
        %v1758 = vpop.f32.mrb[0].mxu0
        %1759 = vmatprep.mubr.f32.mxu0 0.0
        %1760 = vmatmul.mubr.f32.gmra.mrb[0].mxu0 %v1660
        %v1761 = vpop.f32.mrb[0].mxu0
        %v1762 = vadd.f32 0.0, %v1761
        %v1763 = vpop.f32.mrb[0].mxu0
        %1764 = vmatprep.mubr.f32.mxu0 0.0
        %1765 = vmatmul.mubr.f32.gmra.mrb[0].mxu0 %v1663
        %v1766 = vpop.f32.mrb[0].mxu0
        %v1767 = vadd.f32 0.0, %v1766
        %v1768 = vpop.f32.mrb[0].mxu0
        %1769 = vdwg.mxu0
        %v1770 = vlaneseq
        %v1771 = vshrl.u32 %v1770, 7
        %v1772 = vsub.s32 0, %v1771
        %v1773 = vrot.slane %v1633, %v1772
        %vm1774 = vcmask 97280
        %v1776 = vsel %vm1774, %v1732, 0
        %v1779 = vsel %vm1774, %v1737, 0
        %v1782 = vsel %vm1774, %v1742, 0
        %v1785 = vsel %vm1774, %v1747, 0
        %v1788 = vsel %vm1774, %v1752, 0
        %v1791 = vsel %vm1774, %v1757, 0
        %v1794 = vsel %vm1774, %v1762, 0
        %v1797 = vsel %vm1774, %v1767, 0
        %v1800 = vsel %vm751, %v1632, 0
        %1802 = vmatprep.subr.mxu0 0.0
        %1803 = vmatpush1.msra.mxu0 %v1631
        %1804 = vmatprep.subr.mxu0 0.0
        %1805 = vmatpush1.msra.mxu0 %v1800
        %1806 = vmatprep.subr.mxu0 0.0
        %1807 = vmatpush1.msra.mxu0 0.0
        %1808 = vmatprep.subr.mxu0 0.0
        %1809 = vmatpush1.msra.mxu0 0.0
        %1810 = vmatprep.subr.mxu0 0.0
        %1811 = vmatpush1.msra.mxu0 0.0
        %1812 = vmatprep.subr.mxu0 0.0
        %1813 = vmatpush1.msra.mxu0 0.0
        %1814 = vmatprep.subr.mxu0 0.0
        %1815 = vmatpush1.msra.mxu0 0.0
        %1816 = vmatprep.subr.mxu0 0.0
        %1817 = vmatpush1.msra.mxu0 0.0
        %1818 = vmatprep.subr.mxu0 0.0
        %1819 = vmatpush1.msra.mxu0 0.0
        %1820 = vmatprep.subr.mxu0 0.0
        %1821 = vmatpush1.msra.mxu0 0.0
        %1822 = vmatprep.subr.mxu0 0.0
        %1823 = vmatpush1.msra.mxu0 0.0
        %1824 = vmatprep.subr.mxu0 0.0
        %1825 = vmatpush1.msra.mxu0 0.0
        %1826 = vmatprep.subr.mxu0 0.0
        %1827 = vmatpush1.msra.mxu0 0.0
        %1828 = vmatprep.subr.mxu0 0.0
        %1829 = vmatpush1.msra.mxu0 0.0
        %1830 = vmatprep.subr.mxu0 0.0
        %1831 = vmatpush1.msra.mxu0 0.0
        %1832 = vmatprep.subr.mxu0 0.0
        %1833 = vmatpush1.msra.mxu0 0.0
        %1834 = vmatprep.subr.mxu0 0.0
        %1835 = vmatpush1.msra.mxu0 0.0
        %1836 = vmatprep.subr.mxu0 0.0
        %1837 = vmatpush1.msra.mxu0 0.0
        %1838 = vmatprep.subr.mxu0 0.0
        %1839 = vmatpush1.msra.mxu0 0.0
        %1840 = vmatprep.subr.mxu0 0.0
        %1841 = vmatpush1.msra.mxu0 0.0
        %1842 = vmatprep.subr.mxu0 0.0
        %1843 = vmatpush1.msra.mxu0 0.0
        %1844 = vmatprep.subr.mxu0 0.0
        %1845 = vmatpush1.msra.mxu0 0.0
        %1846 = vmatprep.subr.mxu0 0.0
        %1847 = vmatpush1.msra.mxu0 0.0
        %1848 = vmatprep.subr.mxu0 0.0
        %1849 = vmatpush1.msra.mxu0 0.0
        %1850 = vmatprep.subr.mxu0 0.0
        %1851 = vmatpush1.msra.mxu0 0.0
        %1852 = vmatprep.subr.mxu0 0.0
        %1853 = vmatpush1.msra.mxu0 0.0
        %1854 = vmatprep.subr.mxu0 0.0
        %1855 = vmatpush1.msra.mxu0 0.0
        %1856 = vmatprep.subr.mxu0 0.0
        %1857 = vmatpush1.msra.mxu0 0.0
        %1858 = vmatprep.subr.mxu0 0.0
        %1859 = vmatpush1.msra.mxu0 0.0
        %1860 = vmatprep.subr.mxu0 0.0
        %1861 = vmatpush1.msra.mxu0 0.0
        %1862 = vmatprep.subr.mxu0 0.0
        %1863 = vmatpush1.msra.mxu0 0.0
        %1864 = vmatprep.subr.mxu0 0.0
        %1865 = vmatpush1.msra.mxu0 0.0
        %1866 = vmatprep.mubr.f32.mxu0 0.0
        %1867 = vmatmul.mubr.f32.gmra.mrb[0].mxu0 %v1776
        %v1868 = vpop.f32.mrb[0].mxu0
        %v1869 = vadd.f32 %v1773, %v1868
        %v1870 = vpop.f32.mrb[0].mxu0
        %1871 = vmatprep.mubr.f32.mxu0 0.0
        %1872 = vmatmul.mubr.f32.gmra.mrb[0].mxu0 %v1779
        %v1873 = vpop.f32.mrb[0].mxu0
        %v1874 = vadd.f32 %v1773, %v1873
        %v1875 = vpop.f32.mrb[0].mxu0
        %1876 = vmatprep.mubr.f32.mxu0 0.0
        %1877 = vmatmul.mubr.f32.gmra.mrb[0].mxu0 %v1782
        %v1878 = vpop.f32.mrb[0].mxu0
        %v1879 = vadd.f32 %v1773, %v1878
        %v1880 = vpop.f32.mrb[0].mxu0
        %1881 = vmatprep.mubr.f32.mxu0 0.0
        %1882 = vmatmul.mubr.f32.gmra.mrb[0].mxu0 %v1785
        %v1883 = vpop.f32.mrb[0].mxu0
        %v1884 = vadd.f32 %v1773, %v1883
        %v1885 = vpop.f32.mrb[0].mxu0
        %1886 = vmatprep.mubr.f32.mxu0 0.0
        %1887 = vmatmul.mubr.f32.gmra.mrb[0].mxu0 %v1788
        %v1888 = vpop.f32.mrb[0].mxu0
        %v1889 = vadd.f32 %v1773, %v1888
        %v1890 = vpop.f32.mrb[0].mxu0
        %1891 = vmatprep.mubr.f32.mxu0 0.0
        %1892 = vmatmul.mubr.f32.gmra.mrb[0].mxu0 %v1791
        %v1893 = vpop.f32.mrb[0].mxu0
        %v1894 = vadd.f32 %v1773, %v1893
        %v1895 = vpop.f32.mrb[0].mxu0
        %1896 = vmatprep.mubr.f32.mxu0 0.0
        %1897 = vmatmul.mubr.f32.gmra.mrb[0].mxu0 %v1794
        %v1898 = vpop.f32.mrb[0].mxu0
        %v1899 = vadd.f32 %v1773, %v1898
        %v1900 = vpop.f32.mrb[0].mxu0
        %1901 = vmatprep.mubr.f32.mxu0 0.0
        %1902 = vmatmul.mubr.f32.gmra.mrb[0].mxu0 %v1797
        %v1903 = vpop.f32.mrb[0].mxu0
        %v1904 = vadd.f32 %v1773, %v1903
        %v1905 = vpop.f32.mrb[0].mxu0
        %1906 = vdwg.mxu0
        %vm1907 = vcmp.ge.f32.partialorder %v1869, 0.0
        %vm1908 = vcmp.ge.f32.partialorder %v1874, 0.0
        %vm1909 = vcmp.ge.f32.partialorder %v1879, 0.0
        %vm1910 = vcmp.ge.f32.partialorder %v1884, 0.0
        %vm1911 = vcmp.ge.f32.partialorder %v1889, 0.0
        %vm1912 = vcmp.ge.f32.partialorder %v1894, 0.0
        %vm1913 = vcmp.ge.f32.partialorder %v1899, 0.0
        %vm1914 = vcmp.ge.f32.partialorder %v1904, 0.0
        %v1915 = vlaneseq
        %v1916 = vshrl.u32 %v1915, 7
        %v1917 = vsub.s32 1, %v1916
        %v1918 = vrot.slane %v1633, %v1917
        %v1919 = vmul.f32 %v1918, %v1869
        %v1920 = vmul.f32 %v1918, %v1874
        %v1921 = vmul.f32 %v1918, %v1879
        %v1922 = vmul.f32 %v1918, %v1884
        %v1923 = vmul.f32 %v1918, %v1889
        %v1924 = vmul.f32 %v1918, %v1894
        %v1925 = vmul.f32 %v1918, %v1899
        %v1926 = vmul.f32 %v1918, %v1904
        %v1927 = vsel %vm1907, %v1869, %v1919
        %v1928 = vsel %vm1908, %v1874, %v1920
        %v1929 = vsel %vm1909, %v1879, %v1921
        %v1930 = vsel %vm1910, %v1884, %v1922
        %v1931 = vsel %vm1911, %v1889, %v1923
        %v1932 = vsel %vm1912, %v1894, %v1924
        %v1933 = vsel %vm1913, %v1899, %v1925
        %v1934 = vsel %vm1914, %v1904, %v1926
        %1935 = vmatprep.subr.mxu0 0.0
        %1936 = vmatpush1.msra.mxu0 %v1927
        %1937 = vmatprep.subr.mxu0 0.0
        %1938 = vmatpush1.msra.mxu0 %v1928
        %1939 = vmatprep.subr.mxu0 0.0
        %1940 = vmatpush1.msra.mxu0 %v1929
        %1941 = vmatprep.subr.mxu0 0.0
        %1942 = vmatpush1.msra.mxu0 %v1930
        %1943 = vmatprep.subr.mxu0 0.0
        %1944 = vmatpush1.msra.mxu0 %v1931
        %1945 = vmatprep.subr.mxu0 0.0
        %1946 = vmatpush1.msra.mxu0 %v1932
        %1947 = vmatprep.subr.mxu0 0.0
        %1948 = vmatpush1.msra.mxu0 %v1933
        %1949 = vmatprep.subr.mxu0 0.0
        %1950 = vmatpush1.msra.mxu0 %v1934
        %1951 = vmatprep.subr.mxu0 0.0
        %1952 = vmatpush1.msra.mxu0 0.0
        %1953 = vmatprep.subr.mxu0 0.0
        %1954 = vmatpush1.msra.mxu0 0.0
        %1955 = vmatprep.subr.mxu0 0.0
        %1956 = vmatpush1.msra.mxu0 0.0
        %1957 = vmatprep.subr.mxu0 0.0
        %1958 = vmatpush1.msra.mxu0 0.0
        %1959 = vmatprep.subr.mxu0 0.0
        %1960 = vmatpush1.msra.mxu0 0.0
        %1961 = vmatprep.subr.mxu0 0.0
        %1962 = vmatpush1.msra.mxu0 0.0
        %1963 = vmatprep.subr.mxu0 0.0
        %1964 = vmatpush1.msra.mxu0 0.0
        %1965 = vmatprep.subr.mxu0 0.0
        %1966 = vmatpush1.msra.mxu0 0.0
        %1967 = vmatprep.subr.mxu0 0.0
        %1968 = vmatpush1.msra.mxu0 0.0
        %1969 = vmatprep.subr.mxu0 0.0
        %1970 = vmatpush1.msra.mxu0 0.0
        %1971 = vmatprep.subr.mxu0 0.0
        %1972 = vmatpush1.msra.mxu0 0.0
        %1973 = vmatprep.subr.mxu0 0.0
        %1974 = vmatpush1.msra.mxu0 0.0
        %1975 = vmatprep.subr.mxu0 0.0
        %1976 = vmatpush1.msra.mxu0 0.0
        %1977 = vmatprep.subr.mxu0 0.0
        %1978 = vmatpush1.msra.mxu0 0.0
        %1979 = vmatprep.subr.mxu0 0.0
        %1980 = vmatpush1.msra.mxu0 0.0
        %1981 = vmatprep.subr.mxu0 0.0
        %1982 = vmatpush1.msra.mxu0 0.0
        %1983 = vmatprep.subr.mxu0 0.0
        %1984 = vmatpush1.msra.mxu0 0.0
        %1985 = vmatprep.subr.mxu0 0.0
        %1986 = vmatpush1.msra.mxu0 0.0
        %1987 = vmatprep.subr.mxu0 0.0
        %1988 = vmatpush1.msra.mxu0 0.0
        %1989 = vmatprep.subr.mxu0 0.0
        %1990 = vmatpush1.msra.mxu0 0.0
        %1991 = vmatprep.subr.mxu0 0.0
        %1992 = vmatpush1.msra.mxu0 0.0
        %1993 = vmatprep.subr.mxu0 0.0
        %1994 = vmatpush1.msra.mxu0 0.0
        %1995 = vmatprep.subr.mxu0 0.0
        %1996 = vmatpush1.msra.mxu0 0.0
        %1997 = vmatprep.subr.mxu0 0.0
        %1998 = vmatpush1.msra.mxu0 0.0
        %1999 = vmatprep.mubr.f32.mxu0 0.0
        %2000 = vmatmul.mubr.f32.gmra.mrb[0].mxu0 %v1642
        %v2001 = vpop.f32.mrb[0].mxu0
        %v2002 = vadd.f32 0.0, %v2001
        %v2003 = vpop.f32.mrb[0].mxu0
        %2004 = vmatprep.mubr.f32.mxu0 0.0
        %2005 = vmatmul.mubr.f32.gmra.mrb[0].mxu0 %v1645
        %v2006 = vpop.f32.mrb[0].mxu0
        %v2007 = vadd.f32 0.0, %v2006
        %v2008 = vpop.f32.mrb[0].mxu0
        %2009 = vmatprep.mubr.f32.mxu0 0.0
        %2010 = vmatmul.mubr.f32.gmra.mrb[0].mxu0 %v1648
        %v2011 = vpop.f32.mrb[0].mxu0
        %v2012 = vadd.f32 0.0, %v2011
        %v2013 = vpop.f32.mrb[0].mxu0
        %2014 = vmatprep.mubr.f32.mxu0 0.0
        %2015 = vmatmul.mubr.f32.gmra.mrb[0].mxu0 %v1651
        %v2016 = vpop.f32.mrb[0].mxu0
        %v2017 = vadd.f32 0.0, %v2016
        %v2018 = vpop.f32.mrb[0].mxu0
        %2019 = vmatprep.mubr.f32.mxu0 0.0
        %2020 = vmatmul.mubr.f32.gmra.mrb[0].mxu0 %v1654
        %v2021 = vpop.f32.mrb[0].mxu0
        %v2022 = vadd.f32 0.0, %v2021
        %v2023 = vpop.f32.mrb[0].mxu0
        %2024 = vmatprep.mubr.f32.mxu0 0.0
        %2025 = vmatmul.mubr.f32.gmra.mrb[0].mxu0 %v1657
        %v2026 = vpop.f32.mrb[0].mxu0
        %v2027 = vadd.f32 0.0, %v2026
        %v2028 = vpop.f32.mrb[0].mxu0
        %2029 = vmatprep.mubr.f32.mxu0 0.0
        %2030 = vmatmul.mubr.f32.gmra.mrb[0].mxu0 %v1660
        %v2031 = vpop.f32.mrb[0].mxu0
        %v2032 = vadd.f32 0.0, %v2031
        %v2033 = vpop.f32.mrb[0].mxu0
        %2034 = vmatprep.mubr.f32.mxu0 0.0
        %2035 = vmatmul.mubr.f32.gmra.mrb[0].mxu0 %v1663
        %v2036 = vpop.f32.mrb[0].mxu0
        %v2037 = vadd.f32 0.0, %v2036
        %v2038 = vpop.f32.mrb[0].mxu0
        %2039 = vdwg.mxu0
        %v2041 = vlaneseq
        %v2042 = vshrl.u32 %v2041, 7
        %v2043 = vsub.s32 0, %v2042
        %v2044 = vrot.slane %v1640, %v2043
        %v2045 = vlaneseq
        %v2046 = vshrl.u32 %v2045, 7
        %v2047 = vsub.s32 2, %v2046
        %v2048 = vrot.slane %v1640, %v2047
        %v2051 = vlaneseq
        %v2052 = vshrl.u32 %v2051, 7
        %v2053 = vsub.s32 0, %v2052
        %v2054 = vrot.slane %v2044, %v2053
        %v2055 = vlaneseq
        %v2056 = vshrl.u32 %v2055, 7
        %v2057 = vsub.s32 0, %v2056
        %v2058 = vrot.slane %v2048, %v2057
        %v2060 = vsel %vm960, %v2002, 0
        %v2063 = vsel %vm960, %v2007, 0
        %v2066 = vsel %vm960, %v2012, 0
        %v2069 = vsel %vm960, %v2017, 0
        %v2072 = vsel %vm960, %v2022, 0
        %v2075 = vsel %vm960, %v2027, 0
        %v2078 = vsel %vm960, %v2032, 0
        %v2081 = vsel %vm960, %v2037, 0
        %2083 = vmatprep.subr.mxu0 %v1635
        %2084 = vmatpush1.msra.mxu0 %v1634
        %2085 = vmatprep.subr.mxu0 %v1637
        %2086 = vmatpush1.msra.mxu0 %v1636
        %2087 = vmatprep.subr.mxu0 %v1639
        %2088 = vmatpush1.msra.mxu0 %v1638
        %2089 = vmatprep.subr.mxu0 0.0
        %2090 = vmatpush1.msra.mxu0 0.0
        %2091 = vmatprep.subr.mxu0 0.0
        %2092 = vmatpush1.msra.mxu0 0.0
        %2093 = vmatprep.subr.mxu0 0.0
        %2094 = vmatpush1.msra.mxu0 0.0
        %2095 = vmatprep.subr.mxu0 0.0
        %2096 = vmatpush1.msra.mxu0 0.0
        %2097 = vmatprep.subr.mxu0 0.0
        %2098 = vmatpush1.msra.mxu0 0.0
        %2099 = vmatprep.subr.mxu0 0.0
        %2100 = vmatpush1.msra.mxu0 0.0
        %2101 = vmatprep.subr.mxu0 0.0
        %2102 = vmatpush1.msra.mxu0 0.0
        %2103 = vmatprep.subr.mxu0 0.0
        %2104 = vmatpush1.msra.mxu0 0.0
        %2105 = vmatprep.subr.mxu0 0.0
        %2106 = vmatpush1.msra.mxu0 0.0
        %2107 = vmatprep.subr.mxu0 0.0
        %2108 = vmatpush1.msra.mxu0 0.0
        %2109 = vmatprep.subr.mxu0 0.0
        %2110 = vmatpush1.msra.mxu0 0.0
        %2111 = vmatprep.subr.mxu0 0.0
        %2112 = vmatpush1.msra.mxu0 0.0
        %2113 = vmatprep.subr.mxu0 0.0
        %2114 = vmatpush1.msra.mxu0 0.0
        %2115 = vmatprep.subr.mxu0 0.0
        %2116 = vmatpush1.msra.mxu0 0.0
        %2117 = vmatprep.subr.mxu0 0.0
        %2118 = vmatpush1.msra.mxu0 0.0
        %2119 = vmatprep.subr.mxu0 0.0
        %2120 = vmatpush1.msra.mxu0 0.0
        %2121 = vmatprep.subr.mxu0 0.0
        %2122 = vmatpush1.msra.mxu0 0.0
        %2123 = vmatprep.subr.mxu0 0.0
        %2124 = vmatpush1.msra.mxu0 0.0
        %2125 = vmatprep.subr.mxu0 0.0
        %2126 = vmatpush1.msra.mxu0 0.0
        %2127 = vmatprep.subr.mxu0 0.0
        %2128 = vmatpush1.msra.mxu0 0.0
        %2129 = vmatprep.subr.mxu0 0.0
        %2130 = vmatpush1.msra.mxu0 0.0
        %2131 = vmatprep.subr.mxu0 0.0
        %2132 = vmatpush1.msra.mxu0 0.0
        %2133 = vmatprep.subr.mxu0 0.0
        %2134 = vmatpush1.msra.mxu0 0.0
        %2135 = vmatprep.subr.mxu0 0.0
        %2136 = vmatpush1.msra.mxu0 0.0
        %2137 = vmatprep.subr.mxu0 0.0
        %2138 = vmatpush1.msra.mxu0 0.0
        %2139 = vmatprep.subr.mxu0 0.0
        %2140 = vmatpush1.msra.mxu0 0.0
        %2141 = vmatprep.subr.mxu0 0.0
        %2142 = vmatpush1.msra.mxu0 0.0
        %2143 = vmatprep.subr.mxu0 0.0
        %2144 = vmatpush1.msra.mxu0 0.0
        %2145 = vmatprep.subr.mxu0 0.0
        %2146 = vmatpush1.msra.mxu0 0.0
        %2147 = vmatprep.mubr.f32.mxu0 0.0
        %2148 = vmatmul.mubr.f32.gmra.mrb[0].mxu0 %v2060
        %v2149 = vpop.f32.mrb[0].mxu0
        %v2150 = vadd.f32 %v2054, %v2149
        %v2151 = vpop.f32.mrb[0].mxu0
        %v2152 = vadd.f32 %v2058, %v2151
        %2153 = vmatprep.mubr.f32.mxu0 0.0
        %2154 = vmatmul.mubr.f32.gmra.mrb[0].mxu0 %v2063
        %v2155 = vpop.f32.mrb[0].mxu0
        %v2156 = vadd.f32 %v2054, %v2155
        %v2157 = vpop.f32.mrb[0].mxu0
        %v2158 = vadd.f32 %v2058, %v2157
        %2159 = vmatprep.mubr.f32.mxu0 0.0
        %2160 = vmatmul.mubr.f32.gmra.mrb[0].mxu0 %v2066
        %v2161 = vpop.f32.mrb[0].mxu0
        %v2162 = vadd.f32 %v2054, %v2161
        %v2163 = vpop.f32.mrb[0].mxu0
        %v2164 = vadd.f32 %v2058, %v2163
        %2165 = vmatprep.mubr.f32.mxu0 0.0
        %2166 = vmatmul.mubr.f32.gmra.mrb[0].mxu0 %v2069
        %v2167 = vpop.f32.mrb[0].mxu0
        %v2168 = vadd.f32 %v2054, %v2167
        %v2169 = vpop.f32.mrb[0].mxu0
        %v2170 = vadd.f32 %v2058, %v2169
        %2171 = vmatprep.mubr.f32.mxu0 0.0
        %2172 = vmatmul.mubr.f32.gmra.mrb[0].mxu0 %v2072
        %v2173 = vpop.f32.mrb[0].mxu0
        %v2174 = vadd.f32 %v2054, %v2173
        %v2175 = vpop.f32.mrb[0].mxu0
        %v2176 = vadd.f32 %v2058, %v2175
        %2177 = vmatprep.mubr.f32.mxu0 0.0
        %2178 = vmatmul.mubr.f32.gmra.mrb[0].mxu0 %v2075
        %v2179 = vpop.f32.mrb[0].mxu0
        %v2180 = vadd.f32 %v2054, %v2179
        %v2181 = vpop.f32.mrb[0].mxu0
        %v2182 = vadd.f32 %v2058, %v2181
        %2183 = vmatprep.mubr.f32.mxu0 0.0
        %2184 = vmatmul.mubr.f32.gmra.mrb[0].mxu0 %v2078
        %v2185 = vpop.f32.mrb[0].mxu0
        %v2186 = vadd.f32 %v2054, %v2185
        %v2187 = vpop.f32.mrb[0].mxu0
        %v2188 = vadd.f32 %v2058, %v2187
        %2189 = vmatprep.mubr.f32.mxu0 0.0
        %2190 = vmatmul.mubr.f32.gmra.mrb[0].mxu0 %v2081
        %v2191 = vpop.f32.mrb[0].mxu0
        %v2192 = vadd.f32 %v2054, %v2191
        %v2193 = vpop.f32.mrb[0].mxu0
        %v2194 = vadd.f32 %v2058, %v2193
        %2195 = vdwg.mxu0
        %vm2196 = vcmp.ge.f32.partialorder %v2150, 0.0
        %vm2197 = vcmp.ge.f32.partialorder %v2152, 0.0
        %vm2198 = vcmp.ge.f32.partialorder %v2156, 0.0
        %vm2199 = vcmp.ge.f32.partialorder %v2158, 0.0
        %vm2200 = vcmp.ge.f32.partialorder %v2162, 0.0
        %vm2201 = vcmp.ge.f32.partialorder %v2164, 0.0
        %vm2202 = vcmp.ge.f32.partialorder %v2168, 0.0
        %vm2203 = vcmp.ge.f32.partialorder %v2170, 0.0
        %vm2204 = vcmp.ge.f32.partialorder %v2174, 0.0
        %vm2205 = vcmp.ge.f32.partialorder %v2176, 0.0
        %vm2206 = vcmp.ge.f32.partialorder %v2180, 0.0
        %vm2207 = vcmp.ge.f32.partialorder %v2182, 0.0
        %vm2208 = vcmp.ge.f32.partialorder %v2186, 0.0
        %vm2209 = vcmp.ge.f32.partialorder %v2188, 0.0
        %vm2210 = vcmp.ge.f32.partialorder %v2192, 0.0
        %vm2211 = vcmp.ge.f32.partialorder %v2194, 0.0
        %v2212 = vlaneseq
        %v2213 = vshrl.u32 %v2212, 7
        %v2214 = vsub.s32 1, %v2213
        %v2215 = vrot.slane %v1640, %v2214
        %v2216 = vlaneseq
        %v2217 = vshrl.u32 %v2216, 7
        %v2218 = vsub.s32 3, %v2217
        %v2219 = vrot.slane %v1640, %v2218
        %v2222 = vlaneseq
        %v2223 = vshrl.u32 %v2222, 7
        %v2224 = vsub.s32 1, %v2223
        %v2225 = vrot.slane %v2215, %v2224
        %v2226 = vlaneseq
        %v2227 = vshrl.u32 %v2226, 7
        %v2228 = vsub.s32 1, %v2227
        %v2229 = vrot.slane %v2219, %v2228
        %v2230 = vmul.f32 %v2225, %v2150
        %v2231 = vmul.f32 %v2229, %v2152
        %v2232 = vmul.f32 %v2225, %v2156
        %v2233 = vmul.f32 %v2229, %v2158
        %v2234 = vmul.f32 %v2225, %v2162
        %v2235 = vmul.f32 %v2229, %v2164
        %v2236 = vmul.f32 %v2225, %v2168
        %v2237 = vmul.f32 %v2229, %v2170
        %v2238 = vmul.f32 %v2225, %v2174
        %v2239 = vmul.f32 %v2229, %v2176
        %v2240 = vmul.f32 %v2225, %v2180
        %v2241 = vmul.f32 %v2229, %v2182
        %v2242 = vmul.f32 %v2225, %v2186
        %v2243 = vmul.f32 %v2229, %v2188
        %v2244 = vmul.f32 %v2225, %v2192
        %v2245 = vmul.f32 %v2229, %v2194
        %v2246 = vsel %vm2196, %v2150, %v2230
        %v2247 = vsel %vm2197, %v2152, %v2231
        %v2248 = vsel %vm2198, %v2156, %v2232
        %v2249 = vsel %vm2199, %v2158, %v2233
        %v2250 = vsel %vm2200, %v2162, %v2234
        %v2251 = vsel %vm2201, %v2164, %v2235
        %v2252 = vsel %vm2202, %v2168, %v2236
        %v2253 = vsel %vm2203, %v2170, %v2237
        %v2254 = vsel %vm2204, %v2174, %v2238
        %v2255 = vsel %vm2205, %v2176, %v2239
        %v2256 = vsel %vm2206, %v2180, %v2240
        %v2257 = vsel %vm2207, %v2182, %v2241
        %v2258 = vsel %vm2208, %v2186, %v2242
        %v2259 = vsel %vm2209, %v2188, %v2243
        %v2260 = vsel %vm2210, %v2192, %v2244
        %v2261 = vsel %vm2211, %v2194, %v2245
        %vm2262 = vcmp.lt.s32.totalorder %v574, 58
        %vm2263 = vcmp.lt.s32.totalorder %v575, 58
        %vm2264 = vcmp.lt.s32.totalorder %v576, 58
        %vm2265 = vcmp.lt.s32.totalorder %v577, 58
        %vm2266 = vcmp.lt.s32.totalorder %v1544, 58
        %vm2267 = vcmp.lt.s32.totalorder %v1545, 58
        %vm2268 = vcmp.lt.s32.totalorder %v1546, 58
        %vm2269 = vcmp.lt.s32.totalorder %v1547, 58
        %v2270 = vsel %vm2262, %v2247, 0.0
        %v2271 = vsel %vm2263, %v2249, 0.0
        %v2272 = vsel %vm2264, %v2251, 0.0
        %v2273 = vsel %vm2265, %v2253, 0.0
        %v2274 = vsel %vm2266, %v2255, 0.0
        %v2275 = vsel %vm2267, %v2257, 0.0
        %v2276 = vsel %vm2268, %v2259, 0.0
        %v2277 = vsel %vm2269, %v2261, 0.0
        %v2278 = vsel %vm1774, %v2246, -inf
        %2279 = vmax.xlane.f32.xlu0 %v2278
        %v2280 = vpop.xlane.xlu0 %2279
        %v2281 = vsel %vm1774, %v2248, -inf
        %2282 = vmax.xlane.f32.xlu0 %v2281
        %v2283 = vpop.xlane.xlu0 %2282
        %v2284 = vsel %vm1774, %v2250, -inf
        %2285 = vmax.xlane.f32.xlu0 %v2284
        %v2286 = vpop.xlane.xlu0 %2285
        %v2287 = vsel %vm1774, %v2252, -inf
        %2288 = vmax.xlane.f32.xlu0 %v2287
        %v2289 = vpop.xlane.xlu0 %2288
        %v2290 = vsel %vm1774, %v2254, -inf
        %2291 = vmax.xlane.f32.xlu0 %v2290
        %v2292 = vpop.xlane.xlu0 %2291
        %v2293 = vsel %vm1774, %v2256, -inf
        %2294 = vmax.xlane.f32.xlu0 %v2293
        %v2295 = vpop.xlane.xlu0 %2294
        %v2296 = vsel %vm1774, %v2258, -inf
        %2297 = vmax.xlane.f32.xlu0 %v2296
        %v2298 = vpop.xlane.xlu0 %2297
        %v2299 = vsel %vm1774, %v2260, -inf
        %2300 = vmax.xlane.f32.xlu0 %v2299
        %v2301 = vpop.xlane.xlu0 %2300
        %v2302 = vsub.f32 %v2246, %v2280
        %v2303 = vsub.f32 %v2248, %v2283
        %v2304 = vsub.f32 %v2250, %v2286
        %v2305 = vsub.f32 %v2252, %v2289
        %v2306 = vsub.f32 %v2254, %v2292
        %v2307 = vsub.f32 %v2256, %v2295
        %v2308 = vsub.f32 %v2258, %v2298
        %v2309 = vsub.f32 %v2260, %v2301
        %v2310 = vmul.f32 %v2302, 1.442695
        %v2311 = vpow.pop %v2310
        %v2312 = vmul.f32 %v2303, 1.442695
        %v2313 = vpow.pop %v2312
        %v2314 = vmul.f32 %v2304, 1.442695
        %v2315 = vpow.pop %v2314
        %v2316 = vmul.f32 %v2305, 1.442695
        %v2317 = vpow.pop %v2316
        %v2318 = vmul.f32 %v2306, 1.442695
        %v2319 = vpow.pop %v2318
        %v2320 = vmul.f32 %v2307, 1.442695
        %v2321 = vpow.pop %v2320
        %v2322 = vmul.f32 %v2308, 1.442695
        %v2323 = vpow.pop %v2322
        %v2324 = vmul.f32 %v2309, 1.442695
        %v2325 = vpow.pop %v2324
        %v2326 = vsel %vm1774, %v2311, 0.0
        %2327 = vadd.xlane.f32.xlu0 %v2326
        %v2328 = vpop.xlane.xlu0 %2327
        %v2329 = vsel %vm1774, %v2313, 0.0
        %2330 = vadd.xlane.f32.xlu0 %v2329
        %v2331 = vpop.xlane.xlu0 %2330
        %v2332 = vsel %vm1774, %v2315, 0.0
        %2333 = vadd.xlane.f32.xlu0 %v2332
        %v2334 = vpop.xlane.xlu0 %2333
        %v2335 = vsel %vm1774, %v2317, 0.0
        %2336 = vadd.xlane.f32.xlu0 %v2335
        %v2337 = vpop.xlane.xlu0 %2336
        %v2338 = vsel %vm1774, %v2319, 0.0
        %2339 = vadd.xlane.f32.xlu0 %v2338
        %v2340 = vpop.xlane.xlu0 %2339
        %v2341 = vsel %vm1774, %v2321, 0.0
        %2342 = vadd.xlane.f32.xlu0 %v2341
        %v2343 = vpop.xlane.xlu0 %2342
        %v2344 = vsel %vm1774, %v2323, 0.0
        %2345 = vadd.xlane.f32.xlu0 %v2344
        %v2346 = vpop.xlane.xlu0 %2345
        %v2347 = vsel %vm1774, %v2325, 0.0
        %2348 = vadd.xlane.f32.xlu0 %v2347
        %v2349 = vpop.xlane.xlu0 %2348
        %v2350 = vrcp.pop %v2328
        %v2351 = vrcp.pop %v2331
        %v2352 = vrcp.pop %v2334
        %v2353 = vrcp.pop %v2337
        %v2354 = vrcp.pop %v2340
        %v2355 = vrcp.pop %v2343
        %v2356 = vrcp.pop %v2346
        %v2357 = vrcp.pop %v2349
        %v2358 = vmul.f32 %v2311, %v2350
        %v2359 = vmul.f32 %v2313, %v2351
        %v2360 = vmul.f32 %v2315, %v2352
        %v2361 = vmul.f32 %v2317, %v2353
        %v2362 = vmul.f32 %v2319, %v2354
        %v2363 = vmul.f32 %v2321, %v2355
        %v2364 = vmul.f32 %v2323, %v2356
        %v2365 = vmul.f32 %v2325, %v2357
        %2366 = vxpose.xlu0.b32.start [1/16] %v2358, 128
        %2367 = vxpose.xlu0.b32.cont [2/16] %v2359, 128
        %2368 = vxpose.xlu0.b32.cont [3/16] %v2360, 128
        %2369 = vxpose.xlu0.b32.cont [4/16] %v2361, 128
        %2370 = vxpose.xlu0.b32.cont [5/16] %v2362, 128
        %2371 = vxpose.xlu0.b32.cont [6/16] %v2363, 128
        %2372 = vxpose.xlu0.b32.cont [7/16] %v2364, 128
        %2373 = vxpose.xlu0.b32.cont [8/16] %v2365, 128
        %2374 = vxpose.xlu0.b32.cont [9/16] 0.0, 128
        %2375 = vxpose.xlu0.b32.cont [10/16] 0.0, 128
        %2376 = vxpose.xlu0.b32.cont [11/16] 0.0, 128
        %2377 = vxpose.xlu0.b32.cont [12/16] 0.0, 128
        %2378 = vxpose.xlu0.b32.cont [13/16] 0.0, 128
        %2379 = vxpose.xlu0.b32.cont [14/16] 0.0, 128
        %2380 = vxpose.xlu0.b32.cont [15/16] 0.0, 128
        %2381 = vxpose.xlu0.b32.end [16/16] 0.0, 128
        %v2382 = vpop.trf.xlu0
        %v2383 = vpop.trf.xlu0
        %v2384 = vpop.trf.xlu0
        %v2385 = vpop.trf.xlu0
        %v2386 = vpop.trf.xlu0
        %v2387 = vpop.trf.xlu0
        %v2388 = vpop.trf.xlu0
        %v2389 = vpop.trf.xlu0
        %v2390 = vpop.trf.xlu0
        %v2391 = vpop.trf.xlu0
        %v2392 = vpop.trf.xlu0
        %v2393 = vpop.trf.xlu0
        %v2394 = vpop.trf.xlu0
        %v2395 = vpop.trf.xlu0
        %v2396 = vpop.trf.xlu0
        %v2397 = vpop.trf.xlu0
        %v2399 = vsel %vm1104, %v2382, 0
        %v2402 = vsel %vm1104, %v2383, 0
        %2404 = vmatprep.subr.mxu0 0.0
        %2405 = vmatpush1.msra.mxu0 %v2270
        %2406 = vmatprep.subr.mxu0 0.0
        %2407 = vmatpush1.msra.mxu0 %v2271
        %2408 = vmatprep.subr.mxu0 0.0
        %2409 = vmatpush1.msra.mxu0 %v2272
        %2410 = vmatprep.subr.mxu0 0.0
        %2411 = vmatpush1.msra.mxu0 %v2273
        %2412 = vmatprep.subr.mxu0 0.0
        %2413 = vmatpush1.msra.mxu0 %v2274
        %2414 = vmatprep.subr.mxu0 0.0
        %2415 = vmatpush1.msra.mxu0 %v2275
        %2416 = vmatprep.subr.mxu0 0.0
        %2417 = vmatpush1.msra.mxu0 %v2276
        %2418 = vmatprep.subr.mxu0 0.0
        %2419 = vmatpush1.msra.mxu0 %v2277
        %2420 = vmatprep.subr.mxu0 0.0
        %2421 = vmatpush1.msra.mxu0 0.0
        %2422 = vmatprep.subr.mxu0 0.0
        %2423 = vmatpush1.msra.mxu0 0.0
        %2424 = vmatprep.subr.mxu0 0.0
        %2425 = vmatpush1.msra.mxu0 0.0
        %2426 = vmatprep.subr.mxu0 0.0
        %2427 = vmatpush1.msra.mxu0 0.0
        %2428 = vmatprep.subr.mxu0 0.0
        %2429 = vmatpush1.msra.mxu0 0.0
        %2430 = vmatprep.subr.mxu0 0.0
        %2431 = vmatpush1.msra.mxu0 0.0
        %2432 = vmatprep.subr.mxu0 0.0
        %2433 = vmatpush1.msra.mxu0 0.0
        %2434 = vmatprep.subr.mxu0 0.0
        %2435 = vmatpush1.msra.mxu0 0.0
        %2436 = vmatprep.subr.mxu0 0.0
        %2437 = vmatpush1.msra.mxu0 0.0
        %2438 = vmatprep.subr.mxu0 0.0
        %2439 = vmatpush1.msra.mxu0 0.0
        %2440 = vmatprep.subr.mxu0 0.0
        %2441 = vmatpush1.msra.mxu0 0.0
        %2442 = vmatprep.subr.mxu0 0.0
        %2443 = vmatpush1.msra.mxu0 0.0
        %2444 = vmatprep.subr.mxu0 0.0
        %2445 = vmatpush1.msra.mxu0 0.0
        %2446 = vmatprep.subr.mxu0 0.0
        %2447 = vmatpush1.msra.mxu0 0.0
        %2448 = vmatprep.subr.mxu0 0.0
        %2449 = vmatpush1.msra.mxu0 0.0
        %2450 = vmatprep.subr.mxu0 0.0
        %2451 = vmatpush1.msra.mxu0 0.0
        %2452 = vmatprep.subr.mxu0 0.0
        %2453 = vmatpush1.msra.mxu0 0.0
        %2454 = vmatprep.subr.mxu0 0.0
        %2455 = vmatpush1.msra.mxu0 0.0
        %2456 = vmatprep.subr.mxu0 0.0
        %2457 = vmatpush1.msra.mxu0 0.0
        %2458 = vmatprep.subr.mxu0 0.0
        %2459 = vmatpush1.msra.mxu0 0.0
        %2460 = vmatprep.subr.mxu0 0.0
        %2461 = vmatpush1.msra.mxu0 0.0
        %2462 = vmatprep.subr.mxu0 0.0
        %2463 = vmatpush1.msra.mxu0 0.0
        %2464 = vmatprep.subr.mxu0 0.0
        %2465 = vmatpush1.msra.mxu0 0.0
        %2466 = vmatprep.subr.mxu0 0.0
        %2467 = vmatpush1.msra.mxu0 0.0
        %2468 = vmatprep.mubr.f32.mxu0 0.0
        %2469 = vmatmul.mubr.f32.gmra.mrb[0].mxu0 %v2399
        %v2470 = vpop.f32.mrb[0].mxu0
        %v2471 = vadd.f32 0.0, %v2470
        %v2472 = vpop.f32.mrb[0].mxu0
        %2473 = vmatprep.mubr.f32.mxu0 0.0
        %2474 = vmatmul.mubr.f32.gmra.mrb[0].mxu0 %v2402
        %v2475 = vpop.f32.mrb[0].mxu0
        %v2476 = vadd.f32 0.0, %v2475
        %v2477 = vpop.f32.mrb[0].mxu0
        %2478 = vdwg.mxu0
        %2479 = vmatprep.subr.mxu0 0.0
        %2480 = vmatpush1.msra.mxu0 %v1506
        %2481 = vmatprep.subr.mxu0 0.0
        %2482 = vmatpush1.msra.mxu0 %v1511
        %2483 = vmatprep.subr.mxu0 0.0
        %2484 = vmatpush1.msra.mxu0 %v1516
        %2485 = vmatprep.subr.mxu0 0.0
        %2486 = vmatpush1.msra.mxu0 %v1521
        %2487 = vmatprep.subr.mxu0 0.0
        %2488 = vmatpush1.msra.mxu0 %v1526
        %2489 = vmatprep.subr.mxu0 0.0
        %2490 = vmatpush1.msra.mxu0 %v1531
        %2491 = vmatprep.subr.mxu0 0.0
        %2492 = vmatpush1.msra.mxu0 %v1536
        %2493 = vmatprep.subr.mxu0 0.0
        %2494 = vmatpush1.msra.mxu0 %v1541
        %2495 = vmatprep.subr.mxu0 0.0
        %2496 = vmatpush1.msra.mxu0 0.0
        %2497 = vmatprep.subr.mxu0 0.0
        %2498 = vmatpush1.msra.mxu0 0.0
        %2499 = vmatprep.subr.mxu0 0.0
        %2500 = vmatpush1.msra.mxu0 0.0
        %2501 = vmatprep.subr.mxu0 0.0
        %2502 = vmatpush1.msra.mxu0 0.0
        %2503 = vmatprep.subr.mxu0 0.0
        %2504 = vmatpush1.msra.mxu0 0.0
        %2505 = vmatprep.subr.mxu0 0.0
        %2506 = vmatpush1.msra.mxu0 0.0
        %2507 = vmatprep.subr.mxu0 0.0
        %2508 = vmatpush1.msra.mxu0 0.0
        %2509 = vmatprep.subr.mxu0 0.0
        %2510 = vmatpush1.msra.mxu0 0.0
        %2511 = vmatprep.subr.mxu0 0.0
        %2512 = vmatpush1.msra.mxu0 0.0
        %2513 = vmatprep.subr.mxu0 0.0
        %2514 = vmatpush1.msra.mxu0 0.0
        %2515 = vmatprep.subr.mxu0 0.0
        %2516 = vmatpush1.msra.mxu0 0.0
        %2517 = vmatprep.subr.mxu0 0.0
        %2518 = vmatpush1.msra.mxu0 0.0
        %2519 = vmatprep.subr.mxu0 0.0
        %2520 = vmatpush1.msra.mxu0 0.0
        %2521 = vmatprep.subr.mxu0 0.0
        %2522 = vmatpush1.msra.mxu0 0.0
        %2523 = vmatprep.subr.mxu0 0.0
        %2524 = vmatpush1.msra.mxu0 0.0
        %2525 = vmatprep.subr.mxu0 0.0
        %2526 = vmatpush1.msra.mxu0 0.0
        %2527 = vmatprep.subr.mxu0 0.0
        %2528 = vmatpush1.msra.mxu0 0.0
        %2529 = vmatprep.subr.mxu0 0.0
        %2530 = vmatpush1.msra.mxu0 0.0
        %2531 = vmatprep.subr.mxu0 0.0
        %2532 = vmatpush1.msra.mxu0 0.0
        %2533 = vmatprep.subr.mxu0 0.0
        %2534 = vmatpush1.msra.mxu0 0.0
        %2535 = vmatprep.subr.mxu0 0.0
        %2536 = vmatpush1.msra.mxu0 0.0
        %2537 = vmatprep.subr.mxu0 0.0
        %2538 = vmatpush1.msra.mxu0 0.0
        %2539 = vmatprep.subr.mxu0 0.0
        %2540 = vmatpush1.msra.mxu0 0.0
        %2541 = vmatprep.subr.mxu0 0.0
        %2542 = vmatpush1.msra.mxu0 0.0
        %2543 = vmatprep.mubr.f32.mxu0 0.0
        %2544 = vmatmul.mubr.f32.gmra.mrb[0].mxu0 %v2399
        %v2545 = vpop.f32.mrb[0].mxu0
        %v2546 = vadd.f32 0.0, %v2545
        %v2547 = vpop.f32.mrb[0].mxu0
        %2548 = vmatprep.mubr.f32.mxu0 0.0
        %2549 = vmatmul.mubr.f32.gmra.mrb[0].mxu0 %v2402
        %v2550 = vpop.f32.mrb[0].mxu0
        %v2551 = vadd.f32 0.0, %v2550
        %v2552 = vpop.f32.mrb[0].mxu0
        %2553 = vdwg.mxu0
        %v2555 = vsel %vm1104, %v2546, 0
        %v2558 = vsel %vm1104, %v2551, 0
        %2560 = vmatprep.subr.mxu0 0.0
        %2561 = vmatpush1.msra.mxu0 %v2358
        %2562 = vmatprep.subr.mxu0 0.0
        %2563 = vmatpush1.msra.mxu0 %v2359
        %2564 = vmatprep.subr.mxu0 0.0
        %2565 = vmatpush1.msra.mxu0 %v2360
        %2566 = vmatprep.subr.mxu0 0.0
        %2567 = vmatpush1.msra.mxu0 %v2361
        %2568 = vmatprep.subr.mxu0 0.0
        %2569 = vmatpush1.msra.mxu0 %v2362
        %2570 = vmatprep.subr.mxu0 0.0
        %2571 = vmatpush1.msra.mxu0 %v2363
        %2572 = vmatprep.subr.mxu0 0.0
        %2573 = vmatpush1.msra.mxu0 %v2364
        %2574 = vmatprep.subr.mxu0 0.0
        %2575 = vmatpush1.msra.mxu0 %v2365
        %2576 = vmatprep.subr.mxu0 0.0
        %2577 = vmatpush1.msra.mxu0 0.0
        %2578 = vmatprep.subr.mxu0 0.0
        %2579 = vmatpush1.msra.mxu0 0.0
        %2580 = vmatprep.subr.mxu0 0.0
        %2581 = vmatpush1.msra.mxu0 0.0
        %2582 = vmatprep.subr.mxu0 0.0
        %2583 = vmatpush1.msra.mxu0 0.0
        %2584 = vmatprep.subr.mxu0 0.0
        %2585 = vmatpush1.msra.mxu0 0.0
        %2586 = vmatprep.subr.mxu0 0.0
        %2587 = vmatpush1.msra.mxu0 0.0
        %2588 = vmatprep.subr.mxu0 0.0
        %2589 = vmatpush1.msra.mxu0 0.0
        %2590 = vmatprep.subr.mxu0 0.0
        %2591 = vmatpush1.msra.mxu0 0.0
        %2592 = vmatprep.subr.mxu0 0.0
        %2593 = vmatpush1.msra.mxu0 0.0
        %2594 = vmatprep.subr.mxu0 0.0
        %2595 = vmatpush1.msra.mxu0 0.0
        %2596 = vmatprep.subr.mxu0 0.0
        %2597 = vmatpush1.msra.mxu0 0.0
        %2598 = vmatprep.subr.mxu0 0.0
        %2599 = vmatpush1.msra.mxu0 0.0
        %2600 = vmatprep.subr.mxu0 0.0
        %2601 = vmatpush1.msra.mxu0 0.0
        %2602 = vmatprep.subr.mxu0 0.0
        %2603 = vmatpush1.msra.mxu0 0.0
        %2604 = vmatprep.subr.mxu0 0.0
        %2605 = vmatpush1.msra.mxu0 0.0
        %2606 = vmatprep.subr.mxu0 0.0
        %2607 = vmatpush1.msra.mxu0 0.0
        %2608 = vmatprep.subr.mxu0 0.0
        %2609 = vmatpush1.msra.mxu0 0.0
        %2610 = vmatprep.subr.mxu0 0.0
        %2611 = vmatpush1.msra.mxu0 0.0
        %2612 = vmatprep.subr.mxu0 0.0
        %2613 = vmatpush1.msra.mxu0 0.0
        %2614 = vmatprep.subr.mxu0 0.0
        %2615 = vmatpush1.msra.mxu0 0.0
        %2616 = vmatprep.subr.mxu0 0.0
        %2617 = vmatpush1.msra.mxu0 0.0
        %2618 = vmatprep.subr.mxu0 0.0
        %2619 = vmatpush1.msra.mxu0 0.0
        %2620 = vmatprep.subr.mxu0 0.0
        %2621 = vmatpush1.msra.mxu0 0.0
        %2622 = vmatprep.subr.mxu0 0.0
        %2623 = vmatpush1.msra.mxu0 0.0
        %2624 = vmatprep.mubr.f32.mxu0 0.0
        %2625 = vmatmul.mubr.f32.gmra.mrb[0].mxu0 %v2555
        %v2626 = vpop.f32.mrb[0].mxu0
        %v2627 = vadd.f32 0.0, %v2626
        %v2628 = vpop.f32.mrb[0].mxu0
        %2629 = vmatprep.mubr.f32.mxu0 0.0
        %2630 = vmatmul.mubr.f32.gmra.mrb[0].mxu0 %v2558
        %v2631 = vpop.f32.mrb[0].mxu0
        %v2632 = vadd.f32 0.0, %v2631
        %v2633 = vpop.f32.mrb[0].mxu0
        %2634 = vdwg.mxu0
        %v2635 = vsel %vm580, 1.0, %v2627
        %v2636 = vsel %vm581, 1.0, %v2632
        %v2637 = vsel %vm1774, %v2635, 0.0
        %2638 = vadd.xlane.f32.xlu0 %v2637
        %v2639 = vpop.xlane.xlu0 %2638
        %vm2640 = vcmask 93184
        %v2641 = vsel %vm2640, %v2636, 0.0
        %2642 = vadd.xlane.f32.xlu0 %v2641
        %v2643 = vpop.xlane.xlu0 %2642
        %v2644 = vmax.f32 %v2639, 1.0
        %v2645 = vmax.f32 %v2643, 1.0
        %v2646 = vadd.f32 %v2637, %v2641
        %v2647 = vrot.slane %v2646, 4
        %v2648 = vadd.f32 %v2646, %v2647
        %v2649 = vrot.slane %v2648, 2
        %v2650 = vadd.f32 %v2648, %v2649
        %v2651 = vrot.slane %v2650, 1
        %v2652 = vadd.f32 %v2650, %v2651
        %v2653 = vmax.f32 %v2652, 1.0
        %v2654 = vrsqrt.pop %v2644
        %v2655 = vrsqrt.pop %v2645
        %v2656 = vmul.f32 %v2654, %v2635
        %v2657 = vmul.f32 %v2655, %v2636
        %v2658 = vrsqrt.pop %v2653
        %v2659 = vmul.f32 %v2656, %v2658
        %v2660 = vmul.f32 %v2657, %v2658
        %v2661 = vld [vmem:[%s10] sm:$0xff]
        %v2662 = vld [vmem:[%s10 + $0x8] sm:$0xf]
        %v2663 = vld [vmem:[%s11] sm:$0x3]
        %v2664 = vld [vmem:[%s12] sm:$0xf]
        %v2665 = vld [vmem:[%s13] sm:$0x3]
        %v2667 = vsel %vm1774, %v2659, 0
        %v2670 = vsel %vm1774, %v2660, 0
        %v2673 = vsel %vm751, %v2476, 0
        %2675 = vmatprep.subr.mxu0 0.0
        %2676 = vmatpush1.msra.mxu0 %v2471
        %2677 = vmatprep.subr.mxu0 0.0
        %2678 = vmatpush1.msra.mxu0 %v2673
        %2679 = vmatprep.subr.mxu0 0.0
        %2680 = vmatpush1.msra.mxu0 0.0
        %2681 = vmatprep.subr.mxu0 0.0
        %2682 = vmatpush1.msra.mxu0 0.0
        %2683 = vmatprep.subr.mxu0 0.0
        %2684 = vmatpush1.msra.mxu0 0.0
        %2685 = vmatprep.subr.mxu0 0.0
        %2686 = vmatpush1.msra.mxu0 0.0
        %2687 = vmatprep.subr.mxu0 0.0
        %2688 = vmatpush1.msra.mxu0 0.0
        %2689 = vmatprep.subr.mxu0 0.0
        %2690 = vmatpush1.msra.mxu0 0.0
        %2691 = vmatprep.subr.mxu0 0.0
        %2692 = vmatpush1.msra.mxu0 0.0
        %2693 = vmatprep.subr.mxu0 0.0
        %2694 = vmatpush1.msra.mxu0 0.0
        %2695 = vmatprep.subr.mxu0 0.0
        %2696 = vmatpush1.msra.mxu0 0.0
        %2697 = vmatprep.subr.mxu0 0.0
        %2698 = vmatpush1.msra.mxu0 0.0
        %2699 = vmatprep.subr.mxu0 0.0
        %2700 = vmatpush1.msra.mxu0 0.0
        %2701 = vmatprep.subr.mxu0 0.0
        %2702 = vmatpush1.msra.mxu0 0.0
        %2703 = vmatprep.subr.mxu0 0.0
        %2704 = vmatpush1.msra.mxu0 0.0
        %2705 = vmatprep.subr.mxu0 0.0
        %2706 = vmatpush1.msra.mxu0 0.0
        %2707 = vmatprep.subr.mxu0 0.0
        %2708 = vmatpush1.msra.mxu0 0.0
        %2709 = vmatprep.subr.mxu0 0.0
        %2710 = vmatpush1.msra.mxu0 0.0
        %2711 = vmatprep.subr.mxu0 0.0
        %2712 = vmatpush1.msra.mxu0 0.0
        %2713 = vmatprep.subr.mxu0 0.0
        %2714 = vmatpush1.msra.mxu0 0.0
        %2715 = vmatprep.subr.mxu0 0.0
        %2716 = vmatpush1.msra.mxu0 0.0
        %2717 = vmatprep.subr.mxu0 0.0
        %2718 = vmatpush1.msra.mxu0 0.0
        %2719 = vmatprep.subr.mxu0 0.0
        %2720 = vmatpush1.msra.mxu0 0.0
        %2721 = vmatprep.subr.mxu0 0.0
        %2722 = vmatpush1.msra.mxu0 0.0
        %2723 = vmatprep.subr.mxu0 0.0
        %2724 = vmatpush1.msra.mxu0 0.0
        %2725 = vmatprep.subr.mxu0 0.0
        %2726 = vmatpush1.msra.mxu0 0.0
        %2727 = vmatprep.subr.mxu0 0.0
        %2728 = vmatpush1.msra.mxu0 0.0
        %2729 = vmatprep.subr.mxu0 0.0
        %2730 = vmatpush1.msra.mxu0 0.0
        %2731 = vmatprep.subr.mxu0 0.0
        %2732 = vmatpush1.msra.mxu0 0.0
        %2733 = vmatprep.subr.mxu0 0.0
        %2734 = vmatpush1.msra.mxu0 0.0
        %2735 = vmatprep.subr.mxu0 0.0
        %2736 = vmatpush1.msra.mxu0 0.0
        %2737 = vmatprep.subr.mxu0 0.0
        %2738 = vmatpush1.msra.mxu0 0.0
        %2739 = vmatprep.mubr.f32.mxu0 0.0
        %2740 = vmatmul.mubr.f32.gmra.mrb[0].mxu0 %v2667
        %v2741 = vpop.f32.mrb[0].mxu0
        %v2742 = vadd.f32 0.0, %v2741
        %v2743 = vpop.f32.mrb[0].mxu0
        %2744 = vmatprep.mubr.f32.mxu0 0.0
        %2745 = vmatmul.mubr.f32.gmra.mrb[0].mxu0 %v2670
        %v2746 = vpop.f32.mrb[0].mxu0
        %v2747 = vadd.f32 0.0, %v2746
        %v2748 = vpop.f32.mrb[0].mxu0
        %2749 = vdwg.mxu0
        %v2750 = vlaneseq
        %v2751 = vshrl.u32 %v2750, 7
        %v2752 = vsub.s32 0, %v2751
        %v2753 = vrot.slane %v2663, %v2752
        %v2755 = vsel %vm1774, %v2742, 0
        %v2758 = vsel %vm1774, %v2747, 0
        %v2761 = vsel %vm751, %v2662, 0
        %2763 = vmatprep.subr.mxu0 0.0
        %2764 = vmatpush1.msra.mxu0 %v2661
        %2765 = vmatprep.subr.mxu0 0.0
        %2766 = vmatpush1.msra.mxu0 %v2761
        %2767 = vmatprep.subr.mxu0 0.0
        %2768 = vmatpush1.msra.mxu0 0.0
        %2769 = vmatprep.subr.mxu0 0.0
        %2770 = vmatpush1.msra.mxu0 0.0
        %2771 = vmatprep.subr.mxu0 0.0
        %2772 = vmatpush1.msra.mxu0 0.0
        %2773 = vmatprep.subr.mxu0 0.0
        %2774 = vmatpush1.msra.mxu0 0.0
        %2775 = vmatprep.subr.mxu0 0.0
        %2776 = vmatpush1.msra.mxu0 0.0
        %2777 = vmatprep.subr.mxu0 0.0
        %2778 = vmatpush1.msra.mxu0 0.0
        %2779 = vmatprep.subr.mxu0 0.0
        %2780 = vmatpush1.msra.mxu0 0.0
        %2781 = vmatprep.subr.mxu0 0.0
        %2782 = vmatpush1.msra.mxu0 0.0
        %2783 = vmatprep.subr.mxu0 0.0
        %2784 = vmatpush1.msra.mxu0 0.0
        %2785 = vmatprep.subr.mxu0 0.0
        %2786 = vmatpush1.msra.mxu0 0.0
        %2787 = vmatprep.subr.mxu0 0.0
        %2788 = vmatpush1.msra.mxu0 0.0
        %2789 = vmatprep.subr.mxu0 0.0
        %2790 = vmatpush1.msra.mxu0 0.0
        %2791 = vmatprep.subr.mxu0 0.0
        %2792 = vmatpush1.msra.mxu0 0.0
        %2793 = vmatprep.subr.mxu0 0.0
        %2794 = vmatpush1.msra.mxu0 0.0
        %2795 = vmatprep.subr.mxu0 0.0
        %2796 = vmatpush1.msra.mxu0 0.0
        %2797 = vmatprep.subr.mxu0 0.0
        %2798 = vmatpush1.msra.mxu0 0.0
        %2799 = vmatprep.subr.mxu0 0.0
        %2800 = vmatpush1.msra.mxu0 0.0
        %2801 = vmatprep.subr.mxu0 0.0
        %2802 = vmatpush1.msra.mxu0 0.0
        %2803 = vmatprep.subr.mxu0 0.0
        %2804 = vmatpush1.msra.mxu0 0.0
        %2805 = vmatprep.subr.mxu0 0.0
        %2806 = vmatpush1.msra.mxu0 0.0
        %2807 = vmatprep.subr.mxu0 0.0
        %2808 = vmatpush1.msra.mxu0 0.0
        %2809 = vmatprep.subr.mxu0 0.0
        %2810 = vmatpush1.msra.mxu0 0.0
        %2811 = vmatprep.subr.mxu0 0.0
        %2812 = vmatpush1.msra.mxu0 0.0
        %2813 = vmatprep.subr.mxu0 0.0
        %2814 = vmatpush1.msra.mxu0 0.0
        %2815 = vmatprep.subr.mxu0 0.0
        %2816 = vmatpush1.msra.mxu0 0.0
        %2817 = vmatprep.subr.mxu0 0.0
        %2818 = vmatpush1.msra.mxu0 0.0
        %2819 = vmatprep.subr.mxu0 0.0
        %2820 = vmatpush1.msra.mxu0 0.0
        %2821 = vmatprep.subr.mxu0 0.0
        %2822 = vmatpush1.msra.mxu0 0.0
        %2823 = vmatprep.subr.mxu0 0.0
        %2824 = vmatpush1.msra.mxu0 0.0
        %2825 = vmatprep.subr.mxu0 0.0
        %2826 = vmatpush1.msra.mxu0 0.0
        %2827 = vmatprep.mubr.f32.mxu0 0.0
        %2828 = vmatmul.mubr.f32.gmra.mrb[0].mxu0 %v2755
        %v2829 = vpop.f32.mrb[0].mxu0
        %v2830 = vadd.f32 %v2753, %v2829
        %v2831 = vpop.f32.mrb[0].mxu0
        %2832 = vmatprep.mubr.f32.mxu0 0.0
        %2833 = vmatmul.mubr.f32.gmra.mrb[0].mxu0 %v2758
        %v2834 = vpop.f32.mrb[0].mxu0
        %v2835 = vadd.f32 %v2753, %v2834
        %v2836 = vpop.f32.mrb[0].mxu0
        %2837 = vdwg.mxu0
        %vm2838 = vcmp.ge.f32.partialorder %v2830, 0.0
        %vm2839 = vcmp.ge.f32.partialorder %v2835, 0.0
        %v2840 = vlaneseq
        %v2841 = vshrl.u32 %v2840, 7
        %v2842 = vsub.s32 1, %v2841
        %v2843 = vrot.slane %v2663, %v2842
        %v2844 = vmul.f32 %v2843, %v2830
        %v2845 = vmul.f32 %v2843, %v2835
        %v2846 = vsel %vm2838, %v2830, %v2844
        %v2847 = vsel %vm2839, %v2835, %v2845
        %v2849 = vsel %vm751, %v2847, 0
        %2851 = vmatprep.subr.mxu0 0.0
        %2852 = vmatpush1.msra.mxu0 %v2846
        %2853 = vmatprep.subr.mxu0 0.0
        %2854 = vmatpush1.msra.mxu0 %v2849
        %2855 = vmatprep.subr.mxu0 0.0
        %2856 = vmatpush1.msra.mxu0 0.0
        %2857 = vmatprep.subr.mxu0 0.0
        %2858 = vmatpush1.msra.mxu0 0.0
        %2859 = vmatprep.subr.mxu0 0.0
        %2860 = vmatpush1.msra.mxu0 0.0
        %2861 = vmatprep.subr.mxu0 0.0
        %2862 = vmatpush1.msra.mxu0 0.0
        %2863 = vmatprep.subr.mxu0 0.0
        %2864 = vmatpush1.msra.mxu0 0.0
        %2865 = vmatprep.subr.mxu0 0.0
        %2866 = vmatpush1.msra.mxu0 0.0
        %2867 = vmatprep.subr.mxu0 0.0
        %2868 = vmatpush1.msra.mxu0 0.0
        %2869 = vmatprep.subr.mxu0 0.0
        %2870 = vmatpush1.msra.mxu0 0.0
        %2871 = vmatprep.subr.mxu0 0.0
        %2872 = vmatpush1.msra.mxu0 0.0
        %2873 = vmatprep.subr.mxu0 0.0
        %2874 = vmatpush1.msra.mxu0 0.0
        %2875 = vmatprep.subr.mxu0 0.0
        %2876 = vmatpush1.msra.mxu0 0.0
        %2877 = vmatprep.subr.mxu0 0.0
        %2878 = vmatpush1.msra.mxu0 0.0
        %2879 = vmatprep.subr.mxu0 0.0
        %2880 = vmatpush1.msra.mxu0 0.0
        %2881 = vmatprep.subr.mxu0 0.0
        %2882 = vmatpush1.msra.mxu0 0.0
        %2883 = vmatprep.subr.mxu0 0.0
        %2884 = vmatpush1.msra.mxu0 0.0
        %2885 = vmatprep.subr.mxu0 0.0
        %2886 = vmatpush1.msra.mxu0 0.0
        %2887 = vmatprep.subr.mxu0 0.0
        %2888 = vmatpush1.msra.mxu0 0.0
        %2889 = vmatprep.subr.mxu0 0.0
        %2890 = vmatpush1.msra.mxu0 0.0
        %2891 = vmatprep.subr.mxu0 0.0
        %2892 = vmatpush1.msra.mxu0 0.0
        %2893 = vmatprep.subr.mxu0 0.0
        %2894 = vmatpush1.msra.mxu0 0.0
        %2895 = vmatprep.subr.mxu0 0.0
        %2896 = vmatpush1.msra.mxu0 0.0
        %2897 = vmatprep.subr.mxu0 0.0
        %2898 = vmatpush1.msra.mxu0 0.0
        %2899 = vmatprep.subr.mxu0 0.0
        %2900 = vmatpush1.msra.mxu0 0.0
        %2901 = vmatprep.subr.mxu0 0.0
        %2902 = vmatpush1.msra.mxu0 0.0
        %2903 = vmatprep.subr.mxu0 0.0
        %2904 = vmatpush1.msra.mxu0 0.0
        %2905 = vmatprep.subr.mxu0 0.0
        %2906 = vmatpush1.msra.mxu0 0.0
        %2907 = vmatprep.subr.mxu0 0.0
        %2908 = vmatpush1.msra.mxu0 0.0
        %2909 = vmatprep.subr.mxu0 0.0
        %2910 = vmatpush1.msra.mxu0 0.0
        %2911 = vmatprep.subr.mxu0 0.0
        %2912 = vmatpush1.msra.mxu0 0.0
        %2913 = vmatprep.subr.mxu0 0.0
        %2914 = vmatpush1.msra.mxu0 0.0
        %2915 = vmatprep.mubr.f32.mxu0 0.0
        %2916 = vmatmul.mubr.f32.gmra.mrb[0].mxu0 %v2667
        %v2917 = vpop.f32.mrb[0].mxu0
        %v2918 = vadd.f32 0.0, %v2917
        %v2919 = vpop.f32.mrb[0].mxu0
        %2920 = vmatprep.mubr.f32.mxu0 0.0
        %2921 = vmatmul.mubr.f32.gmra.mrb[0].mxu0 %v2670
        %v2922 = vpop.f32.mrb[0].mxu0
        %v2923 = vadd.f32 0.0, %v2922
        %v2924 = vpop.f32.mrb[0].mxu0
        %2925 = vdwg.mxu0
        %v2926 = vlaneseq
        %v2927 = vshrl.u32 %v2926, 7
        %v2928 = vsub.s32 0, %v2927
        %v2929 = vrot.slane %v2665, %v2928
        %v2931 = vsel %vm738, %v2918, 0
        %v2934 = vsel %vm738, %v2923, 0
        %v2937 = vsel %vm751, %v2664, 0
        %2939 = vmatprep.subr.mxu0 0.0
        %2940 = vmatpush1.msra.mxu0 %v2937
        %2941 = vmatprep.subr.mxu0 0.0
        %2942 = vmatpush1.msra.mxu0 0.0
        %2943 = vmatprep.subr.mxu0 0.0
        %2944 = vmatpush1.msra.mxu0 0.0
        %2945 = vmatprep.subr.mxu0 0.0
        %2946 = vmatpush1.msra.mxu0 0.0
        %2947 = vmatprep.subr.mxu0 0.0
        %2948 = vmatpush1.msra.mxu0 0.0
        %2949 = vmatprep.subr.mxu0 0.0
        %2950 = vmatpush1.msra.mxu0 0.0
        %2951 = vmatprep.subr.mxu0 0.0
        %2952 = vmatpush1.msra.mxu0 0.0
        %2953 = vmatprep.subr.mxu0 0.0
        %2954 = vmatpush1.msra.mxu0 0.0
        %2955 = vmatprep.subr.mxu0 0.0
        %2956 = vmatpush1.msra.mxu0 0.0
        %2957 = vmatprep.subr.mxu0 0.0
        %2958 = vmatpush1.msra.mxu0 0.0
        %2959 = vmatprep.subr.mxu0 0.0
        %2960 = vmatpush1.msra.mxu0 0.0
        %2961 = vmatprep.subr.mxu0 0.0
        %2962 = vmatpush1.msra.mxu0 0.0
        %2963 = vmatprep.subr.mxu0 0.0
        %2964 = vmatpush1.msra.mxu0 0.0
        %2965 = vmatprep.subr.mxu0 0.0
        %2966 = vmatpush1.msra.mxu0 0.0
        %2967 = vmatprep.subr.mxu0 0.0
        %2968 = vmatpush1.msra.mxu0 0.0
        %2969 = vmatprep.subr.mxu0 0.0
        %2970 = vmatpush1.msra.mxu0 0.0
        %2971 = vmatprep.subr.mxu0 0.0
        %2972 = vmatpush1.msra.mxu0 0.0
        %2973 = vmatprep.subr.mxu0 0.0
        %2974 = vmatpush1.msra.mxu0 0.0
        %2975 = vmatprep.subr.mxu0 0.0
        %2976 = vmatpush1.msra.mxu0 0.0
        %2977 = vmatprep.subr.mxu0 0.0
        %2978 = vmatpush1.msra.mxu0 0.0
        %2979 = vmatprep.subr.mxu0 0.0
        %2980 = vmatpush1.msra.mxu0 0.0
        %2981 = vmatprep.subr.mxu0 0.0
        %2982 = vmatpush1.msra.mxu0 0.0
        %2983 = vmatprep.subr.mxu0 0.0
        %2984 = vmatpush1.msra.mxu0 0.0
        %2985 = vmatprep.subr.mxu0 0.0
        %2986 = vmatpush1.msra.mxu0 0.0
        %2987 = vmatprep.subr.mxu0 0.0
        %2988 = vmatpush1.msra.mxu0 0.0
        %2989 = vmatprep.subr.mxu0 0.0
        %2990 = vmatpush1.msra.mxu0 0.0
        %2991 = vmatprep.subr.mxu0 0.0
        %2992 = vmatpush1.msra.mxu0 0.0
        %2993 = vmatprep.subr.mxu0 0.0
        %2994 = vmatpush1.msra.mxu0 0.0
        %2995 = vmatprep.subr.mxu0 0.0
        %2996 = vmatpush1.msra.mxu0 0.0
        %2997 = vmatprep.subr.mxu0 0.0
        %2998 = vmatpush1.msra.mxu0 0.0
        %2999 = vmatprep.subr.mxu0 0.0
        %3000 = vmatpush1.msra.mxu0 0.0
        %3001 = vmatprep.subr.mxu0 0.0
        %3002 = vmatpush1.msra.mxu0 0.0
        %3003 = vmatprep.mubr.f32.mxu0 0.0
        %3004 = vmatmul.mubr.f32.gmra.mrb[0].mxu0 %v2931
        %v3005 = vpop.f32.mrb[0].mxu0
        %v3006 = vadd.f32 %v2929, %v3005
        %v3007 = vpop.f32.mrb[0].mxu0
        %3008 = vmatprep.mubr.f32.mxu0 0.0
        %3009 = vmatmul.mubr.f32.gmra.mrb[0].mxu0 %v2934
        %v3010 = vpop.f32.mrb[0].mxu0
        %v3011 = vadd.f32 %v2929, %v3010
        %v3012 = vpop.f32.mrb[0].mxu0
        %3013 = vdwg.mxu0
        %vm3014 = vcmp.ge.f32.partialorder %v3006, 0.0
        %vm3015 = vcmp.ge.f32.partialorder %v3011, 0.0
        %v3016 = vlaneseq
        %v3017 = vshrl.u32 %v3016, 7
        %v3018 = vsub.s32 1, %v3017
        %v3019 = vrot.slane %v2665, %v3018
        %v3020 = vmul.f32 %v3019, %v3006
        %v3021 = vmul.f32 %v3019, %v3011
        %v3022 = vsel %vm3014, %v3006, %v3020
        %v3023 = vsel %vm3015, %v3011, %v3021
        %v3024 = vld [vmem:[%s15] sm:$0xf]
        %v3025 = vld [vmem:[%s14] sm:$0xff]
        %v3026 = vld [vmem:[%s14 + $0x8] sm:$0xf]
        %v3027 = vld [vmem:[%s14 + $0x10] sm:$0xff]
        %v3028 = vld [vmem:[%s14 + $0x18] sm:$0xf]
        %v3029 = vld [vmem:[%s14 + $0x20] sm:$0xff]
        %v3030 = vld [vmem:[%s14 + $0x28] sm:$0xf]
        %v3031 = vld [vmem:[%s14 + $0x30] sm:$0xff]
        %v3032 = vld [vmem:[%s14 + $0x38] sm:$0xf]
        %v3033 = vmul.f32 %v3025, %v3022
        %v3034 = vmul.f32 %v3026, %v3023
        %v3035 = vmul.f32 %v3027, %v3022
        %v3036 = vmul.f32 %v3028, %v3023
        %v3037 = vmul.f32 %v3029, %v3022
        %v3038 = vmul.f32 %v3030, %v3023
        %v3039 = vmul.f32 %v3031, %v3022
        %v3040 = vmul.f32 %v3032, %v3023
        %v3041 = vsel %vm738, %v3033, 0.0
        %3042 = vadd.xlane.f32.xlu0 %v3041
        %v3043 = vpop.xlane.xlu0 %3042
        %vm3044 = vcmask 27648
        %v3045 = vsel %vm3044, %v3034, 0.0
        %3046 = vadd.xlane.f32.xlu0 %v3045
        %v3047 = vpop.xlane.xlu0 %3046
        %v3048 = vsel %vm738, %v3035, 0.0
        %3049 = vadd.xlane.f32.xlu0 %v3048
        %v3050 = vpop.xlane.xlu0 %3049
        %v3051 = vsel %vm3044, %v3036, 0.0
        %3052 = vadd.xlane.f32.xlu0 %v3051
        %v3053 = vpop.xlane.xlu0 %3052
        %v3054 = vsel %vm738, %v3037, 0.0
        %3055 = vadd.xlane.f32.xlu0 %v3054
        %v3056 = vpop.xlane.xlu0 %3055
        %v3057 = vsel %vm3044, %v3038, 0.0
        %3058 = vadd.xlane.f32.xlu0 %v3057
        %v3059 = vpop.xlane.xlu0 %3058
        %v3060 = vsel %vm738, %v3039, 0.0
        %3061 = vadd.xlane.f32.xlu0 %v3060
        %v3062 = vpop.xlane.xlu0 %3061
        %v3063 = vsel %vm3044, %v3040, 0.0
        %3064 = vadd.xlane.f32.xlu0 %v3063
        %v3065 = vpop.xlane.xlu0 %3064
        %v3074 = vlaneseq
        %v3075 = vshrl.u32 %v3074, 7
        %v3076 = vsub.s32 %v579, %v3075
        %v3077 = vrot.slane %v3043, %v3076
        %v3078 = vadd.s32 %v579, 4294967288
        %v3079 = vlaneseq
        %v3080 = vshrl.u32 %v3079, 7
        %v3081 = vsub.s32 %v3078, %v3080
        %v3082 = vrot.slane %v3047, %v3081
        %vm3083 = vcmask 130112
        %v3084 = vsel %vm3083, %v3082, %v3077
        %v3085 = vlaneseq
        %v3086 = vshrl.u32 %v3085, 7
        %v3087 = vsub.s32 %v579, %v3086
        %v3088 = vrot.slane %v3050, %v3087
        %v3089 = vlaneseq
        %v3090 = vshrl.u32 %v3089, 7
        %v3091 = vsub.s32 %v3078, %v3090
        %v3092 = vrot.slane %v3053, %v3091
        %v3093 = vsel %vm3083, %v3092, %v3088
        %v3094 = vlaneseq
        %v3095 = vshrl.u32 %v3094, 7
        %v3096 = vsub.s32 %v579, %v3095
        %v3097 = vrot.slane %v3056, %v3096
        %v3098 = vlaneseq
        %v3099 = vshrl.u32 %v3098, 7
        %v3100 = vsub.s32 %v3078, %v3099
        %v3101 = vrot.slane %v3059, %v3100
        %v3102 = vsel %vm3083, %v3101, %v3097
        %v3103 = vlaneseq
        %v3104 = vshrl.u32 %v3103, 7
        %v3105 = vsub.s32 %v579, %v3104
        %v3106 = vrot.slane %v3062, %v3105
        %v3107 = vlaneseq
        %v3108 = vshrl.u32 %v3107, 7
        %v3109 = vsub.s32 %v3078, %v3108
        %v3110 = vrot.slane %v3065, %v3109
        %v3111 = vsel %vm3083, %v3110, %v3106
        %vm3112 = vcmask 1041409
        %v3113 = vsel %vm3112, %v3093, %v3084
        %vm3114 = vcmask 1042434
        %v3115 = vsel %vm3114, %v3102, %v3113
        %vm3116 = vcmask 1043459
        %v3117 = vsel %vm3116, %v3111, %v3115
        %v3119 = vsel %vm2640, %v3117, 0.0
        %3120 = vadd.xlane.f32.xlu0 %v3119
        %v3121 = vpop.xlane.xlu0 %3120
        %v3122 = vadd.f32 %v3121, %v3024
        %vm3123 = vcmp.ge.f32.partialorder %v3122, 0.0
        %3125 = vrot.lane.b32.xlu0 %v3122, 1
        %v3126 = vpop.permute.xlu0 %3125
        %v3128 = vmul.f32 %v3024, %v3126
        %3130 = vrot.lane.b32.xlu0 %v3128, 127
        %v3131 = vpop.permute.xlu0 %3130
        %v3133 = vsel %vm3123, %v3122, %v3131
        %3135 = vrot.lane.b32.xlu0 %v3024, 126
        %v3136 = vpop.permute.xlu0 %3135
        %v3138 = vmul.f32 %v3133, %v3136
        %vm3139 = vcmask 3072
        %v3140 = vsel %vm3139, %v3138, 0.0
        %v3141 = vrot.slane %v3140, 4
        %v3142 = vadd.f32 %v3140, %v3141
        %v3143 = vrot.slane %v3142, 2
        %v3144 = vadd.f32 %v3142, %v3143
        %v3145 = vrot.slane %v3144, 1
        %v3146 = vadd.f32 %v3144, %v3145
        %3147 = vrot.lane.b32.xlu0 %v3024, 125
        %v3148 = vpop.permute.xlu0 %3147
        %v3150 = vadd.f32 %v3146, %v3148
        %3152 = vset.pattern.permute.xlu0 0
        %3153 = vperm.xlu0 %3152, %v3150
        %v3154 = vpop.permute.xlu0 %3153
        %3156 = vst [vmem:[%s554] sm:$0x1] %v3154
        %s3157 = sand.u32 %s386, 1
        %s3158 = scalar_lea.sflag [#allocation4], %s3157
        %s3159 = sand.u32 %s386, 1
        %s3160 = scalar_lea.vmem [#allocation7], %s3159
        // Predicated region
        $region93: #{tpu_custom_call.1} parent=83 // pred_check
          %p3161 = pneg %p396
        $region94: #{tpu_custom_call.1} parent=83 // pred_check_branch
          %3163 = sbr.rel (%p3161) target = $region96
        $region95: #{tpu_custom_call.1} parent=83 // pred_region
          %s3165 = ssub.s32 16, 16
          %3166 = vsyncadd %s3158, %s3165
          %s3167 = smul.addr %s32, 16
          %s3168 = scalar_lea.hbm %s16, %s3167
          %s3170 = sshll.u32 %s3160, 4
          %s3171 = int_to_ptr.vmem [resolvable:$true] %s3170
          %3173 = dma.vmem_to_hbm [thread:$0]  %s3171, 16, %s3168, %s3158
        $region96: #{tpu_custom_call.1} parent=83 // pred_fallthru
          _
      $region84: #{tpu_custom_call.1} parent=5 // pred_fallthru
        _
      %p3174 = scmp.le.s32.totalorder 2, %s27
      // Predicated region
      $region97: #{tpu_custom_call.1} parent=5 // pred_check
        %p3175 = pneg %p3174
      $region98: #{tpu_custom_call.1} parent=5 // pred_check_branch
        %3177 = sbr.rel (%p3175) target = $region100
      $region99: #{tpu_custom_call.1} parent=5 // pred_region
        %s3178 = ssub.s32 %s27, 2
        // Predicated region
        $region101: #{tpu_custom_call.1} parent=99 // pred_check
          %p3179 = pneg %p402
        $region102: #{tpu_custom_call.1} parent=99 // pred_check_branch
          %3181 = sbr.rel (%p3179) target = $region104
        $region103: #{tpu_custom_call.1} parent=99 // pred_region
          %s3182 = sand.u32 %s387, 1
          %s3183 = scalar_lea.sflag [#allocation4], %s3182
          %s3184 = sand.u32 %s387, 1
          %s3185 = scalar_lea.vmem [#allocation7], %s3184
          %3186 = dma.done %s3183, 16
        $region104: #{tpu_custom_call.1} parent=99 // pred_fallthru
          _
      $region100: #{tpu_custom_call.1} parent=5 // pred_fallthru
        _
    $region6: #{tpu_custom_call.1} parent=1 // loop_footer
      %s31 = sadd.s32 1, %s27
    $region7: #{tpu_custom_call.1} parent=1 // loop_footer_branch
      %26 = sbr.rel target = $region3
    $region8: #{tpu_custom_call.1} parent=1 // loop_exit
      _
    %3187 = vsyncpa [#allocation3], 1
    %s3188 = scalar_lea.sflag [#allocation3], 1
    %3189 = vsyncpa %s3188, 1
    %3190 = vsyncpa [#allocation6], 1
    %3191 = vsyncpa [#allocation4], 1
    %s3192 = scalar_lea.sflag [#allocation4], 1
    %3193 = vsyncpa %s3192, 1

</llo_original>
